<compile_context>
chip_gen: v6e
topology: v6e:2x2x1
jax: 0.10.0
libtpu: 0.0.40
codegen_flags: <defaults>
</compile_context>

<pallas_src>
import functools
import math

import jax
import jax.numpy as jnp
from jax.experimental import pallas as pl
from jax.experimental.pallas import tpu as pltpu


# -----------------------------------------------------------------------------
# Device / tiling helpers
# -----------------------------------------------------------------------------
def _tensorcores_per_chip() -> int:
    """v7x has 2 TensorCores per chip; v5e/v6e have 1.  Fallback: 1."""
    try:
        kind = jax.devices()[0].device_kind.lower()
        if "v7" in kind or "tpu7" in kind:
            return 2
    except Exception:
        pass
    return 1


def _round_up(x: int, m: int) -> int:
    return -(-x // m) * m


def _head_tiling(m: int, tm_cap: int = 1024):
    """Pick (tile_m, n_steps): fewest/largest grid steps (grid is a serial loop on a
    1-TC chip), with the step count a multiple of the TensorCore count so a
    "parallel" grid splits evenly across v7x's 2 cores."""
    n_par = _tensorcores_per_chip()
    n_steps = max(n_par, _round_up(m, tm_cap) // tm_cap)
    n_steps = _round_up(n_steps, n_par)
    tm = _round_up(-(-m // n_steps), 8)          # sublane-aligned
    return tm, n_steps


# -----------------------------------------------------------------------------
# Kernels
# -----------------------------------------------------------------------------
def conv1x1_gn_kernel(x_ref, wt_ref, b_ref, gamma_ref, beta_ref, gsum_ref, o_ref,
                      *, num_groups: int, eps: float = 1e-5):
    """One batch element, channel-major (NCHW-native).

    x_ref:     (1, Cin, HW)   input feature map (Cin on sublanes, HW on lanes)
    wt_ref:    (C, Cin)       1x1 conv weight, transposed
    b_/gamma_/beta_ref: (C,1) per-channel params (columns)
    gsum_ref:  (C, C)         block-diagonal ones: gsum[i,j]=1 iff same group
    o_ref:     (1, C, HW)     output, channel-major
    """
    f32 = jnp.float32
    x = x_ref[0].astype(f32)                      # (Cin, HW)
    wt = wt_ref[...].astype(f32)                  # (C, Cin)
    Cin, HW = x.shape
    C = wt.shape[0]
    n = float((C // num_groups) * HW)

    # 1x1 conv as Cin rank-1 VPU FMAs (K=4/8 would leave the MXU ~97% idle).
    # TODO(synk): for ResNet-sized channels (512/1024/2048) switch to an MXU matmul
    # on an (HW, Cin) oriented tile instead of this unrolled loop.
    y = jnp.zeros((C, HW), f32)
    for c in range(Cin):                          # Cin is static (4 or 8)
        y = y + wt[:, c:c + 1] * x[c:c + 1, :]
    y = y + b_ref[...].astype(f32)                # (C,1) broadcast over lanes

    # GroupNorm, centered two-pass (numerically safer than E[x^2]-E[x]^2):
    # per-channel lane sums, group-reduce + broadcast-back via the precomputed
    # block-diagonal matrix (MXU otherwise idle here).
    gsum = gsum_ref[...].astype(f32)              # (C,C)
    s1 = jnp.sum(y, axis=1, keepdims=True)        # (C,1)
    mean_c = jnp.dot(gsum, s1, preferred_element_type=f32) * (1.0 / n)
    yc = y - mean_c
    s2 = jnp.sum(yc * yc, axis=1, keepdims=True)  # (C,1)
    var_c = jnp.dot(gsum, s2, preferred_element_type=f32) * (1.0 / n)

    out = yc * jax.lax.rsqrt(var_c + eps)
    out = out * gamma_ref[...].astype(f32) + beta_ref[...].astype(f32)
    o_ref[0] = out.astype(o_ref.dtype)
    # TODO(synk): for real DETR resolutions (HW ~ 10k+), add a grid over HW with
    # per-tile partial GroupNorm sums finalized in a second pass (v7x 64 MiB VMEM),
    # and emit the output in bf16 if the transformer tolerates it.


def clip_query_kernel(text_ref, img_ref, mask_ref, w_ref, bt_ref, bi_ref,
                      q_ref, qori_ref):
    """img L2-normalize (+eps), fused patch2query/patch2query_img, bernoulli mixing.

    clip_query = (text@wt+bt)*m + (img_n@wi+bi)*(1-m)
               = [text*m | img_n*(1-m)] @ [[wt];[wi]] + (bt*m + bi*(1-m))
    """
    f32 = jnp.float32
    text = text_ref[...].astype(f32)              # (T, 512)
    img = img_ref[...].astype(f32)                # (T, 512)
    m = mask_ref[...].astype(f32)                 # (T, 1)

    # eps guards an all-zero row (rsqrt(0)=inf -> NaN would poison both outputs).
    img_n = img * jax.lax.rsqrt(jnp.sum(img * img, axis=-1, keepdims=True) + 1e-12)

    qori_ref[...] = (text * m + img_n * (1.0 - m)).astype(qori_ref.dtype)

    lhs = jnp.concatenate([text * m, img_n * (1.0 - m)], axis=1).astype(jnp.bfloat16)
    bias = bt_ref[...].astype(f32) * m + bi_ref[...].astype(f32) * (1.0 - m)
    q = jnp.dot(lhs, w_ref[...], preferred_element_type=f32) + bias
    q_ref[...] = q.astype(q_ref.dtype)


def head_kernel(hs_ref, refslab_ref, wf_ref, bf_ref, w2_ref, b2_ref, w3_ref, b3_ref,
                slab_ref, embed_ref):
    """Fused per-query head on a tile of M rows (all decoder levels at once).

    hs_ref:      (TM, D)  f32 (cast to bf16 in-kernel)
    refslab_ref: (TM, 128) f32, lanes 0/1 = inverse_sigmoid(reference), rest 0
    wf_ref:      (D, D+Demb+128) bf16 = [w1 | wa | class cols at lane offset 4]
    w2_ref:      (D, D) bf16, w3_ref: (D, 128) bf16 (cols 0..3 real)
    Outputs: slab (TM,128) = [sigmoid box coords @ lanes 0..3 | logits @ 4..4+Ncls],
             embed (TM, Demb).
    """
    f32 = jnp.float32
    D = hs_ref.shape[1]
    NF = wf_ref.shape[1]
    Demb = NF - D - 128

    hs = hs_ref[...].astype(jnp.bfloat16)                              # (TM, D)
    fused = jnp.dot(hs, wf_ref[...], preferred_element_type=f32) + bf_ref[...].astype(f32)
    h1 = fused[:, :D]                      # bbox_embed layer-1 pre-act
    emb = fused[:, D:D + Demb]             # feature_align
    logit_slab = fused[:, D + Demb:]       # class_embed (lanes 4..4+Ncls real, rest 0)

    embed_ref[...] = emb.astype(embed_ref.dtype)

    # bbox_embed MLP layers 2 & 3 (relu on first two layers).
    h = jnp.maximum(h1, 0.0).astype(jnp.bfloat16)
    h = jnp.dot(h, w2_ref[...], preferred_element_type=f32) + b2_ref[...].astype(f32)
    h = jnp.maximum(h, 0.0).astype(jnp.bfloat16)
    tmp = jnp.dot(h, w3_ref[...], preferred_element_type=f32) + b3_ref[...].astype(f32)

    # inverse_sigmoid(reference) precomputed wrapper-side as a lane-dense slab.
    tmp = tmp + refslab_ref[...]

    # Pack sigmoid(coords) (lanes 0..3) and raw logits (lanes >= 4) into one store.
    lane = jax.lax.broadcasted_iota(jnp.int32, tmp.shape, 1)
    slab = jnp.where(lane < 4, jax.nn.sigmoid(tmp), logit_slab)
    slab_ref[...] = slab.astype(slab_ref.dtype)


# -----------------------------------------------------------------------------
# Wrappers
# -----------------------------------------------------------------------------
@functools.partial(jax.jit, static_argnames=("num_groups",))
def input_proj_pallas(x_nc_hw, wt, b, gamma, beta, gsum, *, num_groups=32):
    """x_nc_hw: (B, Cin, HW) NCHW-native; wt: (C, Cin). Returns (B, C, HW) (NCHW)."""
    B, Cin, HW = x_nc_hw.shape
    C = wt.shape[0]
    return pl.pallas_call(
        functools.partial(conv1x1_gn_kernel, num_groups=num_groups),
        out_shape=jax.ShapeDtypeStruct((B, C, HW), x_nc_hw.dtype),
        grid=(B,),
        in_specs=[
            pl.BlockSpec((1, Cin, HW), lambda bi: (bi, 0, 0)),
            pl.BlockSpec((C, Cin), lambda bi: (0, 0)),
            pl.BlockSpec((C, 1), lambda bi: (0, 0)),
            pl.BlockSpec((C, 1), lambda bi: (0, 0)),
            pl.BlockSpec((C, 1), lambda bi: (0, 0)),
            pl.BlockSpec((C, C), lambda bi: (0, 0)),
        ],
        out_specs=pl.BlockSpec((1, C, HW), lambda bi: (bi, 0, 0)),
        compiler_params=pltpu.CompilerParams(dimension_semantics=("parallel",)),
    )(x_nc_hw, wt, b, gamma, beta, gsum)


@jax.jit
def clip_query_pallas(text_q, img_q, mix_mask, w_stack, bt, bi):
    """w_stack/bt/bi are pre-fused/pre-shaped in build_params (no per-call prep)."""
    T, Din = text_q.shape
    Dout = bt.shape[1]
    return pl.pallas_call(
        clip_query_kernel,
        out_shape=(
            jax.ShapeDtypeStruct((T, Dout), jnp.float32),   # clip_query (projected)
            jax.ShapeDtypeStruct((T, Din), jnp.float32),    # clip_query_ori
        ),
    )(text_q, img_q, mix_mask, w_stack, bt, bi)


@functools.partial(jax.jit, static_argnames=("tile_m", "n_steps", "ncls"))
def head_pallas(hs, init_reference, inter_references, hp, *, tile_m, n_steps, ncls):
    """hs: (L,B,Q,D) f32; references: (B,Q,2) / (L,B,Q,2). One pallas_call, all levels."""
    L, B, Q, D = hs.shape
    NF = hp["wf"].shape[1]
    Demb = NF - D - 128
    assert D % 128 == 0 and Demb % 128 == 0 and ncls <= 124

    M = L * B * Q
    TM = tile_m
    Mp = TM * n_steps

    hs_flat = hs.reshape(M, D)                                # f32; bf16 cast in-kernel

    # inverse_sigmoid(reference) as a lane-dense additive slab (cols 0/1 real).
    ref_all = jnp.concatenate([init_reference[None], inter_references[:L - 1]], axis=0)
    r = jnp.clip(ref_all.reshape(M, 2).astype(jnp.float32), 0.0, 1.0)
    eps = 1e-5
    ref_inv = jnp.log(jnp.maximum(r, eps) / jnp.maximum(1.0 - r, eps))
    ref_slab = jnp.pad(ref_inv, ((0, Mp - M), (0, 126)))

    if Mp != M:
        hs_flat = jnp.pad(hs_flat, ((0, Mp - M), (0, 0)))

    slab, embed = pl.pallas_call(
        head_kernel,
        out_shape=(
            jax.ShapeDtypeStruct((Mp, 128), jnp.float32),     # [coords | logits] packed
            jax.ShapeDtypeStruct((Mp, Demb), jnp.float32),    # feature_align embed
        ),
        grid=(n_steps,),
        in_specs=[
            pl.BlockSpec((TM, D), lambda i: (i, 0)),
            pl.BlockSpec((TM, 128), lambda i: (i, 0)),
            pl.BlockSpec((D, NF), lambda i: (0, 0)),
            pl.BlockSpec((1, NF), lambda i: (0, 0)),
            pl.BlockSpec((D, D), lambda i: (0, 0)),
            pl.BlockSpec((1, D), lambda i: (0, 0)),
            pl.BlockSpec((D, 128), lambda i: (0, 0)),
            pl.BlockSpec((1, 128), lambda i: (0, 0)),
        ],
        out_specs=(
            pl.BlockSpec((TM, 128), lambda i: (i, 0)),
            pl.BlockSpec((TM, Demb), lambda i: (i, 0)),
        ),
        compiler_params=pltpu.CompilerParams(dimension_semantics=("parallel",)),
    )(hs_flat, ref_slab, hp["wf"], hp["bf"], hp["w2"], hp["b2"], hp["w3"], hp["b3"])

    coords = slab[:M, :4].reshape(L, B, Q, 4)
    logits = slab[:M, 4:4 + ncls].reshape(L, B, Q, ncls)
    embeds = embed[:M].reshape(L, B, Q, Demb)
    return logits, coords, embeds


# -----------------------------------------------------------------------------
# Deterministic parameter construction (synthetic; mirrors the __init__ shapes).
# All fusing/padding/bf16 casting of weights happens ONCE here (hoisted out of
# the per-forward jitted wrappers per the perf review).
# -----------------------------------------------------------------------------
def build_params(key, hidden_dim=256, clip_dim=512, cls_out_channels=1,
                 backbone_channels=(4, 8), num_groups=32):
    f32 = jnp.float32
    bf16 = jnp.bfloat16
    keys = jax.random.split(key, 16)
    p = {"meta": {"num_groups": num_groups, "cls_out_channels": cls_out_channels}}

    # input_proj: 1x1 conv (xavier-ish) + GroupNorm(32, hidden), stored pre-transposed.
    p["input_proj"] = []
    for i, cin in enumerate(backbone_channels):
        w = jax.random.normal(keys[i], (cin, hidden_dim), f32) * math.sqrt(2.0 / (cin + hidden_dim))
        p["input_proj"].append({
            "wt": jnp.transpose(w),                            # (C, Cin)
            "b": jnp.zeros((hidden_dim, 1), f32),
            "gamma": jnp.ones((hidden_dim, 1), f32),
            "beta": jnp.zeros((hidden_dim, 1), f32),
        })
    # Precomputed GroupNorm group-sum matrix (block-diagonal ones).
    cg = hidden_dim // num_groups
    ch = jnp.arange(hidden_dim)
    p["gn_gsum"] = (ch[:, None] // cg == ch[None, :] // cg).astype(f32)

    # patch2query / patch2query_img : Linear(512, 256), pre-stacked for the fused matmul.
    wt = jax.random.normal(keys[4], (clip_dim, hidden_dim), f32) * 0.02
    wi = jax.random.normal(keys[5], (clip_dim, hidden_dim), f32) * 0.02
    p["clip"] = {
        "w_stack": jnp.concatenate([wt, wi], axis=0).astype(bf16),   # (2*512, 256)
        "bt": jnp.zeros((1, hidden_dim), f32),
        "bi": jnp.zeros((1, hidden_dim), f32),
    }

    # heads (shared across decoder levels since with_box_refine=False)
    prior_prob = 0.01
    bias_value = -math.log((1 - prior_prob) / prior_prob)
    wc = jax.random.normal(keys[6], (hidden_dim, cls_out_channels), f32) * 0.02
    bc = jnp.full((cls_out_channels,), bias_value, f32)
    w1 = jax.random.normal(keys[7], (hidden_dim, hidden_dim), f32) * 0.02
    b1 = jnp.zeros((hidden_dim,), f32)
    w2 = jax.random.normal(keys[8], (hidden_dim, hidden_dim), f32) * 0.02
    b2 = jnp.zeros((hidden_dim,), f32)
    # last bbox layer: weight=0, bias=[0,0,-2,-2] (per DeformableDETR init)
    w3 = jnp.zeros((hidden_dim, 4), f32)
    b3 = jnp.array([0.0, 0.0, -2.0, -2.0], f32)
    # feature_align : Linear(256, 512)
    wa = jax.random.normal(keys[9], (hidden_dim, clip_dim), f32) * 0.02
    ba = jnp.zeros((clip_dim,), f32)

    # Fused N-dim weight [bbox layer-1 | feature_align | class slab].  Class columns
    # sit at lane offset 4 of the final 128-wide slab so the kernel can pack coords
    # (lanes 0..3) and logits (lanes 4..4+Ncls) into a single output store.
    wc_slab = jnp.zeros((hidden_dim, 128), f32).at[:, 4:4 + cls_out_channels].set(wc)
    bc_slab = jnp.zeros((128,), f32).at[4:4 + cls_out_channels].set(bc)
    p["head"] = {
        "wf": jnp.concatenate([w1, wa, wc_slab], axis=1).astype(bf16),   # (D, D+Demb+128)
        "bf": jnp.concatenate([b1, ba, bc_slab]).reshape(1, -1).astype(f32),
        "w2": w2.astype(bf16),
        "b2": b2.reshape(1, -1),
        "w3": jnp.pad(w3, ((0, 0), (0, 124))).astype(bf16),              # (D, 128)
        "b3": jnp.pad(b3, (0, 124)).reshape(1, -1),
    }
    return p


# -----------------------------------------------------------------------------
# OVDETR.forward_train (Pallas)
# -----------------------------------------------------------------------------
def ovdetr_forward_train(params, features_nchw, text_query, img_query, mix_mask,
                         hs, init_reference, inter_references):
    """features_nchw: list of (B, C, H, W) backbone outputs (NCHW, like PyTorch)."""
    num_groups = params["meta"]["num_groups"]
    ncls = params["meta"]["cls_out_channels"]

    # ---- input_proj on each backbone level (1x1 conv + GroupNorm), NCHW-native ----
    srcs = []
    for lvl, feat in enumerate(features_nchw):
        B, Cin, H, W = feat.shape
        x = feat.reshape(B, Cin, H * W)                               # no transpose
        pp = params["input_proj"][lvl]
        y = input_proj_pallas(x, pp["wt"], pp["b"], pp["gamma"], pp["beta"],
                              params["gn_gsum"], num_groups=num_groups)
        srcs.append(y.reshape(B, -1, H, W))                           # NCHW like torch

    # ---- clip query construction (text/img mixing + patch2query projections) ----
    clip_query, clip_query_ori = clip_query_pallas(
        text_query, img_query, mix_mask,
        params["clip"]["w_stack"], params["clip"]["bt"], params["clip"]["bi"])

    # TODO(synk): backbone (ResNet + pos embed) and the deformable transformer are
    # external submodules; srcs/clip_query would feed the transformer, whose outputs
    # (hs, init_reference, inter_references) are provided here as synthesized inputs.
    L, B, Q, D = hs.shape
    tm, n_steps = _head_tiling(L * B * Q)
    outputs_class, outputs_coord, outputs_embed = head_pallas(
        hs, init_reference, inter_references, params["head"],
        tile_m=tm, n_steps=n_steps, ncls=ncls)

    out = {
        "pred_logits": outputs_class[-1],
        "pred_boxes": outputs_coord[-1],
        "pred_embed": outputs_embed[-1],
        "clip_query": clip_query_ori,
        "clip_query_proj": clip_query,
        "aux_outputs": [
            {"pred_logits": a, "pred_boxes": b, "pred_embed": e,
             "clip_query": clip_query_ori}
            for a, b, e in zip(outputs_class[:-1], outputs_coord[:-1], outputs_embed[:-1])
        ],
    }
    return out


# -----------------------------------------------------------------------------
if __name__ == "__main__":
    key = jax.random.PRNGKey(0)
    k_par, k_f0, k_f1, k_txt, k_img, k_msk, k_hs, k_ir, k_inter = jax.random.split(key, 9)

    B = 2
    hidden_dim = 256
    clip_dim = 512
    max_len = 15
    num_dec_layers = 3
    Q = 64

    params = build_params(k_par, hidden_dim=hidden_dim, clip_dim=clip_dim,
                          cls_out_channels=1, backbone_channels=(4, 8))

    # TODO(synk): backbone (ResNet+pos-embed) is an external submodule; synthesize its
    # multi-scale NCHW feature maps here.
    features = [
        jax.random.normal(k_f0, (B, 4, 16, 16), jnp.float32),
        jax.random.normal(k_f1, (B, 8, 8, 8), jnp.float32),
    ]

    # TODO(synk): select_id sampling (torch.randperm over target labels) and the
    # clip_feat dict (torch.load) are data plumbing; synthesize text/img CLIP features.
    text_query = jax.random.normal(k_txt, (max_len, clip_dim), jnp.float32)
    img_query = jax.random.normal(k_img, (max_len, clip_dim), jnp.float32)
    prob = 0.5
    mix_mask = (jax.random.uniform(k_msk, (max_len,)) < prob).astype(jnp.float32)[:, None]

    # Synthesized deformable-transformer outputs (external module).
    hs = jax.random.normal(k_hs, (num_dec_layers, B, Q, hidden_dim), jnp.float32)
    init_reference = jax.nn.sigmoid(jax.random.normal(k_ir, (B, Q, 2), jnp.float32))
    inter_references = jax.nn.sigmoid(
        jax.random.normal(k_inter, (num_dec_layers, B, Q, 2), jnp.float32))

    out = ovdetr_forward_train(params, features, text_query, img_query, mix_mask,
                               hs, init_reference, inter_references)
    jax.block_until_ready(out)

    assert out["pred_logits"].shape == (B, Q, 1)
    assert out["pred_boxes"].shape == (B, Q, 4)
    assert out["pred_embed"].shape == (B, Q, clip_dim)
    assert out["clip_query"].shape == (max_len, clip_dim)
    assert len(out["aux_outputs"]) == num_dec_layers - 1

    print("KERNEL_OK")
</pallas_src>

<mosaic_0001>
module attributes {stable_mosaic.version = 11 : i64} {
  func.func @conv1x1_gn_kernel(%arg0: i32, %arg1: memref<1x4x256xf32, #tpu.memory_space<vmem>>, %arg2: memref<256x4xf32, #tpu.memory_space<vmem>>, %arg3: memref<256x1xf32, #tpu.memory_space<vmem>>, %arg4: memref<256x1xf32, #tpu.memory_space<vmem>>, %arg5: memref<256x1xf32, #tpu.memory_space<vmem>>, %arg6: memref<256x256xf32, #tpu.memory_space<vmem>>, %arg7: memref<1x256x256xf32, #tpu.memory_space<vmem>>) attributes {dimension_semantics = [#tpu.dimension_semantics<parallel>], iteration_bounds = array<i64: 2>, scalar_prefetch = 0 : i64, scratch_operands = 0 : i64, tpu.core_type = #tpu.core_type<tc>, window_params = [{transform_indices = @transform_0, window_bounds = array<i64: 1, 4, 256>}, {pipeline_mode = #tpu.pipeline_mode<synchronous>, transform_indices = @transform_1, window_bounds = array<i64: 256, 4>}, {pipeline_mode = #tpu.pipeline_mode<synchronous>, transform_indices = @transform_2, window_bounds = array<i64: 256, 1>}, {pipeline_mode = #tpu.pipeline_mode<synchronous>, transform_indices = @transform_3, window_bounds = array<i64: 256, 1>}, {pipeline_mode = #tpu.pipeline_mode<synchronous>, transform_indices = @transform_4, window_bounds = array<i64: 256, 1>}, {pipeline_mode = #tpu.pipeline_mode<synchronous>, transform_indices = @transform_5, window_bounds = array<i64: 256, 256>}, {transform_indices = @transform_6, window_bounds = array<i64: 1, 256, 256>}]} {
    %c0 = arith.constant 0 : index
    %c0_0 = arith.constant 0 : index
    %c0_1 = arith.constant 0 : index
    %0 = vector.load %arg1[%c0, %c0_0, %c0_1] : memref<1x4x256xf32, #tpu.memory_space<vmem>>, vector<1x4x256xf32>
    %1 = vector.shape_cast %0 : vector<1x4x256xf32> to vector<4x256xf32>
    %c0_2 = arith.constant 0 : index
    %c0_3 = arith.constant 0 : index
    %2 = vector.load %arg2[%c0_2, %c0_3] : memref<256x4xf32, #tpu.memory_space<vmem>>, vector<256x4xf32>
    %cst = arith.constant 0.000000e+00 : f32
    %3 = vector.broadcast %cst : f32 to vector<256x256xf32>
    %4 = vector.extract_strided_slice %2 {offsets = [0, 0], sizes = [256, 1], strides = [1, 1]} : vector<256x4xf32> to vector<256x1xf32>
    %5 = vector.extract_strided_slice %1 {offsets = [0, 0], sizes = [1, 256], strides = [1, 1]} : vector<4x256xf32> to vector<1x256xf32>
    %6 = vector.broadcast %4 : vector<256x1xf32> to vector<256x256xf32>
    %7 = vector.broadcast %5 : vector<1x256xf32> to vector<256x256xf32>
    %8 = arith.mulf %6, %7 : vector<256x256xf32>
    %9 = arith.addf %3, %8 : vector<256x256xf32>
    %10 = vector.extract_strided_slice %2 {offsets = [0, 1], sizes = [256, 1], strides = [1, 1]} : vector<256x4xf32> to vector<256x1xf32>
    %11 = vector.extract_strided_slice %1 {offsets = [1, 0], sizes = [1, 256], strides = [1, 1]} : vector<4x256xf32> to vector<1x256xf32>
    %12 = vector.broadcast %10 : vector<256x1xf32> to vector<256x256xf32>
    %13 = vector.broadcast %11 : vector<1x256xf32> to vector<256x256xf32>
    %14 = arith.mulf %12, %13 : vector<256x256xf32>
    %15 = arith.addf %9, %14 : vector<256x256xf32>
    %16 = vector.extract_strided_slice %2 {offsets = [0, 2], sizes = [256, 1], strides = [1, 1]} : vector<256x4xf32> to vector<256x1xf32>
    %17 = vector.extract_strided_slice %1 {offsets = [2, 0], sizes = [1, 256], strides = [1, 1]} : vector<4x256xf32> to vector<1x256xf32>
    %18 = vector.broadcast %16 : vector<256x1xf32> to vector<256x256xf32>
    %19 = vector.broadcast %17 : vector<1x256xf32> to vector<256x256xf32>
    %20 = arith.mulf %18, %19 : vector<256x256xf32>
    %21 = arith.addf %15, %20 : vector<256x256xf32>
    %22 = vector.extract_strided_slice %2 {offsets = [0, 3], sizes = [256, 1], strides = [1, 1]} : vector<256x4xf32> to vector<256x1xf32>
    %23 = vector.extract_strided_slice %1 {offsets = [3, 0], sizes = [1, 256], strides = [1, 1]} : vector<4x256xf32> to vector<1x256xf32>
    %24 = vector.broadcast %22 : vector<256x1xf32> to vector<256x256xf32>
    %25 = vector.broadcast %23 : vector<1x256xf32> to vector<256x256xf32>
    %26 = arith.mulf %24, %25 : vector<256x256xf32>
    %27 = arith.addf %21, %26 : vector<256x256xf32>
    %c0_4 = arith.constant 0 : index
    %c0_5 = arith.constant 0 : index
    %28 = vector.load %arg3[%c0_4, %c0_5] : memref<256x1xf32, #tpu.memory_space<vmem>>, vector<256x1xf32>
    %29 = vector.broadcast %28 : vector<256x1xf32> to vector<256x256xf32>
    %30 = arith.addf %27, %29 : vector<256x256xf32>
    %c0_6 = arith.constant 0 : index
    %c0_7 = arith.constant 0 : index
    %31 = vector.load %arg6[%c0_6, %c0_7] : memref<256x256xf32, #tpu.memory_space<vmem>>, vector<256x256xf32>
    %cst_8 = arith.constant dense<0.000000e+00> : vector<256xf32>
    %32 = vector.multi_reduction <add>, %30, %cst_8 [1] : vector<256x256xf32> to vector<256xf32>
    %33 = vector.shape_cast %32 : vector<256xf32> to vector<256x1xf32>
    %cst_9 = arith.constant dense<0.000000e+00> : vector<256x1xf32>
    %34 = tpu.matmul %31, %33, %cst_9 {dimension_numbers = #tpu.dot_dimension_numbers<[1], [0], [0], [1], [0, 0, 1, 1], [], []>} : vector<256x256xf32>, vector<256x1xf32>, vector<256x1xf32> -> vector<256x1xf32>
    %cst_10 = arith.constant 4.8828125E-4 : f32
    %35 = vector.broadcast %cst_10 : f32 to vector<256x1xf32>
    %36 = arith.mulf %34, %35 : vector<256x1xf32>
    %37 = vector.broadcast %36 : vector<256x1xf32> to vector<256x256xf32>
    %38 = arith.subf %30, %37 : vector<256x256xf32>
    %39 = arith.mulf %38, %38 : vector<256x256xf32>
    %cst_11 = arith.constant dense<0.000000e+00> : vector<256xf32>
    %40 = vector.multi_reduction <add>, %39, %cst_11 [1] : vector<256x256xf32> to vector<256xf32>
    %41 = vector.shape_cast %40 : vector<256xf32> to vector<256x1xf32>
    %cst_12 = arith.constant dense<0.000000e+00> : vector<256x1xf32>
    %42 = tpu.matmul %31, %41, %cst_12 {dimension_numbers = #tpu.dot_dimension_numbers<[1], [0], [0], [1], [0, 0, 1, 1], [], []>} : vector<256x256xf32>, vector<256x1xf32>, vector<256x1xf32> -> vector<256x1xf32>
    %cst_13 = arith.constant 4.8828125E-4 : f32
    %43 = vector.broadcast %cst_13 : f32 to vector<256x1xf32>
    %44 = arith.mulf %42, %43 : vector<256x1xf32>
    %cst_14 = arith.constant 9.99999974E-6 : f32
    %45 = vector.broadcast %cst_14 : f32 to vector<256x1xf32>
    %46 = arith.addf %44, %45 : vector<256x1xf32>
    %47 = math.rsqrt %46 : vector<256x1xf32>
    %48 = vector.broadcast %47 : vector<256x1xf32> to vector<256x256xf32>
    %49 = arith.mulf %38, %48 : vector<256x256xf32>
    %c0_15 = arith.constant 0 : index
    %c0_16 = arith.constant 0 : index
    %50 = vector.load %arg4[%c0_15, %c0_16] : memref<256x1xf32, #tpu.memory_space<vmem>>, vector<256x1xf32>
    %51 = vector.broadcast %50 : vector<256x1xf32> to vector<256x256xf32>
    %52 = arith.mulf %49, %51 : vector<256x256xf32>
    %c0_17 = arith.constant 0 : index
    %c0_18 = arith.constant 0 : index
    %53 = vector.load %arg5[%c0_17, %c0_18] : memref<256x1xf32, #tpu.memory_space<vmem>>, vector<256x1xf32>
    %54 = vector.broadcast %53 : vector<256x1xf32> to vector<256x256xf32>
    %55 = arith.addf %52, %54 : vector<256x256xf32>
    %c0_19 = arith.constant 0 : index
    %c0_20 = arith.constant 0 : index
    %c0_21 = arith.constant 0 : index
    %56 = vector.load %arg7[%c0_19, %c0_20, %c0_21] : memref<1x256x256xf32, #tpu.memory_space<vmem>>, vector<1x256x256xf32>
    %57 = vector.shape_cast %56 : vector<1x256x256xf32> to vector<256x256xf32>
    %58 = vector.shape_cast %55 : vector<256x256xf32> to vector<1x256x256xf32>
    tpu.vector_store %arg7[%c0_19, %c0_20, %c0_21], %58 {strides = array<i32>} : memref<1x256x256xf32, #tpu.memory_space<vmem>>, vector<1x256x256xf32>,
    return
  }
  func.func @transform_0(%arg0: i32) -> (i32, i32, i32) {
    %c0_i32 = arith.constant 0 : i32
    %c0_i32_0 = arith.constant 0 : i32
    %c0_i32_1 = arith.constant 0 : i32
    return %arg0, %c0_i32, %c0_i32_0 : i32, i32, i32
  }
  func.func @transform_1(%arg0: i32) -> (i32, i32) {
    %c0_i32 = arith.constant 0 : i32
    %c0_i32_0 = arith.constant 0 : i32
    %c0_i32_1 = arith.constant 0 : i32
    return %c0_i32, %c0_i32_0 : i32, i32
  }
  func.func @transform_2(%arg0: i32) -> (i32, i32) {
    %c0_i32 = arith.constant 0 : i32
    %c0_i32_0 = arith.constant 0 : i32
    %c0_i32_1 = arith.constant 0 : i32
    return %c0_i32, %c0_i32_0 : i32, i32
  }
  func.func @transform_3(%arg0: i32) -> (i32, i32) {
    %c0_i32 = arith.constant 0 : i32
    %c0_i32_0 = arith.constant 0 : i32
    %c0_i32_1 = arith.constant 0 : i32
    return %c0_i32, %c0_i32_0 : i32, i32
  }
  func.func @transform_4(%arg0: i32) -> (i32, i32) {
    %c0_i32 = arith.constant 0 : i32
    %c0_i32_0 = arith.constant 0 : i32
    %c0_i32_1 = arith.constant 0 : i32
    return %c0_i32, %c0_i32_0 : i32, i32
  }
  func.func @transform_5(%arg0: i32) -> (i32, i32) {
    %c0_i32 = arith.constant 0 : i32
    %c0_i32_0 = arith.constant 0 : i32
    %c0_i32_1 = arith.constant 0 : i32
    return %c0_i32, %c0_i32_0 : i32, i32
  }
  func.func @transform_6(%arg0: i32) -> (i32, i32, i32) {
    %c0_i32 = arith.constant 0 : i32
    %c0_i32_0 = arith.constant 0 : i32
    %c0_i32_1 = arith.constant 0 : i32
    return %arg0, %c0_i32, %c0_i32_0 : i32, i32, i32
  }
}

</mosaic_0001>

<llo_original>
// kernel: input_proj_pallas.1
$region0: #{input_proj_pallas.1}
  #allocation0 [shape = 'u32[]', space=smem, size = 0x4, offset = 0x4, fixed_abs, tag = 'smem constant byte address 0x4 - core index']
  #allocation1 [shape = 'u32[144,128]{1,0:T(1,128)}', space=vmem, size = 0x12000, scoped, tag = 'internal scratch']
  %s0 = inlined_call_operand.vmem [shape: f32[2,4,256], index: 0, kind: input, shape index: {}]
  %s1 = inlined_call_operand.vmem [shape: f32[256,4], index: 1, kind: input, shape index: {}]
  %s2 = inlined_call_operand.vmem [shape: f32[256,1], index: 2, kind: input, shape index: {}]
  %s3 = inlined_call_operand.vmem [shape: f32[256,1], index: 3, kind: input, shape index: {}]
  %s4 = inlined_call_operand.vmem [shape: f32[256,1], index: 4, kind: input, shape index: {}]
  %s5 = inlined_call_operand.vmem [shape: f32[256,256], index: 5, kind: input, shape index: {}]
  %s6 = inlined_call_operand.hbm [shape: f32[2,256,256], index: 6, kind: output, shape index: {}]
  %s7 = sld [smem:[#allocation0]]
  $region57: #{input_proj_pallas.1} parent=0
    _
  %s9 = ssub.s32 1, %s7
  %s10 = scalar_select 0, %s9, %s7
  $region1: #{input_proj_pallas.1} parent=0
    #allocation2 [shape = 'u8[524288]{0}', space=vmem, size = 0x80000, scoped, tag = 'output window, operand 0']
    #allocation3 [shape = 's32[2]{0}', space=sflag, size = 0x8, scoped, tag = 'scoped memory for input_proj_pallas.1']
    %11 = vsyncpa [#allocation3], 0
    %s12 = scalar_lea.sflag [#allocation3], 1
    %13 = vsyncpa %s12, 0
    loop: start=0, step=1, limit=4
    $region2: #{input_proj_pallas.1} parent=1 // loop_pre_header
      _
    $region3: #{input_proj_pallas.1} parent=1 // loop_header
      %s15 = sphi 0, %s19
      %p16 = scmp.ge.s32.totalorder %s15, 4
      %s25 = sphi 0, %s27
      %s28 = sphi 0, %s25
      %s29 = sphi 0, %s28
      %s45 = sphi 0, %s29
      %s49 = sphi 0, %s49
      %s51 = sphi 0, %s49
      %s52 = sphi 0, %s51
      %s66 = sphi 0, %s52
      %s70 = sphi 0, %s70
      %s72 = sphi 0, %s70
      %s73 = sphi 0, %s72
      %s87 = sphi 0, %s73
      %s91 = sphi 0, %s91
      %s93 = sphi 0, %s91
      %s94 = sphi 0, %s93
      %s108 = sphi 0, %s94
      %s112 = sphi 0, %s112
      %s114 = sphi 0, %s112
      %s115 = sphi 0, %s114
      %s129 = sphi 0, %s115
      %s133 = sphi 0, %s133
      %s135 = sphi 0, %s133
      %s136 = sphi 0, %s135
      %s150 = sphi 0, %s136
      %s156 = sphi 0, %s158
      %s159 = sphi 0, %s156
      %s160 = sphi 0, %s159
      %s176 = sphi 0, %s160
    $region4: #{input_proj_pallas.1} parent=1 // loop_header_branch
      %18 = sbr.rel (%p16) target = $region8
    $region5: #{input_proj_pallas.1} parent=1 // loop_body
      %s20 = ssub.s32 %s15, 1
      %s21 = ssub.s32 %s15, 2
      %s22 = sadd.s32 %s15, 1
      %s23 = ssub.s32 %s15, %s22
      %p24 = scmp.eq.s32.totalorder %s23, 0
      %s26 = sadd.s32 %s25, 1
      %s27 = scalar_select %p24, %s25, %s26
      %p30 = pneg %p24
      %p31 = scmp.eq.s32.totalorder %s15, 1
      %p32 = por %p30, %p31
      %p33 = scmp.ne.s32.totalorder %s25, %s28
      %p34 = scmp.eq.s32.totalorder %s15, 0
      %p35 = por %p33, %p34
      %p36 = scmp.ne.s32.totalorder %s25, %s28
      %p37 = scmp.eq.s32.totalorder %s20, 1
      %p38 = por %p36, %p37
      %p39 = scmp.ne.s32.totalorder %s28, %s29
      %p40 = scmp.eq.s32.totalorder %s20, 0
      %p41 = por %p39, %p40
      %p42 = scmp.ne.s32.totalorder %s28, %s29
      %p43 = scmp.eq.s32.totalorder %s21, 1
      %p44 = por %p42, %p43
      %p46 = scmp.ne.s32.totalorder %s29, %s45
      %p47 = scmp.eq.s32.totalorder %s21, 0
      %p48 = por %p46, %p47
      %s50 = sadd.s32 %s49, 1
      %p53 = scmp.eq.s32.totalorder %s15, 1
      %p54 = scmp.ne.s32.totalorder %s49, %s51
      %p55 = scmp.eq.s32.totalorder %s15, 0
      %p56 = por %p54, %p55
      %p57 = scmp.ne.s32.totalorder %s49, %s51
      %p58 = scmp.eq.s32.totalorder %s20, 1
      %p59 = por %p57, %p58
      %p60 = scmp.ne.s32.totalorder %s51, %s52
      %p61 = scmp.eq.s32.totalorder %s20, 0
      %p62 = por %p60, %p61
      %p63 = scmp.ne.s32.totalorder %s51, %s52
      %p64 = scmp.eq.s32.totalorder %s21, 1
      %p65 = por %p63, %p64
      %p67 = scmp.ne.s32.totalorder %s52, %s66
      %p68 = scmp.eq.s32.totalorder %s21, 0
      %p69 = por %p67, %p68
      %s71 = sadd.s32 %s70, 1
      %p74 = scmp.eq.s32.totalorder %s15, 1
      %p75 = scmp.ne.s32.totalorder %s70, %s72
      %p76 = scmp.eq.s32.totalorder %s15, 0
      %p77 = por %p75, %p76
      %p78 = scmp.ne.s32.totalorder %s70, %s72
      %p79 = scmp.eq.s32.totalorder %s20, 1
      %p80 = por %p78, %p79
      %p81 = scmp.ne.s32.totalorder %s72, %s73
      %p82 = scmp.eq.s32.totalorder %s20, 0
      %p83 = por %p81, %p82
      %p84 = scmp.ne.s32.totalorder %s72, %s73
      %p85 = scmp.eq.s32.totalorder %s21, 1
      %p86 = por %p84, %p85
      %p88 = scmp.ne.s32.totalorder %s73, %s87
      %p89 = scmp.eq.s32.totalorder %s21, 0
      %p90 = por %p88, %p89
      %s92 = sadd.s32 %s91, 1
      %p95 = scmp.eq.s32.totalorder %s15, 1
      %p96 = scmp.ne.s32.totalorder %s91, %s93
      %p97 = scmp.eq.s32.totalorder %s15, 0
      %p98 = por %p96, %p97
      %p99 = scmp.ne.s32.totalorder %s91, %s93
      %p100 = scmp.eq.s32.totalorder %s20, 1
      %p101 = por %p99, %p100
      %p102 = scmp.ne.s32.totalorder %s93, %s94
      %p103 = scmp.eq.s32.totalorder %s20, 0
      %p104 = por %p102, %p103
      %p105 = scmp.ne.s32.totalorder %s93, %s94
      %p106 = scmp.eq.s32.totalorder %s21, 1
      %p107 = por %p105, %p106
      %p109 = scmp.ne.s32.totalorder %s94, %s108
      %p110 = scmp.eq.s32.totalorder %s21, 0
      %p111 = por %p109, %p110
      %s113 = sadd.s32 %s112, 1
      %p116 = scmp.eq.s32.totalorder %s15, 1
      %p117 = scmp.ne.s32.totalorder %s112, %s114
      %p118 = scmp.eq.s32.totalorder %s15, 0
      %p119 = por %p117, %p118
      %p120 = scmp.ne.s32.totalorder %s112, %s114
      %p121 = scmp.eq.s32.totalorder %s20, 1
      %p122 = por %p120, %p121
      %p123 = scmp.ne.s32.totalorder %s114, %s115
      %p124 = scmp.eq.s32.totalorder %s20, 0
      %p125 = por %p123, %p124
      %p126 = scmp.ne.s32.totalorder %s114, %s115
      %p127 = scmp.eq.s32.totalorder %s21, 1
      %p128 = por %p126, %p127
      %p130 = scmp.ne.s32.totalorder %s115, %s129
      %p131 = scmp.eq.s32.totalorder %s21, 0
      %p132 = por %p130, %p131
      %s134 = sadd.s32 %s133, 1
      %p137 = scmp.eq.s32.totalorder %s15, 1
      %p138 = scmp.ne.s32.totalorder %s133, %s135
      %p139 = scmp.eq.s32.totalorder %s15, 0
      %p140 = por %p138, %p139
      %p141 = scmp.ne.s32.totalorder %s133, %s135
      %p142 = scmp.eq.s32.totalorder %s20, 1
      %p143 = por %p141, %p142
      %p144 = scmp.ne.s32.totalorder %s135, %s136
      %p145 = scmp.eq.s32.totalorder %s20, 0
      %p146 = por %p144, %p145
      %p147 = scmp.ne.s32.totalorder %s135, %s136
      %p148 = scmp.eq.s32.totalorder %s21, 1
      %p149 = por %p147, %p148
      %p151 = scmp.ne.s32.totalorder %s136, %s150
      %p152 = scmp.eq.s32.totalorder %s21, 0
      %p153 = por %p151, %p152
      %s154 = ssub.s32 %s15, %s22
      %p155 = scmp.eq.s32.totalorder %s154, 0
      %s157 = sadd.s32 %s156, 1
      %s158 = scalar_select %p155, %s156, %s157
      %p161 = pneg %p155
      %p162 = scmp.eq.s32.totalorder %s15, 1
      %p163 = por %p161, %p162
      %p164 = scmp.ne.s32.totalorder %s156, %s159
      %p165 = scmp.eq.s32.totalorder %s15, 0
      %p166 = por %p164, %p165
      %p167 = scmp.ne.s32.totalorder %s156, %s159
      %p168 = scmp.eq.s32.totalorder %s20, 1
      %p169 = por %p167, %p168
      %p170 = scmp.ne.s32.totalorder %s159, %s160
      %p171 = scmp.eq.s32.totalorder %s20, 0
      %p172 = por %p170, %p171
      %p173 = scmp.ne.s32.totalorder %s159, %s160
      %p174 = scmp.eq.s32.totalorder %s21, 1
      %p175 = por %p173, %p174
      %p177 = scmp.ne.s32.totalorder %s160, %s176
      %p178 = scmp.eq.s32.totalorder %s21, 0
      %p179 = por %p177, %p178
      %p180 = scmp.le.s32.totalorder 1, %s15
      %p181 = scmp.lt.s32.totalorder %s15, 3
      %p182 = pnand %p180, %p181
      %p183 = pneg %p182
      // Predicated region
      $region9: #{input_proj_pallas.1} parent=5 // pred_check
        _
      $region10: #{input_proj_pallas.1} parent=5 // pred_check_branch
        %185 = sbr.rel (%p182) target = $region12
      $region11: #{input_proj_pallas.1} parent=5 // pred_region
        %s186 = ssub.s32 %s15, 1
        // Predicated region
        $region13: #{input_proj_pallas.1} parent=11 // pred_check
          %p187 = pneg %p62
        $region14: #{input_proj_pallas.1} parent=11 // pred_check_branch
          %189 = sbr.rel (%p187) target = $region16
        $region15: #{input_proj_pallas.1} parent=11 // pred_region
          _
        $region16: #{input_proj_pallas.1} parent=11 // pred_fallthru
          _
        // Predicated region
        $region17: #{input_proj_pallas.1} parent=11 // pred_check
          %p190 = pneg %p83
        $region18: #{input_proj_pallas.1} parent=11 // pred_check_branch
          %192 = sbr.rel (%p190) target = $region20
        $region19: #{input_proj_pallas.1} parent=11 // pred_region
          _
        $region20: #{input_proj_pallas.1} parent=11 // pred_fallthru
          _
        // Predicated region
        $region21: #{input_proj_pallas.1} parent=11 // pred_check
          %p193 = pneg %p104
        $region22: #{input_proj_pallas.1} parent=11 // pred_check_branch
          %195 = sbr.rel (%p193) target = $region24
        $region23: #{input_proj_pallas.1} parent=11 // pred_region
          _
        $region24: #{input_proj_pallas.1} parent=11 // pred_fallthru
          _
        // Predicated region
        $region25: #{input_proj_pallas.1} parent=11 // pred_check
          %p196 = pneg %p125
        $region26: #{input_proj_pallas.1} parent=11 // pred_check_branch
          %198 = sbr.rel (%p196) target = $region28
        $region27: #{input_proj_pallas.1} parent=11 // pred_region
          _
        $region28: #{input_proj_pallas.1} parent=11 // pred_fallthru
          _
        // Predicated region
        $region29: #{input_proj_pallas.1} parent=11 // pred_check
          %p199 = pneg %p146
        $region30: #{input_proj_pallas.1} parent=11 // pred_check_branch
          %201 = sbr.rel (%p199) target = $region32
        $region31: #{input_proj_pallas.1} parent=11 // pred_region
          _
        $region32: #{input_proj_pallas.1} parent=11 // pred_fallthru
          _
      $region12: #{input_proj_pallas.1} parent=5 // pred_fallthru
        _
      %p202 = scmp.lt.s32.totalorder %s15, 2
      // Predicated region
      $region33: #{input_proj_pallas.1} parent=5 // pred_check
        %p203 = pneg %p202
      $region34: #{input_proj_pallas.1} parent=5 // pred_check_branch
        %205 = sbr.rel (%p203) target = $region36
      $region35: #{input_proj_pallas.1} parent=5 // pred_region
        // Predicated region
        $region37: #{input_proj_pallas.1} parent=35 // pred_check
          %p206 = pneg %p35
        $region38: #{input_proj_pallas.1} parent=35 // pred_check_branch
          %208 = sbr.rel (%p206) target = $region40
        $region39: #{input_proj_pallas.1} parent=35 // pred_region
          %p209 = scmp.lt.s32.totalorder %s15, 1
          %s210 = scalar_select %p209, %s15, 1
          %s211 = smul.addr %s210, 2
          %s212 = smul.addr %s211, 4
          %s213 = scalar_lea.vmem %s0, %s212
        $region40: #{input_proj_pallas.1} parent=35 // pred_fallthru
          _
      $region36: #{input_proj_pallas.1} parent=5 // pred_fallthru
        _
      %p214 = scmp.le.s32.totalorder 1, %s15
      %p215 = scmp.lt.s32.totalorder %s15, 3
      %p216 = pnand %p214, %p215
      %p217 = pneg %p216
      // Predicated region
      $region41: #{input_proj_pallas.1} parent=5 // pred_check
        _
      $region42: #{input_proj_pallas.1} parent=5 // pred_check_branch
        %219 = sbr.rel (%p216) target = $region44
      $region43: #{input_proj_pallas.1} parent=5 // pred_region
        %s220 = ssub.s32 %s15, 1
        %p221 = scmp.lt.s32.totalorder %s20, 1
        %s222 = scalar_select %p221, %s20, 1
        %s223 = smul.addr %s222, 2
        %s224 = smul.addr %s223, 4
        %s225 = scalar_lea.vmem %s0, %s224
        %p226 = pneg %p41
        %p227 = pneg %p38
        %p228 = pneg %p62
        %p229 = pneg %p59
        %p230 = pneg %p83
        %p231 = pneg %p80
        %p232 = pneg %p104
        %p233 = pneg %p101
        %p234 = pneg %p125
        %p235 = pneg %p122
        %p236 = pneg %p146
        %p237 = pneg %p143
        %p238 = pneg %p172
        %p239 = pneg %p169
        %s240 = sand.u32 %s159, 1
        %s241 = scalar_lea.sflag [#allocation3], %s240
        %s242 = sand.u32 %s159, 1
        %s243 = smul.addr %s242, 512
        %s244 = scalar_lea.vmem [#allocation2], %s243
        %p245 = scmp.lt.s32.totalorder %s20, 1
        %s246 = scalar_select %p245, %s20, 1
        %s247 = smul.addr %s246, 2
        %s248 = smul.addr %s247, 4
        %s249 = scalar_lea.vmem %s0, %s248
        %v250 = vld [vmem:[%s249] sm:$0xff]
        %v251 = vld [vmem:[%s1] sm:$0xff]
        %v252 = vld [vmem:[%s1 + $0x8] sm:$0xff]
        %v253 = vld [vmem:[%s1 + $0x10] sm:$0xff]
        %v254 = vld [vmem:[%s1 + $0x18] sm:$0xff]
        %v255 = vld [vmem:[%s1 + $0x20] sm:$0xff]
        %v256 = vld [vmem:[%s1 + $0x28] sm:$0xff]
        %v257 = vld [vmem:[%s1 + $0x30] sm:$0xff]
        %v258 = vld [vmem:[%s1 + $0x38] sm:$0xff]
        %v259 = vld [vmem:[%s1 + $0x40] sm:$0xff]
        %v260 = vld [vmem:[%s1 + $0x48] sm:$0xff]
        %v261 = vld [vmem:[%s1 + $0x50] sm:$0xff]
        %v262 = vld [vmem:[%s1 + $0x58] sm:$0xff]
        %v263 = vld [vmem:[%s1 + $0x60] sm:$0xff]
        %v264 = vld [vmem:[%s1 + $0x68] sm:$0xff]
        %v265 = vld [vmem:[%s1 + $0x70] sm:$0xff]
        %v266 = vld [vmem:[%s1 + $0x78] sm:$0xff]
        %v267 = vld [vmem:[%s1 + $0x80] sm:$0xff]
        %v268 = vld [vmem:[%s1 + $0x88] sm:$0xff]
        %v269 = vld [vmem:[%s1 + $0x90] sm:$0xff]
        %v270 = vld [vmem:[%s1 + $0x98] sm:$0xff]
        %v271 = vld [vmem:[%s1 + $0xa0] sm:$0xff]
        %v272 = vld [vmem:[%s1 + $0xa8] sm:$0xff]
        %v273 = vld [vmem:[%s1 + $0xb0] sm:$0xff]
        %v274 = vld [vmem:[%s1 + $0xb8] sm:$0xff]
        %v275 = vld [vmem:[%s1 + $0xc0] sm:$0xff]
        %v276 = vld [vmem:[%s1 + $0xc8] sm:$0xff]
        %v277 = vld [vmem:[%s1 + $0xd0] sm:$0xff]
        %v278 = vld [vmem:[%s1 + $0xd8] sm:$0xff]
        %v279 = vld [vmem:[%s1 + $0xe0] sm:$0xff]
        %v280 = vld [vmem:[%s1 + $0xe8] sm:$0xff]
        %v281 = vld [vmem:[%s1 + $0xf0] sm:$0xff]
        %v282 = vld [vmem:[%s1 + $0xf8] sm:$0xff]
        %284 = vset.pattern.permute.xlu0 0
        %285 = vperm.xlu0 %284, %v251
        %v286 = vpop.permute.xlu0 %285
        %289 = vset.pattern.permute.xlu0 0
        %290 = vperm.xlu0 %289, %v252
        %v291 = vpop.permute.xlu0 %290
        %294 = vset.pattern.permute.xlu0 0
        %295 = vperm.xlu0 %294, %v253
        %v296 = vpop.permute.xlu0 %295
        %299 = vset.pattern.permute.xlu0 0
        %300 = vperm.xlu0 %299, %v254
        %v301 = vpop.permute.xlu0 %300
        %304 = vset.pattern.permute.xlu0 0
        %305 = vperm.xlu0 %304, %v255
        %v306 = vpop.permute.xlu0 %305
        %309 = vset.pattern.permute.xlu0 0
        %310 = vperm.xlu0 %309, %v256
        %v311 = vpop.permute.xlu0 %310
        %314 = vset.pattern.permute.xlu0 0
        %315 = vperm.xlu0 %314, %v257
        %v316 = vpop.permute.xlu0 %315
        %319 = vset.pattern.permute.xlu0 0
        %320 = vperm.xlu0 %319, %v258
        %v321 = vpop.permute.xlu0 %320
        %324 = vset.pattern.permute.xlu0 0
        %325 = vperm.xlu0 %324, %v259
        %v326 = vpop.permute.xlu0 %325
        %329 = vset.pattern.permute.xlu0 0
        %330 = vperm.xlu0 %329, %v260
        %v331 = vpop.permute.xlu0 %330
        %334 = vset.pattern.permute.xlu0 0
        %335 = vperm.xlu0 %334, %v261
        %v336 = vpop.permute.xlu0 %335
        %339 = vset.pattern.permute.xlu0 0
        %340 = vperm.xlu0 %339, %v262
        %v341 = vpop.permute.xlu0 %340
        %344 = vset.pattern.permute.xlu0 0
        %345 = vperm.xlu0 %344, %v263
        %v346 = vpop.permute.xlu0 %345
        %349 = vset.pattern.permute.xlu0 0
        %350 = vperm.xlu0 %349, %v264
        %v351 = vpop.permute.xlu0 %350
        %354 = vset.pattern.permute.xlu0 0
        %355 = vperm.xlu0 %354, %v265
        %v356 = vpop.permute.xlu0 %355
        %359 = vset.pattern.permute.xlu0 0
        %360 = vperm.xlu0 %359, %v266
        %v361 = vpop.permute.xlu0 %360
        %364 = vset.pattern.permute.xlu0 0
        %365 = vperm.xlu0 %364, %v267
        %v366 = vpop.permute.xlu0 %365
        %369 = vset.pattern.permute.xlu0 0
        %370 = vperm.xlu0 %369, %v268
        %v371 = vpop.permute.xlu0 %370
        %374 = vset.pattern.permute.xlu0 0
        %375 = vperm.xlu0 %374, %v269
        %v376 = vpop.permute.xlu0 %375
        %379 = vset.pattern.permute.xlu0 0
        %380 = vperm.xlu0 %379, %v270
        %v381 = vpop.permute.xlu0 %380
        %384 = vset.pattern.permute.xlu0 0
        %385 = vperm.xlu0 %384, %v271
        %v386 = vpop.permute.xlu0 %385
        %389 = vset.pattern.permute.xlu0 0
        %390 = vperm.xlu0 %389, %v272
        %v391 = vpop.permute.xlu0 %390
        %394 = vset.pattern.permute.xlu0 0
        %395 = vperm.xlu0 %394, %v273
        %v396 = vpop.permute.xlu0 %395
        %399 = vset.pattern.permute.xlu0 0
        %400 = vperm.xlu0 %399, %v274
        %v401 = vpop.permute.xlu0 %400
        %404 = vset.pattern.permute.xlu0 0
        %405 = vperm.xlu0 %404, %v275
        %v406 = vpop.permute.xlu0 %405
        %409 = vset.pattern.permute.xlu0 0
        %410 = vperm.xlu0 %409, %v276
        %v411 = vpop.permute.xlu0 %410
        %414 = vset.pattern.permute.xlu0 0
        %415 = vperm.xlu0 %414, %v277
        %v416 = vpop.permute.xlu0 %415
        %419 = vset.pattern.permute.xlu0 0
        %420 = vperm.xlu0 %419, %v278
        %v421 = vpop.permute.xlu0 %420
        %424 = vset.pattern.permute.xlu0 0
        %425 = vperm.xlu0 %424, %v279
        %v426 = vpop.permute.xlu0 %425
        %429 = vset.pattern.permute.xlu0 0
        %430 = vperm.xlu0 %429, %v280
        %v431 = vpop.permute.xlu0 %430
        %434 = vset.pattern.permute.xlu0 0
        %435 = vperm.xlu0 %434, %v281
        %v436 = vpop.permute.xlu0 %435
        %439 = vset.pattern.permute.xlu0 0
        %440 = vperm.xlu0 %439, %v282
        %v441 = vpop.permute.xlu0 %440
        %v444 = vlaneseq
        %v445 = vshrl.u32 %v444, 7
        %v446 = vsub.s32 0, %v445
        %v447 = vrot.slane %v250, %v446
        %v448 = vlaneseq
        %v449 = vshrl.u32 %v448, 7
        %v450 = vsub.s32 4, %v449
        %v451 = vrot.slane %v250, %v450
        %v454 = vlaneseq
        %v455 = vshrl.u32 %v454, 7
        %v456 = vsub.s32 0, %v455
        %v457 = vrot.slane %v447, %v456
        %v458 = vlaneseq
        %v459 = vshrl.u32 %v458, 7
        %v460 = vsub.s32 0, %v459
        %v461 = vrot.slane %v451, %v460
        %v462 = vmul.f32 %v286, %v457
        %v463 = vmul.f32 %v286, %v461
        %v464 = vmul.f32 %v291, %v457
        %v465 = vmul.f32 %v291, %v461
        %v466 = vmul.f32 %v296, %v457
        %v467 = vmul.f32 %v296, %v461
        %v468 = vmul.f32 %v301, %v457
        %v469 = vmul.f32 %v301, %v461
        %v470 = vmul.f32 %v306, %v457
        %v471 = vmul.f32 %v306, %v461
        %v472 = vmul.f32 %v311, %v457
        %v473 = vmul.f32 %v311, %v461
        %v474 = vmul.f32 %v316, %v457
        %v475 = vmul.f32 %v316, %v461
        %v476 = vmul.f32 %v321, %v457
        %v477 = vmul.f32 %v321, %v461
        %v478 = vmul.f32 %v326, %v457
        %v479 = vmul.f32 %v326, %v461
        %v480 = vmul.f32 %v331, %v457
        %v481 = vmul.f32 %v331, %v461
        %v482 = vmul.f32 %v336, %v457
        %v483 = vmul.f32 %v336, %v461
        %v484 = vmul.f32 %v341, %v457
        %v485 = vmul.f32 %v341, %v461
        %v486 = vmul.f32 %v346, %v457
        %v487 = vmul.f32 %v346, %v461
        %v488 = vmul.f32 %v351, %v457
        %v489 = vmul.f32 %v351, %v461
        %v490 = vmul.f32 %v356, %v457
        %v491 = vmul.f32 %v356, %v461
        %v492 = vmul.f32 %v361, %v457
        %v493 = vmul.f32 %v361, %v461
        %v494 = vmul.f32 %v366, %v457
        %v495 = vmul.f32 %v366, %v461
        %v496 = vmul.f32 %v371, %v457
        %v497 = vmul.f32 %v371, %v461
        %v498 = vmul.f32 %v376, %v457
        %v499 = vmul.f32 %v376, %v461
        %v500 = vmul.f32 %v381, %v457
        %v501 = vmul.f32 %v381, %v461
        %v502 = vmul.f32 %v386, %v457
        %v503 = vmul.f32 %v386, %v461
        %v504 = vmul.f32 %v391, %v457
        %v505 = vmul.f32 %v391, %v461
        %v506 = vmul.f32 %v396, %v457
        %v507 = vmul.f32 %v396, %v461
        %v508 = vmul.f32 %v401, %v457
        %v509 = vmul.f32 %v401, %v461
        %v510 = vmul.f32 %v406, %v457
        %v511 = vmul.f32 %v406, %v461
        %v512 = vmul.f32 %v411, %v457
        %v513 = vmul.f32 %v411, %v461
        %v514 = vmul.f32 %v416, %v457
        %v515 = vmul.f32 %v416, %v461
        %v516 = vmul.f32 %v421, %v457
        %v517 = vmul.f32 %v421, %v461
        %v518 = vmul.f32 %v426, %v457
        %v519 = vmul.f32 %v426, %v461
        %v520 = vmul.f32 %v431, %v457
        %v521 = vmul.f32 %v431, %v461
        %v522 = vmul.f32 %v436, %v457
        %v523 = vmul.f32 %v436, %v461
        %v524 = vmul.f32 %v441, %v457
        %v525 = vmul.f32 %v441, %v461
        %v526 = vadd.f32 %v462, 0.0
        %v527 = vadd.f32 %v463, 0.0
        %v528 = vadd.f32 %v464, 0.0
        %v529 = vadd.f32 %v465, 0.0
        %v530 = vadd.f32 %v466, 0.0
        %v531 = vadd.f32 %v467, 0.0
        %v532 = vadd.f32 %v468, 0.0
        %v533 = vadd.f32 %v469, 0.0
        %v534 = vadd.f32 %v470, 0.0
        %v535 = vadd.f32 %v471, 0.0
        %v536 = vadd.f32 %v472, 0.0
        %v537 = vadd.f32 %v473, 0.0
        %v538 = vadd.f32 %v474, 0.0
        %v539 = vadd.f32 %v475, 0.0
        %v540 = vadd.f32 %v476, 0.0
        %v541 = vadd.f32 %v477, 0.0
        %v542 = vadd.f32 %v478, 0.0
        %v543 = vadd.f32 %v479, 0.0
        %v544 = vadd.f32 %v480, 0.0
        %v545 = vadd.f32 %v481, 0.0
        %v546 = vadd.f32 %v482, 0.0
        %v547 = vadd.f32 %v483, 0.0
        %v548 = vadd.f32 %v484, 0.0
        %v549 = vadd.f32 %v485, 0.0
        %v550 = vadd.f32 %v486, 0.0
        %v551 = vadd.f32 %v487, 0.0
        %v552 = vadd.f32 %v488, 0.0
        %v553 = vadd.f32 %v489, 0.0
        %v554 = vadd.f32 %v490, 0.0
        %v555 = vadd.f32 %v491, 0.0
        %v556 = vadd.f32 %v492, 0.0
        %v557 = vadd.f32 %v493, 0.0
        %v558 = vadd.f32 %v494, 0.0
        %v559 = vadd.f32 %v495, 0.0
        %v560 = vadd.f32 %v496, 0.0
        %v561 = vadd.f32 %v497, 0.0
        %v562 = vadd.f32 %v498, 0.0
        %v563 = vadd.f32 %v499, 0.0
        %v564 = vadd.f32 %v500, 0.0
        %v565 = vadd.f32 %v501, 0.0
        %v566 = vadd.f32 %v502, 0.0
        %v567 = vadd.f32 %v503, 0.0
        %v568 = vadd.f32 %v504, 0.0
        %v569 = vadd.f32 %v505, 0.0
        %v570 = vadd.f32 %v506, 0.0
        %v571 = vadd.f32 %v507, 0.0
        %v572 = vadd.f32 %v508, 0.0
        %v573 = vadd.f32 %v509, 0.0
        %v574 = vadd.f32 %v510, 0.0
        %v575 = vadd.f32 %v511, 0.0
        %v576 = vadd.f32 %v512, 0.0
        %v577 = vadd.f32 %v513, 0.0
        %v578 = vadd.f32 %v514, 0.0
        %v579 = vadd.f32 %v515, 0.0
        %v580 = vadd.f32 %v516, 0.0
        %v581 = vadd.f32 %v517, 0.0
        %v582 = vadd.f32 %v518, 0.0
        %v583 = vadd.f32 %v519, 0.0
        %v584 = vadd.f32 %v520, 0.0
        %v585 = vadd.f32 %v521, 0.0
        %v586 = vadd.f32 %v522, 0.0
        %v587 = vadd.f32 %v523, 0.0
        %v588 = vadd.f32 %v524, 0.0
        %v589 = vadd.f32 %v525, 0.0
        %590 = vset.pattern.permute.xlu0 1
        %591 = vperm.xlu0 %590, %v251
        %v592 = vpop.permute.xlu0 %591
        %594 = vset.pattern.permute.xlu0 1
        %595 = vperm.xlu0 %594, %v252
        %v596 = vpop.permute.xlu0 %595
        %598 = vset.pattern.permute.xlu0 1
        %599 = vperm.xlu0 %598, %v253
        %v600 = vpop.permute.xlu0 %599
        %602 = vset.pattern.permute.xlu0 1
        %603 = vperm.xlu0 %602, %v254
        %v604 = vpop.permute.xlu0 %603
        %606 = vset.pattern.permute.xlu0 1
        %607 = vperm.xlu0 %606, %v255
        %v608 = vpop.permute.xlu0 %607
        %610 = vset.pattern.permute.xlu0 1
        %611 = vperm.xlu0 %610, %v256
        %v612 = vpop.permute.xlu0 %611
        %614 = vset.pattern.permute.xlu0 1
        %615 = vperm.xlu0 %614, %v257
        %v616 = vpop.permute.xlu0 %615
        %618 = vset.pattern.permute.xlu0 1
        %619 = vperm.xlu0 %618, %v258
        %v620 = vpop.permute.xlu0 %619
        %622 = vset.pattern.permute.xlu0 1
        %623 = vperm.xlu0 %622, %v259
        %v624 = vpop.permute.xlu0 %623
        %626 = vset.pattern.permute.xlu0 1
        %627 = vperm.xlu0 %626, %v260
        %v628 = vpop.permute.xlu0 %627
        %630 = vset.pattern.permute.xlu0 1
        %631 = vperm.xlu0 %630, %v261
        %v632 = vpop.permute.xlu0 %631
        %634 = vset.pattern.permute.xlu0 1
        %635 = vperm.xlu0 %634, %v262
        %v636 = vpop.permute.xlu0 %635
        %638 = vset.pattern.permute.xlu0 1
        %639 = vperm.xlu0 %638, %v263
        %v640 = vpop.permute.xlu0 %639
        %642 = vset.pattern.permute.xlu0 1
        %643 = vperm.xlu0 %642, %v264
        %v644 = vpop.permute.xlu0 %643
        %646 = vset.pattern.permute.xlu0 1
        %647 = vperm.xlu0 %646, %v265
        %v648 = vpop.permute.xlu0 %647
        %650 = vset.pattern.permute.xlu0 1
        %651 = vperm.xlu0 %650, %v266
        %v652 = vpop.permute.xlu0 %651
        %654 = vset.pattern.permute.xlu0 1
        %655 = vperm.xlu0 %654, %v267
        %v656 = vpop.permute.xlu0 %655
        %658 = vset.pattern.permute.xlu0 1
        %659 = vperm.xlu0 %658, %v268
        %v660 = vpop.permute.xlu0 %659
        %662 = vset.pattern.permute.xlu0 1
        %663 = vperm.xlu0 %662, %v269
        %v664 = vpop.permute.xlu0 %663
        %666 = vset.pattern.permute.xlu0 1
        %667 = vperm.xlu0 %666, %v270
        %v668 = vpop.permute.xlu0 %667
        %670 = vset.pattern.permute.xlu0 1
        %671 = vperm.xlu0 %670, %v271
        %v672 = vpop.permute.xlu0 %671
        %674 = vset.pattern.permute.xlu0 1
        %675 = vperm.xlu0 %674, %v272
        %v676 = vpop.permute.xlu0 %675
        %678 = vset.pattern.permute.xlu0 1
        %679 = vperm.xlu0 %678, %v273
        %v680 = vpop.permute.xlu0 %679
        %682 = vset.pattern.permute.xlu0 1
        %683 = vperm.xlu0 %682, %v274
        %v684 = vpop.permute.xlu0 %683
        %686 = vset.pattern.permute.xlu0 1
        %687 = vperm.xlu0 %686, %v275
        %v688 = vpop.permute.xlu0 %687
        %690 = vset.pattern.permute.xlu0 1
        %691 = vperm.xlu0 %690, %v276
        %v692 = vpop.permute.xlu0 %691
        %694 = vset.pattern.permute.xlu0 1
        %695 = vperm.xlu0 %694, %v277
        %v696 = vpop.permute.xlu0 %695
        %698 = vset.pattern.permute.xlu0 1
        %699 = vperm.xlu0 %698, %v278
        %v700 = vpop.permute.xlu0 %699
        %702 = vset.pattern.permute.xlu0 1
        %703 = vperm.xlu0 %702, %v279
        %v704 = vpop.permute.xlu0 %703
        %706 = vset.pattern.permute.xlu0 1
        %707 = vperm.xlu0 %706, %v280
        %v708 = vpop.permute.xlu0 %707
        %710 = vset.pattern.permute.xlu0 1
        %711 = vperm.xlu0 %710, %v281
        %v712 = vpop.permute.xlu0 %711
        %714 = vset.pattern.permute.xlu0 1
        %715 = vperm.xlu0 %714, %v282
        %v716 = vpop.permute.xlu0 %715
        %v718 = vlaneseq
        %v719 = vshrl.u32 %v718, 7
        %v720 = vsub.s32 1, %v719
        %v721 = vrot.slane %v250, %v720
        %v722 = vlaneseq
        %v723 = vshrl.u32 %v722, 7
        %v724 = vsub.s32 5, %v723
        %v725 = vrot.slane %v250, %v724
        %v728 = vlaneseq
        %v729 = vshrl.u32 %v728, 7
        %v730 = vsub.s32 1, %v729
        %v731 = vrot.slane %v721, %v730
        %v732 = vlaneseq
        %v733 = vshrl.u32 %v732, 7
        %v734 = vsub.s32 1, %v733
        %v735 = vrot.slane %v725, %v734
        %v736 = vmul.f32 %v592, %v731
        %v737 = vmul.f32 %v592, %v735
        %v738 = vmul.f32 %v596, %v731
        %v739 = vmul.f32 %v596, %v735
        %v740 = vmul.f32 %v600, %v731
        %v741 = vmul.f32 %v600, %v735
        %v742 = vmul.f32 %v604, %v731
        %v743 = vmul.f32 %v604, %v735
        %v744 = vmul.f32 %v608, %v731
        %v745 = vmul.f32 %v608, %v735
        %v746 = vmul.f32 %v612, %v731
        %v747 = vmul.f32 %v612, %v735
        %v748 = vmul.f32 %v616, %v731
        %v749 = vmul.f32 %v616, %v735
        %v750 = vmul.f32 %v620, %v731
        %v751 = vmul.f32 %v620, %v735
        %v752 = vmul.f32 %v624, %v731
        %v753 = vmul.f32 %v624, %v735
        %v754 = vmul.f32 %v628, %v731
        %v755 = vmul.f32 %v628, %v735
        %v756 = vmul.f32 %v632, %v731
        %v757 = vmul.f32 %v632, %v735
        %v758 = vmul.f32 %v636, %v731
        %v759 = vmul.f32 %v636, %v735
        %v760 = vmul.f32 %v640, %v731
        %v761 = vmul.f32 %v640, %v735
        %v762 = vmul.f32 %v644, %v731
        %v763 = vmul.f32 %v644, %v735
        %v764 = vmul.f32 %v648, %v731
        %v765 = vmul.f32 %v648, %v735
        %v766 = vmul.f32 %v652, %v731
        %v767 = vmul.f32 %v652, %v735
        %v768 = vmul.f32 %v656, %v731
        %v769 = vmul.f32 %v656, %v735
        %v770 = vmul.f32 %v660, %v731
        %v771 = vmul.f32 %v660, %v735
        %v772 = vmul.f32 %v664, %v731
        %v773 = vmul.f32 %v664, %v735
        %v774 = vmul.f32 %v668, %v731
        %v775 = vmul.f32 %v668, %v735
        %v776 = vmul.f32 %v672, %v731
        %v777 = vmul.f32 %v672, %v735
        %v778 = vmul.f32 %v676, %v731
        %v779 = vmul.f32 %v676, %v735
        %v780 = vmul.f32 %v680, %v731
        %v781 = vmul.f32 %v680, %v735
        %v782 = vmul.f32 %v684, %v731
        %v783 = vmul.f32 %v684, %v735
        %v784 = vmul.f32 %v688, %v731
        %v785 = vmul.f32 %v688, %v735
        %v786 = vmul.f32 %v692, %v731
        %v787 = vmul.f32 %v692, %v735
        %v788 = vmul.f32 %v696, %v731
        %v789 = vmul.f32 %v696, %v735
        %v790 = vmul.f32 %v700, %v731
        %v791 = vmul.f32 %v700, %v735
        %v792 = vmul.f32 %v704, %v731
        %v793 = vmul.f32 %v704, %v735
        %v794 = vmul.f32 %v708, %v731
        %v795 = vmul.f32 %v708, %v735
        %v796 = vmul.f32 %v712, %v731
        %v797 = vmul.f32 %v712, %v735
        %v798 = vmul.f32 %v716, %v731
        %v799 = vmul.f32 %v716, %v735
        %v800 = vadd.f32 %v526, %v736
        %v801 = vadd.f32 %v527, %v737
        %v802 = vadd.f32 %v528, %v738
        %v803 = vadd.f32 %v529, %v739
        %v804 = vadd.f32 %v530, %v740
        %v805 = vadd.f32 %v531, %v741
        %v806 = vadd.f32 %v532, %v742
        %v807 = vadd.f32 %v533, %v743
        %v808 = vadd.f32 %v534, %v744
        %v809 = vadd.f32 %v535, %v745
        %v810 = vadd.f32 %v536, %v746
        %v811 = vadd.f32 %v537, %v747
        %v812 = vadd.f32 %v538, %v748
        %v813 = vadd.f32 %v539, %v749
        %v814 = vadd.f32 %v540, %v750
        %v815 = vadd.f32 %v541, %v751
        %v816 = vadd.f32 %v542, %v752
        %v817 = vadd.f32 %v543, %v753
        %v818 = vadd.f32 %v544, %v754
        %v819 = vadd.f32 %v545, %v755
        %v820 = vadd.f32 %v546, %v756
        %v821 = vadd.f32 %v547, %v757
        %v822 = vadd.f32 %v548, %v758
        %v823 = vadd.f32 %v549, %v759
        %v824 = vadd.f32 %v550, %v760
        %v825 = vadd.f32 %v551, %v761
        %v826 = vadd.f32 %v552, %v762
        %v827 = vadd.f32 %v553, %v763
        %v828 = vadd.f32 %v554, %v764
        %v829 = vadd.f32 %v555, %v765
        %v830 = vadd.f32 %v556, %v766
        %v831 = vadd.f32 %v557, %v767
        %v832 = vadd.f32 %v558, %v768
        %v833 = vadd.f32 %v559, %v769
        %v834 = vadd.f32 %v560, %v770
        %v835 = vadd.f32 %v561, %v771
        %v836 = vadd.f32 %v562, %v772
        %v837 = vadd.f32 %v563, %v773
        %v838 = vadd.f32 %v564, %v774
        %v839 = vadd.f32 %v565, %v775
        %v840 = vadd.f32 %v566, %v776
        %v841 = vadd.f32 %v567, %v777
        %v842 = vadd.f32 %v568, %v778
        %v843 = vadd.f32 %v569, %v779
        %v844 = vadd.f32 %v570, %v780
        %v845 = vadd.f32 %v571, %v781
        %v846 = vadd.f32 %v572, %v782
        %v847 = vadd.f32 %v573, %v783
        %v848 = vadd.f32 %v574, %v784
        %v849 = vadd.f32 %v575, %v785
        %v850 = vadd.f32 %v576, %v786
        %v851 = vadd.f32 %v577, %v787
        %v852 = vadd.f32 %v578, %v788
        %v853 = vadd.f32 %v579, %v789
        %v854 = vadd.f32 %v580, %v790
        %v855 = vadd.f32 %v581, %v791
        %v856 = vadd.f32 %v582, %v792
        %v857 = vadd.f32 %v583, %v793
        %v858 = vadd.f32 %v584, %v794
        %v859 = vadd.f32 %v585, %v795
        %v860 = vadd.f32 %v586, %v796
        %v861 = vadd.f32 %v587, %v797
        %v862 = vadd.f32 %v588, %v798
        %v863 = vadd.f32 %v589, %v799
        %864 = vset.pattern.permute.xlu0 2
        %865 = vperm.xlu0 %864, %v251
        %v866 = vpop.permute.xlu0 %865
        %868 = vset.pattern.permute.xlu0 2
        %869 = vperm.xlu0 %868, %v252
        %v870 = vpop.permute.xlu0 %869
        %872 = vset.pattern.permute.xlu0 2
        %873 = vperm.xlu0 %872, %v253
        %v874 = vpop.permute.xlu0 %873
        %876 = vset.pattern.permute.xlu0 2
        %877 = vperm.xlu0 %876, %v254
        %v878 = vpop.permute.xlu0 %877
        %880 = vset.pattern.permute.xlu0 2
        %881 = vperm.xlu0 %880, %v255
        %v882 = vpop.permute.xlu0 %881
        %884 = vset.pattern.permute.xlu0 2
        %885 = vperm.xlu0 %884, %v256
        %v886 = vpop.permute.xlu0 %885
        %888 = vset.pattern.permute.xlu0 2
        %889 = vperm.xlu0 %888, %v257
        %v890 = vpop.permute.xlu0 %889
        %892 = vset.pattern.permute.xlu0 2
        %893 = vperm.xlu0 %892, %v258
        %v894 = vpop.permute.xlu0 %893
        %896 = vset.pattern.permute.xlu0 2
        %897 = vperm.xlu0 %896, %v259
        %v898 = vpop.permute.xlu0 %897
        %900 = vset.pattern.permute.xlu0 2
        %901 = vperm.xlu0 %900, %v260
        %v902 = vpop.permute.xlu0 %901
        %904 = vset.pattern.permute.xlu0 2
        %905 = vperm.xlu0 %904, %v261
        %v906 = vpop.permute.xlu0 %905
        %908 = vset.pattern.permute.xlu0 2
        %909 = vperm.xlu0 %908, %v262
        %v910 = vpop.permute.xlu0 %909
        %912 = vset.pattern.permute.xlu0 2
        %913 = vperm.xlu0 %912, %v263
        %v914 = vpop.permute.xlu0 %913
        %916 = vset.pattern.permute.xlu0 2
        %917 = vperm.xlu0 %916, %v264
        %v918 = vpop.permute.xlu0 %917
        %920 = vset.pattern.permute.xlu0 2
        %921 = vperm.xlu0 %920, %v265
        %v922 = vpop.permute.xlu0 %921
        %924 = vset.pattern.permute.xlu0 2
        %925 = vperm.xlu0 %924, %v266
        %v926 = vpop.permute.xlu0 %925
        %928 = vset.pattern.permute.xlu0 2
        %929 = vperm.xlu0 %928, %v267
        %v930 = vpop.permute.xlu0 %929
        %932 = vset.pattern.permute.xlu0 2
        %933 = vperm.xlu0 %932, %v268
        %v934 = vpop.permute.xlu0 %933
        %936 = vset.pattern.permute.xlu0 2
        %937 = vperm.xlu0 %936, %v269
        %v938 = vpop.permute.xlu0 %937
        %940 = vset.pattern.permute.xlu0 2
        %941 = vperm.xlu0 %940, %v270
        %v942 = vpop.permute.xlu0 %941
        %944 = vset.pattern.permute.xlu0 2
        %945 = vperm.xlu0 %944, %v271
        %v946 = vpop.permute.xlu0 %945
        %948 = vset.pattern.permute.xlu0 2
        %949 = vperm.xlu0 %948, %v272
        %v950 = vpop.permute.xlu0 %949
        %952 = vset.pattern.permute.xlu0 2
        %953 = vperm.xlu0 %952, %v273
        %v954 = vpop.permute.xlu0 %953
        %956 = vset.pattern.permute.xlu0 2
        %957 = vperm.xlu0 %956, %v274
        %v958 = vpop.permute.xlu0 %957
        %960 = vset.pattern.permute.xlu0 2
        %961 = vperm.xlu0 %960, %v275
        %v962 = vpop.permute.xlu0 %961
        %964 = vset.pattern.permute.xlu0 2
        %965 = vperm.xlu0 %964, %v276
        %v966 = vpop.permute.xlu0 %965
        %968 = vset.pattern.permute.xlu0 2
        %969 = vperm.xlu0 %968, %v277
        %v970 = vpop.permute.xlu0 %969
        %972 = vset.pattern.permute.xlu0 2
        %973 = vperm.xlu0 %972, %v278
        %v974 = vpop.permute.xlu0 %973
        %976 = vset.pattern.permute.xlu0 2
        %977 = vperm.xlu0 %976, %v279
        %v978 = vpop.permute.xlu0 %977
        %980 = vset.pattern.permute.xlu0 2
        %981 = vperm.xlu0 %980, %v280
        %v982 = vpop.permute.xlu0 %981
        %984 = vset.pattern.permute.xlu0 2
        %985 = vperm.xlu0 %984, %v281
        %v986 = vpop.permute.xlu0 %985
        %988 = vset.pattern.permute.xlu0 2
        %989 = vperm.xlu0 %988, %v282
        %v990 = vpop.permute.xlu0 %989
        %v992 = vlaneseq
        %v993 = vshrl.u32 %v992, 7
        %v994 = vsub.s32 2, %v993
        %v995 = vrot.slane %v250, %v994
        %v996 = vlaneseq
        %v997 = vshrl.u32 %v996, 7
        %v998 = vsub.s32 6, %v997
        %v999 = vrot.slane %v250, %v998
        %v1002 = vlaneseq
        %v1003 = vshrl.u32 %v1002, 7
        %v1004 = vsub.s32 2, %v1003
        %v1005 = vrot.slane %v995, %v1004
        %v1006 = vlaneseq
        %v1007 = vshrl.u32 %v1006, 7
        %v1008 = vsub.s32 2, %v1007
        %v1009 = vrot.slane %v999, %v1008
        %v1010 = vmul.f32 %v866, %v1005
        %v1011 = vmul.f32 %v866, %v1009
        %v1012 = vmul.f32 %v870, %v1005
        %v1013 = vmul.f32 %v870, %v1009
        %v1014 = vmul.f32 %v874, %v1005
        %v1015 = vmul.f32 %v874, %v1009
        %v1016 = vmul.f32 %v878, %v1005
        %v1017 = vmul.f32 %v878, %v1009
        %v1018 = vmul.f32 %v882, %v1005
        %v1019 = vmul.f32 %v882, %v1009
        %v1020 = vmul.f32 %v886, %v1005
        %v1021 = vmul.f32 %v886, %v1009
        %v1022 = vmul.f32 %v890, %v1005
        %v1023 = vmul.f32 %v890, %v1009
        %v1024 = vmul.f32 %v894, %v1005
        %v1025 = vmul.f32 %v894, %v1009
        %v1026 = vmul.f32 %v898, %v1005
        %v1027 = vmul.f32 %v898, %v1009
        %v1028 = vmul.f32 %v902, %v1005
        %v1029 = vmul.f32 %v902, %v1009
        %v1030 = vmul.f32 %v906, %v1005
        %v1031 = vmul.f32 %v906, %v1009
        %v1032 = vmul.f32 %v910, %v1005
        %v1033 = vmul.f32 %v910, %v1009
        %v1034 = vmul.f32 %v914, %v1005
        %v1035 = vmul.f32 %v914, %v1009
        %v1036 = vmul.f32 %v918, %v1005
        %v1037 = vmul.f32 %v918, %v1009
        %v1038 = vmul.f32 %v922, %v1005
        %v1039 = vmul.f32 %v922, %v1009
        %v1040 = vmul.f32 %v926, %v1005
        %v1041 = vmul.f32 %v926, %v1009
        %v1042 = vmul.f32 %v930, %v1005
        %v1043 = vmul.f32 %v930, %v1009
        %v1044 = vmul.f32 %v934, %v1005
        %v1045 = vmul.f32 %v934, %v1009
        %v1046 = vmul.f32 %v938, %v1005
        %v1047 = vmul.f32 %v938, %v1009
        %v1048 = vmul.f32 %v942, %v1005
        %v1049 = vmul.f32 %v942, %v1009
        %v1050 = vmul.f32 %v946, %v1005
        %v1051 = vmul.f32 %v946, %v1009
        %v1052 = vmul.f32 %v950, %v1005
        %v1053 = vmul.f32 %v950, %v1009
        %v1054 = vmul.f32 %v954, %v1005
        %v1055 = vmul.f32 %v954, %v1009
        %v1056 = vmul.f32 %v958, %v1005
        %v1057 = vmul.f32 %v958, %v1009
        %v1058 = vmul.f32 %v962, %v1005
        %v1059 = vmul.f32 %v962, %v1009
        %v1060 = vmul.f32 %v966, %v1005
        %v1061 = vmul.f32 %v966, %v1009
        %v1062 = vmul.f32 %v970, %v1005
        %v1063 = vmul.f32 %v970, %v1009
        %v1064 = vmul.f32 %v974, %v1005
        %v1065 = vmul.f32 %v974, %v1009
        %v1066 = vmul.f32 %v978, %v1005
        %v1067 = vmul.f32 %v978, %v1009
        %v1068 = vmul.f32 %v982, %v1005
        %v1069 = vmul.f32 %v982, %v1009
        %v1070 = vmul.f32 %v986, %v1005
        %v1071 = vmul.f32 %v986, %v1009
        %v1072 = vmul.f32 %v990, %v1005
        %v1073 = vmul.f32 %v990, %v1009
        %v1074 = vadd.f32 %v800, %v1010
        %v1075 = vadd.f32 %v801, %v1011
        %v1076 = vadd.f32 %v802, %v1012
        %v1077 = vadd.f32 %v803, %v1013
        %v1078 = vadd.f32 %v804, %v1014
        %v1079 = vadd.f32 %v805, %v1015
        %v1080 = vadd.f32 %v806, %v1016
        %v1081 = vadd.f32 %v807, %v1017
        %v1082 = vadd.f32 %v808, %v1018
        %v1083 = vadd.f32 %v809, %v1019
        %v1084 = vadd.f32 %v810, %v1020
        %v1085 = vadd.f32 %v811, %v1021
        %v1086 = vadd.f32 %v812, %v1022
        %v1087 = vadd.f32 %v813, %v1023
        %v1088 = vadd.f32 %v814, %v1024
        %v1089 = vadd.f32 %v815, %v1025
        %v1090 = vadd.f32 %v816, %v1026
        %v1091 = vadd.f32 %v817, %v1027
        %v1092 = vadd.f32 %v818, %v1028
        %v1093 = vadd.f32 %v819, %v1029
        %v1094 = vadd.f32 %v820, %v1030
        %v1095 = vadd.f32 %v821, %v1031
        %v1096 = vadd.f32 %v822, %v1032
        %v1097 = vadd.f32 %v823, %v1033
        %v1098 = vadd.f32 %v824, %v1034
        %v1099 = vadd.f32 %v825, %v1035
        %v1100 = vadd.f32 %v826, %v1036
        %v1101 = vadd.f32 %v827, %v1037
        %v1102 = vadd.f32 %v828, %v1038
        %v1103 = vadd.f32 %v829, %v1039
        %v1104 = vadd.f32 %v830, %v1040
        %v1105 = vadd.f32 %v831, %v1041
        %v1106 = vadd.f32 %v832, %v1042
        %v1107 = vadd.f32 %v833, %v1043
        %v1108 = vadd.f32 %v834, %v1044
        %v1109 = vadd.f32 %v835, %v1045
        %v1110 = vadd.f32 %v836, %v1046
        %v1111 = vadd.f32 %v837, %v1047
        %v1112 = vadd.f32 %v838, %v1048
        %v1113 = vadd.f32 %v839, %v1049
        %v1114 = vadd.f32 %v840, %v1050
        %v1115 = vadd.f32 %v841, %v1051
        %v1116 = vadd.f32 %v842, %v1052
        %v1117 = vadd.f32 %v843, %v1053
        %v1118 = vadd.f32 %v844, %v1054
        %v1119 = vadd.f32 %v845, %v1055
        %v1120 = vadd.f32 %v846, %v1056
        %v1121 = vadd.f32 %v847, %v1057
        %v1122 = vadd.f32 %v848, %v1058
        %v1123 = vadd.f32 %v849, %v1059
        %v1124 = vadd.f32 %v850, %v1060
        %v1125 = vadd.f32 %v851, %v1061
        %v1126 = vadd.f32 %v852, %v1062
        %v1127 = vadd.f32 %v853, %v1063
        %v1128 = vadd.f32 %v854, %v1064
        %v1129 = vadd.f32 %v855, %v1065
        %v1130 = vadd.f32 %v856, %v1066
        %v1131 = vadd.f32 %v857, %v1067
        %v1132 = vadd.f32 %v858, %v1068
        %v1133 = vadd.f32 %v859, %v1069
        %v1134 = vadd.f32 %v860, %v1070
        %v1135 = vadd.f32 %v861, %v1071
        %v1136 = vadd.f32 %v862, %v1072
        %v1137 = vadd.f32 %v863, %v1073
        %1138 = vset.pattern.permute.xlu0 3
        %1139 = vperm.xlu0 %1138, %v251
        %v1140 = vpop.permute.xlu0 %1139
        %1142 = vset.pattern.permute.xlu0 3
        %1143 = vperm.xlu0 %1142, %v252
        %v1144 = vpop.permute.xlu0 %1143
        %1146 = vset.pattern.permute.xlu0 3
        %1147 = vperm.xlu0 %1146, %v253
        %v1148 = vpop.permute.xlu0 %1147
        %1150 = vset.pattern.permute.xlu0 3
        %1151 = vperm.xlu0 %1150, %v254
        %v1152 = vpop.permute.xlu0 %1151
        %1154 = vset.pattern.permute.xlu0 3
        %1155 = vperm.xlu0 %1154, %v255
        %v1156 = vpop.permute.xlu0 %1155
        %1158 = vset.pattern.permute.xlu0 3
        %1159 = vperm.xlu0 %1158, %v256
        %v1160 = vpop.permute.xlu0 %1159
        %1162 = vset.pattern.permute.xlu0 3
        %1163 = vperm.xlu0 %1162, %v257
        %v1164 = vpop.permute.xlu0 %1163
        %1166 = vset.pattern.permute.xlu0 3
        %1167 = vperm.xlu0 %1166, %v258
        %v1168 = vpop.permute.xlu0 %1167
        %1170 = vset.pattern.permute.xlu0 3
        %1171 = vperm.xlu0 %1170, %v259
        %v1172 = vpop.permute.xlu0 %1171
        %1174 = vset.pattern.permute.xlu0 3
        %1175 = vperm.xlu0 %1174, %v260
        %v1176 = vpop.permute.xlu0 %1175
        %1178 = vset.pattern.permute.xlu0 3
        %1179 = vperm.xlu0 %1178, %v261
        %v1180 = vpop.permute.xlu0 %1179
        %1182 = vset.pattern.permute.xlu0 3
        %1183 = vperm.xlu0 %1182, %v262
        %v1184 = vpop.permute.xlu0 %1183
        %1186 = vset.pattern.permute.xlu0 3
        %1187 = vperm.xlu0 %1186, %v263
        %v1188 = vpop.permute.xlu0 %1187
        %1190 = vset.pattern.permute.xlu0 3
        %1191 = vperm.xlu0 %1190, %v264
        %v1192 = vpop.permute.xlu0 %1191
        %1194 = vset.pattern.permute.xlu0 3
        %1195 = vperm.xlu0 %1194, %v265
        %v1196 = vpop.permute.xlu0 %1195
        %1198 = vset.pattern.permute.xlu0 3
        %1199 = vperm.xlu0 %1198, %v266
        %v1200 = vpop.permute.xlu0 %1199
        %1202 = vset.pattern.permute.xlu0 3
        %1203 = vperm.xlu0 %1202, %v267
        %v1204 = vpop.permute.xlu0 %1203
        %1206 = vset.pattern.permute.xlu0 3
        %1207 = vperm.xlu0 %1206, %v268
        %v1208 = vpop.permute.xlu0 %1207
        %1210 = vset.pattern.permute.xlu0 3
        %1211 = vperm.xlu0 %1210, %v269
        %v1212 = vpop.permute.xlu0 %1211
        %1214 = vset.pattern.permute.xlu0 3
        %1215 = vperm.xlu0 %1214, %v270
        %v1216 = vpop.permute.xlu0 %1215
        %1218 = vset.pattern.permute.xlu0 3
        %1219 = vperm.xlu0 %1218, %v271
        %v1220 = vpop.permute.xlu0 %1219
        %1222 = vset.pattern.permute.xlu0 3
        %1223 = vperm.xlu0 %1222, %v272
        %v1224 = vpop.permute.xlu0 %1223
        %1226 = vset.pattern.permute.xlu0 3
        %1227 = vperm.xlu0 %1226, %v273
        %v1228 = vpop.permute.xlu0 %1227
        %1230 = vset.pattern.permute.xlu0 3
        %1231 = vperm.xlu0 %1230, %v274
        %v1232 = vpop.permute.xlu0 %1231
        %1234 = vset.pattern.permute.xlu0 3
        %1235 = vperm.xlu0 %1234, %v275
        %v1236 = vpop.permute.xlu0 %1235
        %1238 = vset.pattern.permute.xlu0 3
        %1239 = vperm.xlu0 %1238, %v276
        %v1240 = vpop.permute.xlu0 %1239
        %1242 = vset.pattern.permute.xlu0 3
        %1243 = vperm.xlu0 %1242, %v277
        %v1244 = vpop.permute.xlu0 %1243
        %1246 = vset.pattern.permute.xlu0 3
        %1247 = vperm.xlu0 %1246, %v278
        %v1248 = vpop.permute.xlu0 %1247
        %1250 = vset.pattern.permute.xlu0 3
        %1251 = vperm.xlu0 %1250, %v279
        %v1252 = vpop.permute.xlu0 %1251
        %1254 = vset.pattern.permute.xlu0 3
        %1255 = vperm.xlu0 %1254, %v280
        %v1256 = vpop.permute.xlu0 %1255
        %1258 = vset.pattern.permute.xlu0 3
        %1259 = vperm.xlu0 %1258, %v281
        %v1260 = vpop.permute.xlu0 %1259
        %1262 = vset.pattern.permute.xlu0 3
        %1263 = vperm.xlu0 %1262, %v282
        %v1264 = vpop.permute.xlu0 %1263
        %v1266 = vlaneseq
        %v1267 = vshrl.u32 %v1266, 7
        %v1268 = vsub.s32 3, %v1267
        %v1269 = vrot.slane %v250, %v1268
        %v1270 = vlaneseq
        %v1271 = vshrl.u32 %v1270, 7
        %v1272 = vsub.s32 7, %v1271
        %v1273 = vrot.slane %v250, %v1272
        %v1276 = vlaneseq
        %v1277 = vshrl.u32 %v1276, 7
        %v1278 = vsub.s32 3, %v1277
        %v1279 = vrot.slane %v1269, %v1278
        %v1280 = vlaneseq
        %v1281 = vshrl.u32 %v1280, 7
        %v1282 = vsub.s32 3, %v1281
        %v1283 = vrot.slane %v1273, %v1282
        %v1284 = vmul.f32 %v1140, %v1279
        %v1285 = vmul.f32 %v1140, %v1283
        %v1286 = vmul.f32 %v1144, %v1279
        %v1287 = vmul.f32 %v1144, %v1283
        %v1288 = vmul.f32 %v1148, %v1279
        %v1289 = vmul.f32 %v1148, %v1283
        %v1290 = vmul.f32 %v1152, %v1279
        %v1291 = vmul.f32 %v1152, %v1283
        %v1292 = vmul.f32 %v1156, %v1279
        %v1293 = vmul.f32 %v1156, %v1283
        %v1294 = vmul.f32 %v1160, %v1279
        %v1295 = vmul.f32 %v1160, %v1283
        %v1296 = vmul.f32 %v1164, %v1279
        %v1297 = vmul.f32 %v1164, %v1283
        %v1298 = vmul.f32 %v1168, %v1279
        %v1299 = vmul.f32 %v1168, %v1283
        %v1300 = vmul.f32 %v1172, %v1279
        %v1301 = vmul.f32 %v1172, %v1283
        %v1302 = vmul.f32 %v1176, %v1279
        %v1303 = vmul.f32 %v1176, %v1283
        %v1304 = vmul.f32 %v1180, %v1279
        %v1305 = vmul.f32 %v1180, %v1283
        %v1306 = vmul.f32 %v1184, %v1279
        %v1307 = vmul.f32 %v1184, %v1283
        %v1308 = vmul.f32 %v1188, %v1279
        %v1309 = vmul.f32 %v1188, %v1283
        %v1310 = vmul.f32 %v1192, %v1279
        %v1311 = vmul.f32 %v1192, %v1283
        %v1312 = vmul.f32 %v1196, %v1279
        %v1313 = vmul.f32 %v1196, %v1283
        %v1314 = vmul.f32 %v1200, %v1279
        %v1315 = vmul.f32 %v1200, %v1283
        %v1316 = vmul.f32 %v1204, %v1279
        %v1317 = vmul.f32 %v1204, %v1283
        %v1318 = vmul.f32 %v1208, %v1279
        %v1319 = vmul.f32 %v1208, %v1283
        %v1320 = vmul.f32 %v1212, %v1279
        %v1321 = vmul.f32 %v1212, %v1283
        %v1322 = vmul.f32 %v1216, %v1279
        %v1323 = vmul.f32 %v1216, %v1283
        %v1324 = vmul.f32 %v1220, %v1279
        %v1325 = vmul.f32 %v1220, %v1283
        %v1326 = vmul.f32 %v1224, %v1279
        %v1327 = vmul.f32 %v1224, %v1283
        %v1328 = vmul.f32 %v1228, %v1279
        %v1329 = vmul.f32 %v1228, %v1283
        %v1330 = vmul.f32 %v1232, %v1279
        %v1331 = vmul.f32 %v1232, %v1283
        %v1332 = vmul.f32 %v1236, %v1279
        %v1333 = vmul.f32 %v1236, %v1283
        %v1334 = vmul.f32 %v1240, %v1279
        %v1335 = vmul.f32 %v1240, %v1283
        %v1336 = vmul.f32 %v1244, %v1279
        %v1337 = vmul.f32 %v1244, %v1283
        %v1338 = vmul.f32 %v1248, %v1279
        %v1339 = vmul.f32 %v1248, %v1283
        %v1340 = vmul.f32 %v1252, %v1279
        %v1341 = vmul.f32 %v1252, %v1283
        %v1342 = vmul.f32 %v1256, %v1279
        %v1343 = vmul.f32 %v1256, %v1283
        %v1344 = vmul.f32 %v1260, %v1279
        %v1345 = vmul.f32 %v1260, %v1283
        %v1346 = vmul.f32 %v1264, %v1279
        %v1347 = vmul.f32 %v1264, %v1283
        %v1348 = vadd.f32 %v1074, %v1284
        %v1349 = vadd.f32 %v1075, %v1285
        %v1350 = vadd.f32 %v1076, %v1286
        %v1351 = vadd.f32 %v1077, %v1287
        %v1352 = vadd.f32 %v1078, %v1288
        %v1353 = vadd.f32 %v1079, %v1289
        %v1354 = vadd.f32 %v1080, %v1290
        %v1355 = vadd.f32 %v1081, %v1291
        %v1356 = vadd.f32 %v1082, %v1292
        %v1357 = vadd.f32 %v1083, %v1293
        %v1358 = vadd.f32 %v1084, %v1294
        %v1359 = vadd.f32 %v1085, %v1295
        %v1360 = vadd.f32 %v1086, %v1296
        %v1361 = vadd.f32 %v1087, %v1297
        %v1362 = vadd.f32 %v1088, %v1298
        %v1363 = vadd.f32 %v1089, %v1299
        %v1364 = vadd.f32 %v1090, %v1300
        %v1365 = vadd.f32 %v1091, %v1301
        %v1366 = vadd.f32 %v1092, %v1302
        %v1367 = vadd.f32 %v1093, %v1303
        %v1368 = vadd.f32 %v1094, %v1304
        %v1369 = vadd.f32 %v1095, %v1305
        %v1370 = vadd.f32 %v1096, %v1306
        %v1371 = vadd.f32 %v1097, %v1307
        %v1372 = vadd.f32 %v1098, %v1308
        %v1373 = vadd.f32 %v1099, %v1309
        %v1374 = vadd.f32 %v1100, %v1310
        %v1375 = vadd.f32 %v1101, %v1311
        %v1376 = vadd.f32 %v1102, %v1312
        %v1377 = vadd.f32 %v1103, %v1313
        %v1378 = vadd.f32 %v1104, %v1314
        %v1379 = vadd.f32 %v1105, %v1315
        %v1380 = vadd.f32 %v1106, %v1316
        %v1381 = vadd.f32 %v1107, %v1317
        %v1382 = vadd.f32 %v1108, %v1318
        %v1383 = vadd.f32 %v1109, %v1319
        %v1384 = vadd.f32 %v1110, %v1320
        %v1385 = vadd.f32 %v1111, %v1321
        %v1386 = vadd.f32 %v1112, %v1322
        %v1387 = vadd.f32 %v1113, %v1323
        %v1388 = vadd.f32 %v1114, %v1324
        %v1389 = vadd.f32 %v1115, %v1325
        %v1390 = vadd.f32 %v1116, %v1326
        %v1391 = vadd.f32 %v1117, %v1327
        %v1392 = vadd.f32 %v1118, %v1328
        %v1393 = vadd.f32 %v1119, %v1329
        %v1394 = vadd.f32 %v1120, %v1330
        %v1395 = vadd.f32 %v1121, %v1331
        %v1396 = vadd.f32 %v1122, %v1332
        %v1397 = vadd.f32 %v1123, %v1333
        %v1398 = vadd.f32 %v1124, %v1334
        %v1399 = vadd.f32 %v1125, %v1335
        %v1400 = vadd.f32 %v1126, %v1336
        %v1401 = vadd.f32 %v1127, %v1337
        %v1402 = vadd.f32 %v1128, %v1338
        %v1403 = vadd.f32 %v1129, %v1339
        %v1404 = vadd.f32 %v1130, %v1340
        %v1405 = vadd.f32 %v1131, %v1341
        %v1406 = vadd.f32 %v1132, %v1342
        %v1407 = vadd.f32 %v1133, %v1343
        %v1408 = vadd.f32 %v1134, %v1344
        %v1409 = vadd.f32 %v1135, %v1345
        %v1410 = vadd.f32 %v1136, %v1346
        %v1411 = vadd.f32 %v1137, %v1347
        %v1412 = vld [vmem:[%s2] sm:$0xff]
        %v1413 = vld [vmem:[%s2 + $0x8] sm:$0xff]
        %v1414 = vld [vmem:[%s2 + $0x10] sm:$0xff]
        %v1415 = vld [vmem:[%s2 + $0x18] sm:$0xff]
        %v1416 = vld [vmem:[%s2 + $0x20] sm:$0xff]
        %v1417 = vld [vmem:[%s2 + $0x28] sm:$0xff]
        %v1418 = vld [vmem:[%s2 + $0x30] sm:$0xff]
        %v1419 = vld [vmem:[%s2 + $0x38] sm:$0xff]
        %v1420 = vld [vmem:[%s2 + $0x40] sm:$0xff]
        %v1421 = vld [vmem:[%s2 + $0x48] sm:$0xff]
        %v1422 = vld [vmem:[%s2 + $0x50] sm:$0xff]
        %v1423 = vld [vmem:[%s2 + $0x58] sm:$0xff]
        %v1424 = vld [vmem:[%s2 + $0x60] sm:$0xff]
        %v1425 = vld [vmem:[%s2 + $0x68] sm:$0xff]
        %v1426 = vld [vmem:[%s2 + $0x70] sm:$0xff]
        %v1427 = vld [vmem:[%s2 + $0x78] sm:$0xff]
        %v1428 = vld [vmem:[%s2 + $0x80] sm:$0xff]
        %v1429 = vld [vmem:[%s2 + $0x88] sm:$0xff]
        %v1430 = vld [vmem:[%s2 + $0x90] sm:$0xff]
        %v1431 = vld [vmem:[%s2 + $0x98] sm:$0xff]
        %v1432 = vld [vmem:[%s2 + $0xa0] sm:$0xff]
        %v1433 = vld [vmem:[%s2 + $0xa8] sm:$0xff]
        %v1434 = vld [vmem:[%s2 + $0xb0] sm:$0xff]
        %v1435 = vld [vmem:[%s2 + $0xb8] sm:$0xff]
        %v1436 = vld [vmem:[%s2 + $0xc0] sm:$0xff]
        %v1437 = vld [vmem:[%s2 + $0xc8] sm:$0xff]
        %v1438 = vld [vmem:[%s2 + $0xd0] sm:$0xff]
        %v1439 = vld [vmem:[%s2 + $0xd8] sm:$0xff]
        %v1440 = vld [vmem:[%s2 + $0xe0] sm:$0xff]
        %v1441 = vld [vmem:[%s2 + $0xe8] sm:$0xff]
        %v1442 = vld [vmem:[%s2 + $0xf0] sm:$0xff]
        %v1443 = vld [vmem:[%s2 + $0xf8] sm:$0xff]
        %1445 = vset.pattern.permute.xlu0 0
        %1446 = vperm.xlu0 %1445, %v1412
        %v1447 = vpop.permute.xlu0 %1446
        %1450 = vset.pattern.permute.xlu0 0
        %1451 = vperm.xlu0 %1450, %v1413
        %v1452 = vpop.permute.xlu0 %1451
        %1455 = vset.pattern.permute.xlu0 0
        %1456 = vperm.xlu0 %1455, %v1414
        %v1457 = vpop.permute.xlu0 %1456
        %1460 = vset.pattern.permute.xlu0 0
        %1461 = vperm.xlu0 %1460, %v1415
        %v1462 = vpop.permute.xlu0 %1461
        %1465 = vset.pattern.permute.xlu0 0
        %1466 = vperm.xlu0 %1465, %v1416
        %v1467 = vpop.permute.xlu0 %1466
        %1470 = vset.pattern.permute.xlu0 0
        %1471 = vperm.xlu0 %1470, %v1417
        %v1472 = vpop.permute.xlu0 %1471
        %1475 = vset.pattern.permute.xlu0 0
        %1476 = vperm.xlu0 %1475, %v1418
        %v1477 = vpop.permute.xlu0 %1476
        %1480 = vset.pattern.permute.xlu0 0
        %1481 = vperm.xlu0 %1480, %v1419
        %v1482 = vpop.permute.xlu0 %1481
        %1485 = vset.pattern.permute.xlu0 0
        %1486 = vperm.xlu0 %1485, %v1420
        %v1487 = vpop.permute.xlu0 %1486
        %1490 = vset.pattern.permute.xlu0 0
        %1491 = vperm.xlu0 %1490, %v1421
        %v1492 = vpop.permute.xlu0 %1491
        %1495 = vset.pattern.permute.xlu0 0
        %1496 = vperm.xlu0 %1495, %v1422
        %v1497 = vpop.permute.xlu0 %1496
        %1500 = vset.pattern.permute.xlu0 0
        %1501 = vperm.xlu0 %1500, %v1423
        %v1502 = vpop.permute.xlu0 %1501
        %1505 = vset.pattern.permute.xlu0 0
        %1506 = vperm.xlu0 %1505, %v1424
        %v1507 = vpop.permute.xlu0 %1506
        %1510 = vset.pattern.permute.xlu0 0
        %1511 = vperm.xlu0 %1510, %v1425
        %v1512 = vpop.permute.xlu0 %1511
        %1515 = vset.pattern.permute.xlu0 0
        %1516 = vperm.xlu0 %1515, %v1426
        %v1517 = vpop.permute.xlu0 %1516
        %1520 = vset.pattern.permute.xlu0 0
        %1521 = vperm.xlu0 %1520, %v1427
        %v1522 = vpop.permute.xlu0 %1521
        %1525 = vset.pattern.permute.xlu0 0
        %1526 = vperm.xlu0 %1525, %v1428
        %v1527 = vpop.permute.xlu0 %1526
        %1530 = vset.pattern.permute.xlu0 0
        %1531 = vperm.xlu0 %1530, %v1429
        %v1532 = vpop.permute.xlu0 %1531
        %1535 = vset.pattern.permute.xlu0 0
        %1536 = vperm.xlu0 %1535, %v1430
        %v1537 = vpop.permute.xlu0 %1536
        %1540 = vset.pattern.permute.xlu0 0
        %1541 = vperm.xlu0 %1540, %v1431
        %v1542 = vpop.permute.xlu0 %1541
        %1545 = vset.pattern.permute.xlu0 0
        %1546 = vperm.xlu0 %1545, %v1432
        %v1547 = vpop.permute.xlu0 %1546
        %1550 = vset.pattern.permute.xlu0 0
        %1551 = vperm.xlu0 %1550, %v1433
        %v1552 = vpop.permute.xlu0 %1551
        %1555 = vset.pattern.permute.xlu0 0
        %1556 = vperm.xlu0 %1555, %v1434
        %v1557 = vpop.permute.xlu0 %1556
        %1560 = vset.pattern.permute.xlu0 0
        %1561 = vperm.xlu0 %1560, %v1435
        %v1562 = vpop.permute.xlu0 %1561
        %1565 = vset.pattern.permute.xlu0 0
        %1566 = vperm.xlu0 %1565, %v1436
        %v1567 = vpop.permute.xlu0 %1566
        %1570 = vset.pattern.permute.xlu0 0
        %1571 = vperm.xlu0 %1570, %v1437
        %v1572 = vpop.permute.xlu0 %1571
        %1575 = vset.pattern.permute.xlu0 0
        %1576 = vperm.xlu0 %1575, %v1438
        %v1577 = vpop.permute.xlu0 %1576
        %1580 = vset.pattern.permute.xlu0 0
        %1581 = vperm.xlu0 %1580, %v1439
        %v1582 = vpop.permute.xlu0 %1581
        %1585 = vset.pattern.permute.xlu0 0
        %1586 = vperm.xlu0 %1585, %v1440
        %v1587 = vpop.permute.xlu0 %1586
        %1590 = vset.pattern.permute.xlu0 0
        %1591 = vperm.xlu0 %1590, %v1441
        %v1592 = vpop.permute.xlu0 %1591
        %1595 = vset.pattern.permute.xlu0 0
        %1596 = vperm.xlu0 %1595, %v1442
        %v1597 = vpop.permute.xlu0 %1596
        %1600 = vset.pattern.permute.xlu0 0
        %1601 = vperm.xlu0 %1600, %v1443
        %v1602 = vpop.permute.xlu0 %1601
        %v1604 = vadd.f32 %v1348, %v1447
        %v1605 = vadd.f32 %v1349, %v1447
        %v1606 = vadd.f32 %v1350, %v1452
        %v1607 = vadd.f32 %v1351, %v1452
        %v1608 = vadd.f32 %v1352, %v1457
        %v1609 = vadd.f32 %v1353, %v1457
        %v1610 = vadd.f32 %v1354, %v1462
        %v1611 = vadd.f32 %v1355, %v1462
        %v1612 = vadd.f32 %v1356, %v1467
        %v1613 = vadd.f32 %v1357, %v1467
        %v1614 = vadd.f32 %v1358, %v1472
        %v1615 = vadd.f32 %v1359, %v1472
        %v1616 = vadd.f32 %v1360, %v1477
        %v1617 = vadd.f32 %v1361, %v1477
        %v1618 = vadd.f32 %v1362, %v1482
        %v1619 = vadd.f32 %v1363, %v1482
        %v1620 = vadd.f32 %v1364, %v1487
        %v1621 = vadd.f32 %v1365, %v1487
        %v1622 = vadd.f32 %v1366, %v1492
        %v1623 = vadd.f32 %v1367, %v1492
        %v1624 = vadd.f32 %v1368, %v1497
        %v1625 = vadd.f32 %v1369, %v1497
        %v1626 = vadd.f32 %v1370, %v1502
        %v1627 = vadd.f32 %v1371, %v1502
        %v1628 = vadd.f32 %v1372, %v1507
        %v1629 = vadd.f32 %v1373, %v1507
        %v1630 = vadd.f32 %v1374, %v1512
        %v1631 = vadd.f32 %v1375, %v1512
        %v1632 = vadd.f32 %v1376, %v1517
        %v1633 = vadd.f32 %v1377, %v1517
        %v1634 = vadd.f32 %v1378, %v1522
        %v1635 = vadd.f32 %v1379, %v1522
        %v1636 = vadd.f32 %v1380, %v1527
        %v1637 = vadd.f32 %v1381, %v1527
        %v1638 = vadd.f32 %v1382, %v1532
        %v1639 = vadd.f32 %v1383, %v1532
        %v1640 = vadd.f32 %v1384, %v1537
        %v1641 = vadd.f32 %v1385, %v1537
        %v1642 = vadd.f32 %v1386, %v1542
        %v1643 = vadd.f32 %v1387, %v1542
        %v1644 = vadd.f32 %v1388, %v1547
        %v1645 = vadd.f32 %v1389, %v1547
        %v1646 = vadd.f32 %v1390, %v1552
        %v1647 = vadd.f32 %v1391, %v1552
        %v1648 = vadd.f32 %v1392, %v1557
        %v1649 = vadd.f32 %v1393, %v1557
        %v1650 = vadd.f32 %v1394, %v1562
        %v1651 = vadd.f32 %v1395, %v1562
        %v1652 = vadd.f32 %v1396, %v1567
        %v1653 = vadd.f32 %v1397, %v1567
        %v1654 = vadd.f32 %v1398, %v1572
        %v1655 = vadd.f32 %v1399, %v1572
        %v1656 = vadd.f32 %v1400, %v1577
        %v1657 = vadd.f32 %v1401, %v1577
        %v1658 = vadd.f32 %v1402, %v1582
        %v1659 = vadd.f32 %v1403, %v1582
        %v1660 = vadd.f32 %v1404, %v1587
        %v1661 = vadd.f32 %v1405, %v1587
        %v1662 = vadd.f32 %v1406, %v1592
        %v1663 = vadd.f32 %v1407, %v1592
        %v1664 = vadd.f32 %v1408, %v1597
        %v1665 = vadd.f32 %v1409, %v1597
        %v1666 = vadd.f32 %v1410, %v1602
        %v1667 = vadd.f32 %v1411, %v1602
        %v1668 = vld [vmem:[%s5] sm:$0xff]
        %v1669 = vld [vmem:[%s5 + $0x8] sm:$0xff]
        %v1670 = vld [vmem:[%s5 + $0x10] sm:$0xff]
        %v1671 = vld [vmem:[%s5 + $0x18] sm:$0xff]
        %v1672 = vld [vmem:[%s5 + $0x20] sm:$0xff]
        %v1673 = vld [vmem:[%s5 + $0x28] sm:$0xff]
        %v1674 = vld [vmem:[%s5 + $0x30] sm:$0xff]
        %v1675 = vld [vmem:[%s5 + $0x38] sm:$0xff]
        %v1676 = vld [vmem:[%s5 + $0x40] sm:$0xff]
        %v1677 = vld [vmem:[%s5 + $0x48] sm:$0xff]
        %v1678 = vld [vmem:[%s5 + $0x50] sm:$0xff]
        %v1679 = vld [vmem:[%s5 + $0x58] sm:$0xff]
        %v1680 = vld [vmem:[%s5 + $0x60] sm:$0xff]
        %v1681 = vld [vmem:[%s5 + $0x68] sm:$0xff]
        %v1682 = vld [vmem:[%s5 + $0x70] sm:$0xff]
        %v1683 = vld [vmem:[%s5 + $0x78] sm:$0xff]
        %v1684 = vld [vmem:[%s5 + $0x80] sm:$0xff]
        %v1685 = vld [vmem:[%s5 + $0x88] sm:$0xff]
        %v1686 = vld [vmem:[%s5 + $0x90] sm:$0xff]
        %v1687 = vld [vmem:[%s5 + $0x98] sm:$0xff]
        %v1688 = vld [vmem:[%s5 + $0xa0] sm:$0xff]
        %v1689 = vld [vmem:[%s5 + $0xa8] sm:$0xff]
        %v1690 = vld [vmem:[%s5 + $0xb0] sm:$0xff]
        %v1691 = vld [vmem:[%s5 + $0xb8] sm:$0xff]
        %v1692 = vld [vmem:[%s5 + $0xc0] sm:$0xff]
        %v1693 = vld [vmem:[%s5 + $0xc8] sm:$0xff]
        %v1694 = vld [vmem:[%s5 + $0xd0] sm:$0xff]
        %v1695 = vld [vmem:[%s5 + $0xd8] sm:$0xff]
        %v1696 = vld [vmem:[%s5 + $0xe0] sm:$0xff]
        %v1697 = vld [vmem:[%s5 + $0xe8] sm:$0xff]
        %v1698 = vld [vmem:[%s5 + $0xf0] sm:$0xff]
        %v1699 = vld [vmem:[%s5 + $0xf8] sm:$0xff]
        %v1700 = vld [vmem:[%s5 + $0x100] sm:$0xff]
        %v1701 = vld [vmem:[%s5 + $0x108] sm:$0xff]
        %v1702 = vld [vmem:[%s5 + $0x110] sm:$0xff]
        %v1703 = vld [vmem:[%s5 + $0x118] sm:$0xff]
        %v1704 = vld [vmem:[%s5 + $0x120] sm:$0xff]
        %v1705 = vld [vmem:[%s5 + $0x128] sm:$0xff]
        %v1706 = vld [vmem:[%s5 + $0x130] sm:$0xff]
        %v1707 = vld [vmem:[%s5 + $0x138] sm:$0xff]
        %v1708 = vld [vmem:[%s5 + $0x140] sm:$0xff]
        %v1709 = vld [vmem:[%s5 + $0x148] sm:$0xff]
        %v1710 = vld [vmem:[%s5 + $0x150] sm:$0xff]
        %v1711 = vld [vmem:[%s5 + $0x158] sm:$0xff]
        %v1712 = vld [vmem:[%s5 + $0x160] sm:$0xff]
        %v1713 = vld [vmem:[%s5 + $0x168] sm:$0xff]
        %v1714 = vld [vmem:[%s5 + $0x170] sm:$0xff]
        %v1715 = vld [vmem:[%s5 + $0x178] sm:$0xff]
        %v1716 = vld [vmem:[%s5 + $0x180] sm:$0xff]
        %v1717 = vld [vmem:[%s5 + $0x188] sm:$0xff]
        %v1718 = vld [vmem:[%s5 + $0x190] sm:$0xff]
        %v1719 = vld [vmem:[%s5 + $0x198] sm:$0xff]
        %v1720 = vld [vmem:[%s5 + $0x1a0] sm:$0xff]
        %v1721 = vld [vmem:[%s5 + $0x1a8] sm:$0xff]
        %v1722 = vld [vmem:[%s5 + $0x1b0] sm:$0xff]
        %v1723 = vld [vmem:[%s5 + $0x1b8] sm:$0xff]
        %v1724 = vld [vmem:[%s5 + $0x1c0] sm:$0xff]
        %v1725 = vld [vmem:[%s5 + $0x1c8] sm:$0xff]
        %v1726 = vld [vmem:[%s5 + $0x1d0] sm:$0xff]
        %v1727 = vld [vmem:[%s5 + $0x1d8] sm:$0xff]
        %v1728 = vld [vmem:[%s5 + $0x1e0] sm:$0xff]
        %v1729 = vld [vmem:[%s5 + $0x1e8] sm:$0xff]
        %v1730 = vld [vmem:[%s5 + $0x1f0] sm:$0xff]
        %v1731 = vld [vmem:[%s5 + $0x1f8] sm:$0xff]
        %v1732 = vadd.f32 %v1604, %v1605
        %1733 = vadd.xlane.f32.xlu0 %v1732
        %v1734 = vpop.xlane.xlu0 %1733
        %v1735 = vadd.f32 %v1606, %v1607
        %1736 = vadd.xlane.f32.xlu0 %v1735
        %v1737 = vpop.xlane.xlu0 %1736
        %v1738 = vadd.f32 %v1608, %v1609
        %1739 = vadd.xlane.f32.xlu0 %v1738
        %v1740 = vpop.xlane.xlu0 %1739
        %v1741 = vadd.f32 %v1610, %v1611
        %1742 = vadd.xlane.f32.xlu0 %v1741
        %v1743 = vpop.xlane.xlu0 %1742
        %v1744 = vadd.f32 %v1612, %v1613
        %1745 = vadd.xlane.f32.xlu0 %v1744
        %v1746 = vpop.xlane.xlu0 %1745
        %v1747 = vadd.f32 %v1614, %v1615
        %1748 = vadd.xlane.f32.xlu0 %v1747
        %v1749 = vpop.xlane.xlu0 %1748
        %v1750 = vadd.f32 %v1616, %v1617
        %1751 = vadd.xlane.f32.xlu0 %v1750
        %v1752 = vpop.xlane.xlu0 %1751
        %v1753 = vadd.f32 %v1618, %v1619
        %1754 = vadd.xlane.f32.xlu0 %v1753
        %v1755 = vpop.xlane.xlu0 %1754
        %v1756 = vadd.f32 %v1620, %v1621
        %1757 = vadd.xlane.f32.xlu0 %v1756
        %v1758 = vpop.xlane.xlu0 %1757
        %v1759 = vadd.f32 %v1622, %v1623
        %1760 = vadd.xlane.f32.xlu0 %v1759
        %v1761 = vpop.xlane.xlu0 %1760
        %v1762 = vadd.f32 %v1624, %v1625
        %1763 = vadd.xlane.f32.xlu0 %v1762
        %v1764 = vpop.xlane.xlu0 %1763
        %v1765 = vadd.f32 %v1626, %v1627
        %1766 = vadd.xlane.f32.xlu0 %v1765
        %v1767 = vpop.xlane.xlu0 %1766
        %v1768 = vadd.f32 %v1628, %v1629
        %1769 = vadd.xlane.f32.xlu0 %v1768
        %v1770 = vpop.xlane.xlu0 %1769
        %v1771 = vadd.f32 %v1630, %v1631
        %1772 = vadd.xlane.f32.xlu0 %v1771
        %v1773 = vpop.xlane.xlu0 %1772
        %v1774 = vadd.f32 %v1632, %v1633
        %1775 = vadd.xlane.f32.xlu0 %v1774
        %v1776 = vpop.xlane.xlu0 %1775
        %v1777 = vadd.f32 %v1634, %v1635
        %1778 = vadd.xlane.f32.xlu0 %v1777
        %v1779 = vpop.xlane.xlu0 %1778
        %v1780 = vadd.f32 %v1636, %v1637
        %1781 = vadd.xlane.f32.xlu0 %v1780
        %v1782 = vpop.xlane.xlu0 %1781
        %v1783 = vadd.f32 %v1638, %v1639
        %1784 = vadd.xlane.f32.xlu0 %v1783
        %v1785 = vpop.xlane.xlu0 %1784
        %v1786 = vadd.f32 %v1640, %v1641
        %1787 = vadd.xlane.f32.xlu0 %v1786
        %v1788 = vpop.xlane.xlu0 %1787
        %v1789 = vadd.f32 %v1642, %v1643
        %1790 = vadd.xlane.f32.xlu0 %v1789
        %v1791 = vpop.xlane.xlu0 %1790
        %v1792 = vadd.f32 %v1644, %v1645
        %1793 = vadd.xlane.f32.xlu0 %v1792
        %v1794 = vpop.xlane.xlu0 %1793
        %v1795 = vadd.f32 %v1646, %v1647
        %1796 = vadd.xlane.f32.xlu0 %v1795
        %v1797 = vpop.xlane.xlu0 %1796
        %v1798 = vadd.f32 %v1648, %v1649
        %1799 = vadd.xlane.f32.xlu0 %v1798
        %v1800 = vpop.xlane.xlu0 %1799
        %v1801 = vadd.f32 %v1650, %v1651
        %1802 = vadd.xlane.f32.xlu0 %v1801
        %v1803 = vpop.xlane.xlu0 %1802
        %v1804 = vadd.f32 %v1652, %v1653
        %1805 = vadd.xlane.f32.xlu0 %v1804
        %v1806 = vpop.xlane.xlu0 %1805
        %v1807 = vadd.f32 %v1654, %v1655
        %1808 = vadd.xlane.f32.xlu0 %v1807
        %v1809 = vpop.xlane.xlu0 %1808
        %v1810 = vadd.f32 %v1656, %v1657
        %1811 = vadd.xlane.f32.xlu0 %v1810
        %v1812 = vpop.xlane.xlu0 %1811
        %v1813 = vadd.f32 %v1658, %v1659
        %1814 = vadd.xlane.f32.xlu0 %v1813
        %v1815 = vpop.xlane.xlu0 %1814
        %v1816 = vadd.f32 %v1660, %v1661
        %1817 = vadd.xlane.f32.xlu0 %v1816
        %v1818 = vpop.xlane.xlu0 %1817
        %v1819 = vadd.f32 %v1662, %v1663
        %1820 = vadd.xlane.f32.xlu0 %v1819
        %v1821 = vpop.xlane.xlu0 %1820
        %v1822 = vadd.f32 %v1664, %v1665
        %1823 = vadd.xlane.f32.xlu0 %v1822
        %v1824 = vpop.xlane.xlu0 %1823
        %v1825 = vadd.f32 %v1666, %v1667
        %1826 = vadd.xlane.f32.xlu0 %v1825
        %v1827 = vpop.xlane.xlu0 %1826
        %1828 = vmatprep.subr.mxu0 0.0
        %1829 = vmatpush1.msra.mxu0 %v1779
        %1830 = vmatprep.subr.mxu0 0.0
        %1831 = vmatpush1.msra.mxu0 %v1776
        %1832 = vmatprep.subr.mxu0 0.0
        %1833 = vmatpush1.msra.mxu0 %v1773
        %1834 = vmatprep.subr.mxu0 0.0
        %1835 = vmatpush1.msra.mxu0 %v1770
        %1836 = vmatprep.subr.mxu0 0.0
        %1837 = vmatpush1.msra.mxu0 %v1767
        %1838 = vmatprep.subr.mxu0 0.0
        %1839 = vmatpush1.msra.mxu0 %v1764
        %1840 = vmatprep.subr.mxu0 0.0
        %1841 = vmatpush1.msra.mxu0 %v1761
        %1842 = vmatprep.subr.mxu0 0.0
        %1843 = vmatpush1.msra.mxu0 %v1758
        %1844 = vmatprep.subr.mxu0 0.0
        %1845 = vmatpush1.msra.mxu0 %v1755
        %1846 = vmatprep.subr.mxu0 0.0
        %1847 = vmatpush1.msra.mxu0 %v1752
        %1848 = vmatprep.subr.mxu0 0.0
        %1849 = vmatpush1.msra.mxu0 %v1749
        %1850 = vmatprep.subr.mxu0 0.0
        %1851 = vmatpush1.msra.mxu0 %v1746
        %1852 = vmatprep.subr.mxu0 0.0
        %1853 = vmatpush1.msra.mxu0 %v1743
        %1854 = vmatprep.subr.mxu0 0.0
        %1855 = vmatpush1.msra.mxu0 %v1740
        %1856 = vmatprep.subr.mxu0 0.0
        %1857 = vmatpush1.msra.mxu0 %v1737
        %1858 = vmatprep.subr.mxu0 0.0
        %1859 = vmatpush1.msra.mxu0 %v1734
        %1860 = vmatprep.subr.mxu0 0.0
        %1861 = vmatpush2.msra.mxu0 %v1827
        %1862 = vmatprep.subr.mxu0 0.0
        %1863 = vmatpush2.msra.mxu0 %v1824
        %1864 = vmatprep.subr.mxu0 0.0
        %1865 = vmatpush2.msra.mxu0 %v1821
        %1866 = vmatprep.subr.mxu0 0.0
        %1867 = vmatpush2.msra.mxu0 %v1818
        %1868 = vmatprep.subr.mxu0 0.0
        %1869 = vmatpush2.msra.mxu0 %v1815
        %1870 = vmatprep.subr.mxu0 0.0
        %1871 = vmatpush2.msra.mxu0 %v1812
        %1872 = vmatprep.subr.mxu0 0.0
        %1873 = vmatpush2.msra.mxu0 %v1809
        %1874 = vmatprep.subr.mxu0 0.0
        %1875 = vmatpush2.msra.mxu0 %v1806
        %1876 = vmatprep.subr.mxu0 0.0
        %1877 = vmatpush2.msra.mxu0 %v1803
        %1878 = vmatprep.subr.mxu0 0.0
        %1879 = vmatpush2.msra.mxu0 %v1800
        %1880 = vmatprep.subr.mxu0 0.0
        %1881 = vmatpush2.msra.mxu0 %v1797
        %1882 = vmatprep.subr.mxu0 0.0
        %1883 = vmatpush2.msra.mxu0 %v1794
        %1884 = vmatprep.subr.mxu0 0.0
        %1885 = vmatpush2.msra.mxu0 %v1791
        %1886 = vmatprep.subr.mxu0 0.0
        %1887 = vmatpush2.msra.mxu0 %v1788
        %1888 = vmatprep.subr.mxu0 0.0
        %1889 = vmatpush2.msra.mxu0 %v1785
        %1890 = vmatprep.subr.mxu0 0.0
        %1891 = vmatpush2.msra.mxu0 %v1782
        %1892 = vmatprep.mubr.f32.mxu0 %v1669
        %1893 = vmatmul.mubr.f32.gmra.mxu0 %v1668
        %v1894 = vpop.f32.mrf.mxu0
        %v1895 = vadd.f32 0.0, %v1894
        %v1896 = vpop.f32.mrf.mxu0
        %1897 = vmatprep.mubr.f32.mxu0 %v1671
        %1898 = vmatmul.mubr.f32.gmra.mxu0 %v1670
        %v1899 = vpop.f32.mrf.mxu0
        %v1900 = vadd.f32 0.0, %v1899
        %v1901 = vpop.f32.mrf.mxu0
        %1902 = vmatprep.mubr.f32.mxu0 %v1673
        %1903 = vmatmul.mubr.f32.gmra.mxu0 %v1672
        %v1904 = vpop.f32.mrf.mxu0
        %v1905 = vadd.f32 0.0, %v1904
        %v1906 = vpop.f32.mrf.mxu0
        %1907 = vmatprep.mubr.f32.mxu0 %v1675
        %1908 = vmatmul.mubr.f32.gmra.mxu0 %v1674
        %v1909 = vpop.f32.mrf.mxu0
        %v1910 = vadd.f32 0.0, %v1909
        %v1911 = vpop.f32.mrf.mxu0
        %1912 = vmatprep.mubr.f32.mxu0 %v1677
        %1913 = vmatmul.mubr.f32.gmra.mxu0 %v1676
        %v1914 = vpop.f32.mrf.mxu0
        %v1915 = vadd.f32 0.0, %v1914
        %v1916 = vpop.f32.mrf.mxu0
        %1917 = vmatprep.mubr.f32.mxu0 %v1679
        %1918 = vmatmul.mubr.f32.gmra.mxu0 %v1678
        %v1919 = vpop.f32.mrf.mxu0
        %v1920 = vadd.f32 0.0, %v1919
        %v1921 = vpop.f32.mrf.mxu0
        %1922 = vmatprep.mubr.f32.mxu0 %v1681
        %1923 = vmatmul.mubr.f32.gmra.mxu0 %v1680
        %v1924 = vpop.f32.mrf.mxu0
        %v1925 = vadd.f32 0.0, %v1924
        %v1926 = vpop.f32.mrf.mxu0
        %1927 = vmatprep.mubr.f32.mxu0 %v1683
        %1928 = vmatmul.mubr.f32.gmra.mxu0 %v1682
        %v1929 = vpop.f32.mrf.mxu0
        %v1930 = vadd.f32 0.0, %v1929
        %v1931 = vpop.f32.mrf.mxu0
        %1932 = vmatprep.mubr.f32.mxu0 %v1685
        %1933 = vmatmul.mubr.f32.gmra.mxu0 %v1684
        %v1934 = vpop.f32.mrf.mxu0
        %v1935 = vadd.f32 0.0, %v1934
        %v1936 = vpop.f32.mrf.mxu0
        %1937 = vmatprep.mubr.f32.mxu0 %v1687
        %1938 = vmatmul.mubr.f32.gmra.mxu0 %v1686
        %v1939 = vpop.f32.mrf.mxu0
        %v1940 = vadd.f32 0.0, %v1939
        %v1941 = vpop.f32.mrf.mxu0
        %1942 = vmatprep.mubr.f32.mxu0 %v1689
        %1943 = vmatmul.mubr.f32.gmra.mxu0 %v1688
        %v1944 = vpop.f32.mrf.mxu0
        %v1945 = vadd.f32 0.0, %v1944
        %v1946 = vpop.f32.mrf.mxu0
        %1947 = vmatprep.mubr.f32.mxu0 %v1691
        %1948 = vmatmul.mubr.f32.gmra.mxu0 %v1690
        %v1949 = vpop.f32.mrf.mxu0
        %v1950 = vadd.f32 0.0, %v1949
        %v1951 = vpop.f32.mrf.mxu0
        %1952 = vmatprep.mubr.f32.mxu0 %v1693
        %1953 = vmatmul.mubr.f32.gmra.mxu0 %v1692
        %v1954 = vpop.f32.mrf.mxu0
        %v1955 = vadd.f32 0.0, %v1954
        %v1956 = vpop.f32.mrf.mxu0
        %1957 = vmatprep.mubr.f32.mxu0 %v1695
        %1958 = vmatmul.mubr.f32.gmra.mxu0 %v1694
        %v1959 = vpop.f32.mrf.mxu0
        %v1960 = vadd.f32 0.0, %v1959
        %v1961 = vpop.f32.mrf.mxu0
        %1962 = vmatprep.mubr.f32.mxu0 %v1697
        %1963 = vmatmul.mubr.f32.gmra.mxu0 %v1696
        %v1964 = vpop.f32.mrf.mxu0
        %v1965 = vadd.f32 0.0, %v1964
        %v1966 = vpop.f32.mrf.mxu0
        %1967 = vmatprep.mubr.f32.mxu0 %v1699
        %1968 = vmatmul.mubr.f32.gmra.mxu0 %v1698
        %v1969 = vpop.f32.mrf.mxu0
        %v1970 = vadd.f32 0.0, %v1969
        %v1971 = vpop.f32.mrf.mxu0
        %1972 = vmatprep.mubr.f32.mxu0 %v1701
        %1973 = vmatmul.mubr.f32.gmra.mxu0 %v1700
        %v1974 = vpop.f32.mrf.mxu0
        %v1975 = vadd.f32 0.0, %v1974
        %v1976 = vpop.f32.mrf.mxu0
        %1977 = vmatprep.mubr.f32.mxu0 %v1703
        %1978 = vmatmul.mubr.f32.gmra.mxu0 %v1702
        %v1979 = vpop.f32.mrf.mxu0
        %v1980 = vadd.f32 0.0, %v1979
        %v1981 = vpop.f32.mrf.mxu0
        %1982 = vmatprep.mubr.f32.mxu0 %v1705
        %1983 = vmatmul.mubr.f32.gmra.mxu0 %v1704
        %v1984 = vpop.f32.mrf.mxu0
        %v1985 = vadd.f32 0.0, %v1984
        %v1986 = vpop.f32.mrf.mxu0
        %1987 = vmatprep.mubr.f32.mxu0 %v1707
        %1988 = vmatmul.mubr.f32.gmra.mxu0 %v1706
        %v1989 = vpop.f32.mrf.mxu0
        %v1990 = vadd.f32 0.0, %v1989
        %v1991 = vpop.f32.mrf.mxu0
        %1992 = vmatprep.mubr.f32.mxu0 %v1709
        %1993 = vmatmul.mubr.f32.gmra.mxu0 %v1708
        %v1994 = vpop.f32.mrf.mxu0
        %v1995 = vadd.f32 0.0, %v1994
        %v1996 = vpop.f32.mrf.mxu0
        %1997 = vmatprep.mubr.f32.mxu0 %v1711
        %1998 = vmatmul.mubr.f32.gmra.mxu0 %v1710
        %v1999 = vpop.f32.mrf.mxu0
        %v2000 = vadd.f32 0.0, %v1999
        %v2001 = vpop.f32.mrf.mxu0
        %2002 = vmatprep.mubr.f32.mxu0 %v1713
        %2003 = vmatmul.mubr.f32.gmra.mxu0 %v1712
        %v2004 = vpop.f32.mrf.mxu0
        %v2005 = vadd.f32 0.0, %v2004
        %v2006 = vpop.f32.mrf.mxu0
        %2007 = vmatprep.mubr.f32.mxu0 %v1715
        %2008 = vmatmul.mubr.f32.gmra.mxu0 %v1714
        %v2009 = vpop.f32.mrf.mxu0
        %v2010 = vadd.f32 0.0, %v2009
        %v2011 = vpop.f32.mrf.mxu0
        %2012 = vmatprep.mubr.f32.mxu0 %v1717
        %2013 = vmatmul.mubr.f32.gmra.mxu0 %v1716
        %v2014 = vpop.f32.mrf.mxu0
        %v2015 = vadd.f32 0.0, %v2014
        %v2016 = vpop.f32.mrf.mxu0
        %2017 = vmatprep.mubr.f32.mxu0 %v1719
        %2018 = vmatmul.mubr.f32.gmra.mxu0 %v1718
        %v2019 = vpop.f32.mrf.mxu0
        %v2020 = vadd.f32 0.0, %v2019
        %v2021 = vpop.f32.mrf.mxu0
        %2022 = vmatprep.mubr.f32.mxu0 %v1721
        %2023 = vmatmul.mubr.f32.gmra.mxu0 %v1720
        %v2024 = vpop.f32.mrf.mxu0
        %v2025 = vadd.f32 0.0, %v2024
        %v2026 = vpop.f32.mrf.mxu0
        %2027 = vmatprep.mubr.f32.mxu0 %v1723
        %2028 = vmatmul.mubr.f32.gmra.mxu0 %v1722
        %v2029 = vpop.f32.mrf.mxu0
        %v2030 = vadd.f32 0.0, %v2029
        %v2031 = vpop.f32.mrf.mxu0
        %2032 = vmatprep.mubr.f32.mxu0 %v1725
        %2033 = vmatmul.mubr.f32.gmra.mxu0 %v1724
        %v2034 = vpop.f32.mrf.mxu0
        %v2035 = vadd.f32 0.0, %v2034
        %v2036 = vpop.f32.mrf.mxu0
        %2037 = vmatprep.mubr.f32.mxu0 %v1727
        %2038 = vmatmul.mubr.f32.gmra.mxu0 %v1726
        %v2039 = vpop.f32.mrf.mxu0
        %v2040 = vadd.f32 0.0, %v2039
        %v2041 = vpop.f32.mrf.mxu0
        %2042 = vmatprep.mubr.f32.mxu0 %v1729
        %2043 = vmatmul.mubr.f32.gmra.mxu0 %v1728
        %v2044 = vpop.f32.mrf.mxu0
        %v2045 = vadd.f32 0.0, %v2044
        %v2046 = vpop.f32.mrf.mxu0
        %2047 = vmatprep.mubr.f32.mxu0 %v1731
        %2048 = vmatmul.mubr.f32.gmra.mxu0 %v1730
        %v2049 = vpop.f32.mrf.mxu0
        %v2050 = vadd.f32 0.0, %v2049
        %v2051 = vpop.f32.mrf.mxu0
        %2052 = vdwg.mxu0
        %v2053 = vmul.f32 %v1895, 0.00048828125
        %v2054 = vmul.f32 %v1900, 0.00048828125
        %v2055 = vmul.f32 %v1905, 0.00048828125
        %v2056 = vmul.f32 %v1910, 0.00048828125
        %v2057 = vmul.f32 %v1915, 0.00048828125
        %v2058 = vmul.f32 %v1920, 0.00048828125
        %v2059 = vmul.f32 %v1925, 0.00048828125
        %v2060 = vmul.f32 %v1930, 0.00048828125
        %v2061 = vmul.f32 %v1935, 0.00048828125
        %v2062 = vmul.f32 %v1940, 0.00048828125
        %v2063 = vmul.f32 %v1945, 0.00048828125
        %v2064 = vmul.f32 %v1950, 0.00048828125
        %v2065 = vmul.f32 %v1955, 0.00048828125
        %v2066 = vmul.f32 %v1960, 0.00048828125
        %v2067 = vmul.f32 %v1965, 0.00048828125
        %v2068 = vmul.f32 %v1970, 0.00048828125
        %v2069 = vmul.f32 %v1975, 0.00048828125
        %v2070 = vmul.f32 %v1980, 0.00048828125
        %v2071 = vmul.f32 %v1985, 0.00048828125
        %v2072 = vmul.f32 %v1990, 0.00048828125
        %v2073 = vmul.f32 %v1995, 0.00048828125
        %v2074 = vmul.f32 %v2000, 0.00048828125
        %v2075 = vmul.f32 %v2005, 0.00048828125
        %v2076 = vmul.f32 %v2010, 0.00048828125
        %v2077 = vmul.f32 %v2015, 0.00048828125
        %v2078 = vmul.f32 %v2020, 0.00048828125
        %v2079 = vmul.f32 %v2025, 0.00048828125
        %v2080 = vmul.f32 %v2030, 0.00048828125
        %v2081 = vmul.f32 %v2035, 0.00048828125
        %v2082 = vmul.f32 %v2040, 0.00048828125
        %v2083 = vmul.f32 %v2045, 0.00048828125
        %v2084 = vmul.f32 %v2050, 0.00048828125
        %2086 = vset.pattern.permute.xlu0 0
        %2087 = vperm.xlu0 %2086, %v2053
        %v2088 = vpop.permute.xlu0 %2087
        %2091 = vset.pattern.permute.xlu0 0
        %2092 = vperm.xlu0 %2091, %v2054
        %v2093 = vpop.permute.xlu0 %2092
        %2096 = vset.pattern.permute.xlu0 0
        %2097 = vperm.xlu0 %2096, %v2055
        %v2098 = vpop.permute.xlu0 %2097
        %2101 = vset.pattern.permute.xlu0 0
        %2102 = vperm.xlu0 %2101, %v2056
        %v2103 = vpop.permute.xlu0 %2102
        %2106 = vset.pattern.permute.xlu0 0
        %2107 = vperm.xlu0 %2106, %v2057
        %v2108 = vpop.permute.xlu0 %2107
        %2111 = vset.pattern.permute.xlu0 0
        %2112 = vperm.xlu0 %2111, %v2058
        %v2113 = vpop.permute.xlu0 %2112
        %2116 = vset.pattern.permute.xlu0 0
        %2117 = vperm.xlu0 %2116, %v2059
        %v2118 = vpop.permute.xlu0 %2117
        %2121 = vset.pattern.permute.xlu0 0
        %2122 = vperm.xlu0 %2121, %v2060
        %v2123 = vpop.permute.xlu0 %2122
        %2126 = vset.pattern.permute.xlu0 0
        %2127 = vperm.xlu0 %2126, %v2061
        %v2128 = vpop.permute.xlu0 %2127
        %2131 = vset.pattern.permute.xlu0 0
        %2132 = vperm.xlu0 %2131, %v2062
        %v2133 = vpop.permute.xlu0 %2132
        %2136 = vset.pattern.permute.xlu0 0
        %2137 = vperm.xlu0 %2136, %v2063
        %v2138 = vpop.permute.xlu0 %2137
        %2141 = vset.pattern.permute.xlu0 0
        %2142 = vperm.xlu0 %2141, %v2064
        %v2143 = vpop.permute.xlu0 %2142
        %2146 = vset.pattern.permute.xlu0 0
        %2147 = vperm.xlu0 %2146, %v2065
        %v2148 = vpop.permute.xlu0 %2147
        %2151 = vset.pattern.permute.xlu0 0
        %2152 = vperm.xlu0 %2151, %v2066
        %v2153 = vpop.permute.xlu0 %2152
        %2156 = vset.pattern.permute.xlu0 0
        %2157 = vperm.xlu0 %2156, %v2067
        %v2158 = vpop.permute.xlu0 %2157
        %2161 = vset.pattern.permute.xlu0 0
        %2162 = vperm.xlu0 %2161, %v2068
        %v2163 = vpop.permute.xlu0 %2162
        %2166 = vset.pattern.permute.xlu0 0
        %2167 = vperm.xlu0 %2166, %v2069
        %v2168 = vpop.permute.xlu0 %2167
        %2171 = vset.pattern.permute.xlu0 0
        %2172 = vperm.xlu0 %2171, %v2070
        %v2173 = vpop.permute.xlu0 %2172
        %2176 = vset.pattern.permute.xlu0 0
        %2177 = vperm.xlu0 %2176, %v2071
        %v2178 = vpop.permute.xlu0 %2177
        %2181 = vset.pattern.permute.xlu0 0
        %2182 = vperm.xlu0 %2181, %v2072
        %v2183 = vpop.permute.xlu0 %2182
        %2186 = vset.pattern.permute.xlu0 0
        %2187 = vperm.xlu0 %2186, %v2073
        %v2188 = vpop.permute.xlu0 %2187
        %2191 = vset.pattern.permute.xlu0 0
        %2192 = vperm.xlu0 %2191, %v2074
        %v2193 = vpop.permute.xlu0 %2192
        %2196 = vset.pattern.permute.xlu0 0
        %2197 = vperm.xlu0 %2196, %v2075
        %v2198 = vpop.permute.xlu0 %2197
        %2201 = vset.pattern.permute.xlu0 0
        %2202 = vperm.xlu0 %2201, %v2076
        %v2203 = vpop.permute.xlu0 %2202
        %2206 = vset.pattern.permute.xlu0 0
        %2207 = vperm.xlu0 %2206, %v2077
        %v2208 = vpop.permute.xlu0 %2207
        %2211 = vset.pattern.permute.xlu0 0
        %2212 = vperm.xlu0 %2211, %v2078
        %v2213 = vpop.permute.xlu0 %2212
        %2216 = vset.pattern.permute.xlu0 0
        %2217 = vperm.xlu0 %2216, %v2079
        %v2218 = vpop.permute.xlu0 %2217
        %2221 = vset.pattern.permute.xlu0 0
        %2222 = vperm.xlu0 %2221, %v2080
        %v2223 = vpop.permute.xlu0 %2222
        %2226 = vset.pattern.permute.xlu0 0
        %2227 = vperm.xlu0 %2226, %v2081
        %v2228 = vpop.permute.xlu0 %2227
        %2231 = vset.pattern.permute.xlu0 0
        %2232 = vperm.xlu0 %2231, %v2082
        %v2233 = vpop.permute.xlu0 %2232
        %2236 = vset.pattern.permute.xlu0 0
        %2237 = vperm.xlu0 %2236, %v2083
        %v2238 = vpop.permute.xlu0 %2237
        %2241 = vset.pattern.permute.xlu0 0
        %2242 = vperm.xlu0 %2241, %v2084
        %v2243 = vpop.permute.xlu0 %2242
        %v2245 = vsub.f32 %v1604, %v2088
        %v2246 = vsub.f32 %v1605, %v2088
        %v2247 = vsub.f32 %v1606, %v2093
        %v2248 = vsub.f32 %v1607, %v2093
        %v2249 = vsub.f32 %v1608, %v2098
        %v2250 = vsub.f32 %v1609, %v2098
        %v2251 = vsub.f32 %v1610, %v2103
        %v2252 = vsub.f32 %v1611, %v2103
        %v2253 = vsub.f32 %v1612, %v2108
        %v2254 = vsub.f32 %v1613, %v2108
        %v2255 = vsub.f32 %v1614, %v2113
        %v2256 = vsub.f32 %v1615, %v2113
        %v2257 = vsub.f32 %v1616, %v2118
        %v2258 = vsub.f32 %v1617, %v2118
        %v2259 = vsub.f32 %v1618, %v2123
        %v2260 = vsub.f32 %v1619, %v2123
        %v2261 = vsub.f32 %v1620, %v2128
        %v2262 = vsub.f32 %v1621, %v2128
        %v2263 = vsub.f32 %v1622, %v2133
        %v2264 = vsub.f32 %v1623, %v2133
        %v2265 = vsub.f32 %v1624, %v2138
        %v2266 = vsub.f32 %v1625, %v2138
        %v2267 = vsub.f32 %v1626, %v2143
        %v2268 = vsub.f32 %v1627, %v2143
        %v2269 = vsub.f32 %v1628, %v2148
        %v2270 = vsub.f32 %v1629, %v2148
        %v2271 = vsub.f32 %v1630, %v2153
        %v2272 = vsub.f32 %v1631, %v2153
        %v2273 = vsub.f32 %v1632, %v2158
        %v2274 = vsub.f32 %v1633, %v2158
        %v2275 = vsub.f32 %v1634, %v2163
        %v2276 = vsub.f32 %v1635, %v2163
        %v2277 = vsub.f32 %v1636, %v2168
        %v2278 = vsub.f32 %v1637, %v2168
        %v2279 = vsub.f32 %v1638, %v2173
        %v2280 = vsub.f32 %v1639, %v2173
        %v2281 = vsub.f32 %v1640, %v2178
        %v2282 = vsub.f32 %v1641, %v2178
        %v2283 = vsub.f32 %v1642, %v2183
        %v2284 = vsub.f32 %v1643, %v2183
        %v2285 = vsub.f32 %v1644, %v2188
        %v2286 = vsub.f32 %v1645, %v2188
        %v2287 = vsub.f32 %v1646, %v2193
        %v2288 = vsub.f32 %v1647, %v2193
        %v2289 = vsub.f32 %v1648, %v2198
        %v2290 = vsub.f32 %v1649, %v2198
        %v2291 = vsub.f32 %v1650, %v2203
        %v2292 = vsub.f32 %v1651, %v2203
        %v2293 = vsub.f32 %v1652, %v2208
        %v2294 = vsub.f32 %v1653, %v2208
        %v2295 = vsub.f32 %v1654, %v2213
        %v2296 = vsub.f32 %v1655, %v2213
        %v2297 = vsub.f32 %v1656, %v2218
        %v2298 = vsub.f32 %v1657, %v2218
        %v2299 = vsub.f32 %v1658, %v2223
        %v2300 = vsub.f32 %v1659, %v2223
        %v2301 = vsub.f32 %v1660, %v2228
        %v2302 = vsub.f32 %v1661, %v2228
        %v2303 = vsub.f32 %v1662, %v2233
        %v2304 = vsub.f32 %v1663, %v2233
        %v2305 = vsub.f32 %v1664, %v2238
        %v2306 = vsub.f32 %v1665, %v2238
        %v2307 = vsub.f32 %v1666, %v2243
        %v2308 = vsub.f32 %v1667, %v2243
        %v2309 = vmul.f32 %v2245, %v2245
        %v2310 = vmul.f32 %v2246, %v2246
        %v2311 = vmul.f32 %v2247, %v2247
        %v2312 = vmul.f32 %v2248, %v2248
        %v2313 = vmul.f32 %v2249, %v2249
        %v2314 = vmul.f32 %v2250, %v2250
        %v2315 = vmul.f32 %v2251, %v2251
        %v2316 = vmul.f32 %v2252, %v2252
        %v2317 = vmul.f32 %v2253, %v2253
        %v2318 = vmul.f32 %v2254, %v2254
        %v2319 = vmul.f32 %v2255, %v2255
        %v2320 = vmul.f32 %v2256, %v2256
        %v2321 = vmul.f32 %v2257, %v2257
        %v2322 = vmul.f32 %v2258, %v2258
        %v2323 = vmul.f32 %v2259, %v2259
        %v2324 = vmul.f32 %v2260, %v2260
        %v2325 = vmul.f32 %v2261, %v2261
        %v2326 = vmul.f32 %v2262, %v2262
        %v2327 = vmul.f32 %v2263, %v2263
        %v2328 = vmul.f32 %v2264, %v2264
        %v2329 = vmul.f32 %v2265, %v2265
        %v2330 = vmul.f32 %v2266, %v2266
        %v2331 = vmul.f32 %v2267, %v2267
        %v2332 = vmul.f32 %v2268, %v2268
        %v2333 = vmul.f32 %v2269, %v2269
        %v2334 = vmul.f32 %v2270, %v2270
        %v2335 = vmul.f32 %v2271, %v2271
        %v2336 = vmul.f32 %v2272, %v2272
        %v2337 = vmul.f32 %v2273, %v2273
        %v2338 = vmul.f32 %v2274, %v2274
        %v2339 = vmul.f32 %v2275, %v2275
        %v2340 = vmul.f32 %v2276, %v2276
        %v2341 = vmul.f32 %v2277, %v2277
        %v2342 = vmul.f32 %v2278, %v2278
        %v2343 = vmul.f32 %v2279, %v2279
        %v2344 = vmul.f32 %v2280, %v2280
        %v2345 = vmul.f32 %v2281, %v2281
        %v2346 = vmul.f32 %v2282, %v2282
        %v2347 = vmul.f32 %v2283, %v2283
        %v2348 = vmul.f32 %v2284, %v2284
        %v2349 = vmul.f32 %v2285, %v2285
        %v2350 = vmul.f32 %v2286, %v2286
        %v2351 = vmul.f32 %v2287, %v2287
        %v2352 = vmul.f32 %v2288, %v2288
        %v2353 = vmul.f32 %v2289, %v2289
        %v2354 = vmul.f32 %v2290, %v2290
        %v2355 = vmul.f32 %v2291, %v2291
        %v2356 = vmul.f32 %v2292, %v2292
        %v2357 = vmul.f32 %v2293, %v2293
        %v2358 = vmul.f32 %v2294, %v2294
        %v2359 = vmul.f32 %v2295, %v2295
        %v2360 = vmul.f32 %v2296, %v2296
        %v2361 = vmul.f32 %v2297, %v2297
        %v2362 = vmul.f32 %v2298, %v2298
        %v2363 = vmul.f32 %v2299, %v2299
        %v2364 = vmul.f32 %v2300, %v2300
        %v2365 = vmul.f32 %v2301, %v2301
        %v2366 = vmul.f32 %v2302, %v2302
        %v2367 = vmul.f32 %v2303, %v2303
        %v2368 = vmul.f32 %v2304, %v2304
        %v2369 = vmul.f32 %v2305, %v2305
        %v2370 = vmul.f32 %v2306, %v2306
        %v2371 = vmul.f32 %v2307, %v2307
        %v2372 = vmul.f32 %v2308, %v2308
        %v2373 = vadd.f32 %v2309, %v2310
        %2374 = vadd.xlane.f32.xlu0 %v2373
        %v2375 = vpop.xlane.xlu0 %2374
        %v2376 = vadd.f32 %v2311, %v2312
        %2377 = vadd.xlane.f32.xlu0 %v2376
        %v2378 = vpop.xlane.xlu0 %2377
        %v2379 = vadd.f32 %v2313, %v2314
        %2380 = vadd.xlane.f32.xlu0 %v2379
        %v2381 = vpop.xlane.xlu0 %2380
        %v2382 = vadd.f32 %v2315, %v2316
        %2383 = vadd.xlane.f32.xlu0 %v2382
        %v2384 = vpop.xlane.xlu0 %2383
        %v2385 = vadd.f32 %v2317, %v2318
        %2386 = vadd.xlane.f32.xlu0 %v2385
        %v2387 = vpop.xlane.xlu0 %2386
        %v2388 = vadd.f32 %v2319, %v2320
        %2389 = vadd.xlane.f32.xlu0 %v2388
        %v2390 = vpop.xlane.xlu0 %2389
        %v2391 = vadd.f32 %v2321, %v2322
        %2392 = vadd.xlane.f32.xlu0 %v2391
        %v2393 = vpop.xlane.xlu0 %2392
        %v2394 = vadd.f32 %v2323, %v2324
        %2395 = vadd.xlane.f32.xlu0 %v2394
        %v2396 = vpop.xlane.xlu0 %2395
        %v2397 = vadd.f32 %v2325, %v2326
        %2398 = vadd.xlane.f32.xlu0 %v2397
        %v2399 = vpop.xlane.xlu0 %2398
        %v2400 = vadd.f32 %v2327, %v2328
        %2401 = vadd.xlane.f32.xlu0 %v2400
        %v2402 = vpop.xlane.xlu0 %2401
        %v2403 = vadd.f32 %v2329, %v2330
        %2404 = vadd.xlane.f32.xlu0 %v2403
        %v2405 = vpop.xlane.xlu0 %2404
        %v2406 = vadd.f32 %v2331, %v2332
        %2407 = vadd.xlane.f32.xlu0 %v2406
        %v2408 = vpop.xlane.xlu0 %2407
        %v2409 = vadd.f32 %v2333, %v2334
        %2410 = vadd.xlane.f32.xlu0 %v2409
        %v2411 = vpop.xlane.xlu0 %2410
        %v2412 = vadd.f32 %v2335, %v2336
        %2413 = vadd.xlane.f32.xlu0 %v2412
        %v2414 = vpop.xlane.xlu0 %2413
        %v2415 = vadd.f32 %v2337, %v2338
        %2416 = vadd.xlane.f32.xlu0 %v2415
        %v2417 = vpop.xlane.xlu0 %2416
        %v2418 = vadd.f32 %v2339, %v2340
        %2419 = vadd.xlane.f32.xlu0 %v2418
        %v2420 = vpop.xlane.xlu0 %2419
        %v2421 = vadd.f32 %v2341, %v2342
        %2422 = vadd.xlane.f32.xlu0 %v2421
        %v2423 = vpop.xlane.xlu0 %2422
        %v2424 = vadd.f32 %v2343, %v2344
        %2425 = vadd.xlane.f32.xlu0 %v2424
        %v2426 = vpop.xlane.xlu0 %2425
        %v2427 = vadd.f32 %v2345, %v2346
        %2428 = vadd.xlane.f32.xlu0 %v2427
        %v2429 = vpop.xlane.xlu0 %2428
        %v2430 = vadd.f32 %v2347, %v2348
        %2431 = vadd.xlane.f32.xlu0 %v2430
        %v2432 = vpop.xlane.xlu0 %2431
        %v2433 = vadd.f32 %v2349, %v2350
        %2434 = vadd.xlane.f32.xlu0 %v2433
        %v2435 = vpop.xlane.xlu0 %2434
        %v2436 = vadd.f32 %v2351, %v2352
        %2437 = vadd.xlane.f32.xlu0 %v2436
        %v2438 = vpop.xlane.xlu0 %2437
        %v2439 = vadd.f32 %v2353, %v2354
        %2440 = vadd.xlane.f32.xlu0 %v2439
        %v2441 = vpop.xlane.xlu0 %2440
        %v2442 = vadd.f32 %v2355, %v2356
        %2443 = vadd.xlane.f32.xlu0 %v2442
        %v2444 = vpop.xlane.xlu0 %2443
        %v2445 = vadd.f32 %v2357, %v2358
        %2446 = vadd.xlane.f32.xlu0 %v2445
        %v2447 = vpop.xlane.xlu0 %2446
        %v2448 = vadd.f32 %v2359, %v2360
        %2449 = vadd.xlane.f32.xlu0 %v2448
        %v2450 = vpop.xlane.xlu0 %2449
        %v2451 = vadd.f32 %v2361, %v2362
        %2452 = vadd.xlane.f32.xlu0 %v2451
        %v2453 = vpop.xlane.xlu0 %2452
        %v2454 = vadd.f32 %v2363, %v2364
        %2455 = vadd.xlane.f32.xlu0 %v2454
        %v2456 = vpop.xlane.xlu0 %2455
        %v2457 = vadd.f32 %v2365, %v2366
        %2458 = vadd.xlane.f32.xlu0 %v2457
        %v2459 = vpop.xlane.xlu0 %2458
        %v2460 = vadd.f32 %v2367, %v2368
        %2461 = vadd.xlane.f32.xlu0 %v2460
        %v2462 = vpop.xlane.xlu0 %2461
        %v2463 = vadd.f32 %v2369, %v2370
        %2464 = vadd.xlane.f32.xlu0 %v2463
        %v2465 = vpop.xlane.xlu0 %2464
        %v2466 = vadd.f32 %v2371, %v2372
        %2467 = vadd.xlane.f32.xlu0 %v2466
        %v2468 = vpop.xlane.xlu0 %2467
        %2469 = vmatprep.subr.mxu0 0.0
        %2470 = vmatpush1.msra.mxu0 %v2420
        %2471 = vmatprep.subr.mxu0 0.0
        %2472 = vmatpush1.msra.mxu0 %v2417
        %2473 = vmatprep.subr.mxu0 0.0
        %2474 = vmatpush1.msra.mxu0 %v2414
        %2475 = vmatprep.subr.mxu0 0.0
        %2476 = vmatpush1.msra.mxu0 %v2411
        %2477 = vmatprep.subr.mxu0 0.0
        %2478 = vmatpush1.msra.mxu0 %v2408
        %2479 = vmatprep.subr.mxu0 0.0
        %2480 = vmatpush1.msra.mxu0 %v2405
        %2481 = vmatprep.subr.mxu0 0.0
        %2482 = vmatpush1.msra.mxu0 %v2402
        %2483 = vmatprep.subr.mxu0 0.0
        %2484 = vmatpush1.msra.mxu0 %v2399
        %2485 = vmatprep.subr.mxu0 0.0
        %2486 = vmatpush1.msra.mxu0 %v2396
        %2487 = vmatprep.subr.mxu0 0.0
        %2488 = vmatpush1.msra.mxu0 %v2393
        %2489 = vmatprep.subr.mxu0 0.0
        %2490 = vmatpush1.msra.mxu0 %v2390
        %2491 = vmatprep.subr.mxu0 0.0
        %2492 = vmatpush1.msra.mxu0 %v2387
        %2493 = vmatprep.subr.mxu0 0.0
        %2494 = vmatpush1.msra.mxu0 %v2384
        %2495 = vmatprep.subr.mxu0 0.0
        %2496 = vmatpush1.msra.mxu0 %v2381
        %2497 = vmatprep.subr.mxu0 0.0
        %2498 = vmatpush1.msra.mxu0 %v2378
        %2499 = vmatprep.subr.mxu0 0.0
        %2500 = vmatpush1.msra.mxu0 %v2375
        %2501 = vmatprep.subr.mxu0 0.0
        %2502 = vmatpush2.msra.mxu0 %v2468
        %2503 = vmatprep.subr.mxu0 0.0
        %2504 = vmatpush2.msra.mxu0 %v2465
        %2505 = vmatprep.subr.mxu0 0.0
        %2506 = vmatpush2.msra.mxu0 %v2462
        %2507 = vmatprep.subr.mxu0 0.0
        %2508 = vmatpush2.msra.mxu0 %v2459
        %2509 = vmatprep.subr.mxu0 0.0
        %2510 = vmatpush2.msra.mxu0 %v2456
        %2511 = vmatprep.subr.mxu0 0.0
        %2512 = vmatpush2.msra.mxu0 %v2453
        %2513 = vmatprep.subr.mxu0 0.0
        %2514 = vmatpush2.msra.mxu0 %v2450
        %2515 = vmatprep.subr.mxu0 0.0
        %2516 = vmatpush2.msra.mxu0 %v2447
        %2517 = vmatprep.subr.mxu0 0.0
        %2518 = vmatpush2.msra.mxu0 %v2444
        %2519 = vmatprep.subr.mxu0 0.0
        %2520 = vmatpush2.msra.mxu0 %v2441
        %2521 = vmatprep.subr.mxu0 0.0
        %2522 = vmatpush2.msra.mxu0 %v2438
        %2523 = vmatprep.subr.mxu0 0.0
        %2524 = vmatpush2.msra.mxu0 %v2435
        %2525 = vmatprep.subr.mxu0 0.0
        %2526 = vmatpush2.msra.mxu0 %v2432
        %2527 = vmatprep.subr.mxu0 0.0
        %2528 = vmatpush2.msra.mxu0 %v2429
        %2529 = vmatprep.subr.mxu0 0.0
        %2530 = vmatpush2.msra.mxu0 %v2426
        %2531 = vmatprep.subr.mxu0 0.0
        %2532 = vmatpush2.msra.mxu0 %v2423
        %2533 = vmatprep.mubr.f32.mxu0 %v1669
        %2534 = vmatmul.mubr.f32.gmra.mxu0 %v1668
        %v2535 = vpop.f32.mrf.mxu0
        %v2536 = vadd.f32 0.0, %v2535
        %v2537 = vpop.f32.mrf.mxu0
        %2538 = vmatprep.mubr.f32.mxu0 %v1671
        %2539 = vmatmul.mubr.f32.gmra.mxu0 %v1670
        %v2540 = vpop.f32.mrf.mxu0
        %v2541 = vadd.f32 0.0, %v2540
        %v2542 = vpop.f32.mrf.mxu0
        %2543 = vmatprep.mubr.f32.mxu0 %v1673
        %2544 = vmatmul.mubr.f32.gmra.mxu0 %v1672
        %v2545 = vpop.f32.mrf.mxu0
        %v2546 = vadd.f32 0.0, %v2545
        %v2547 = vpop.f32.mrf.mxu0
        %2548 = vmatprep.mubr.f32.mxu0 %v1675
        %2549 = vmatmul.mubr.f32.gmra.mxu0 %v1674
        %v2550 = vpop.f32.mrf.mxu0
        %v2551 = vadd.f32 0.0, %v2550
        %v2552 = vpop.f32.mrf.mxu0
        %2553 = vmatprep.mubr.f32.mxu0 %v1677
        %2554 = vmatmul.mubr.f32.gmra.mxu0 %v1676
        %v2555 = vpop.f32.mrf.mxu0
        %v2556 = vadd.f32 0.0, %v2555
        %v2557 = vpop.f32.mrf.mxu0
        %2558 = vmatprep.mubr.f32.mxu0 %v1679
        %2559 = vmatmul.mubr.f32.gmra.mxu0 %v1678
        %v2560 = vpop.f32.mrf.mxu0
        %v2561 = vadd.f32 0.0, %v2560
        %v2562 = vpop.f32.mrf.mxu0
        %2563 = vmatprep.mubr.f32.mxu0 %v1681
        %2564 = vmatmul.mubr.f32.gmra.mxu0 %v1680
        %v2565 = vpop.f32.mrf.mxu0
        %v2566 = vadd.f32 0.0, %v2565
        %v2567 = vpop.f32.mrf.mxu0
        %2568 = vmatprep.mubr.f32.mxu0 %v1683
        %2569 = vmatmul.mubr.f32.gmra.mxu0 %v1682
        %v2570 = vpop.f32.mrf.mxu0
        %v2571 = vadd.f32 0.0, %v2570
        %v2572 = vpop.f32.mrf.mxu0
        %2573 = vmatprep.mubr.f32.mxu0 %v1685
        %2574 = vmatmul.mubr.f32.gmra.mxu0 %v1684
        %v2575 = vpop.f32.mrf.mxu0
        %v2576 = vadd.f32 0.0, %v2575
        %v2577 = vpop.f32.mrf.mxu0
        %2578 = vmatprep.mubr.f32.mxu0 %v1687
        %2579 = vmatmul.mubr.f32.gmra.mxu0 %v1686
        %v2580 = vpop.f32.mrf.mxu0
        %v2581 = vadd.f32 0.0, %v2580
        %v2582 = vpop.f32.mrf.mxu0
        %2583 = vmatprep.mubr.f32.mxu0 %v1689
        %2584 = vmatmul.mubr.f32.gmra.mxu0 %v1688
        %v2585 = vpop.f32.mrf.mxu0
        %v2586 = vadd.f32 0.0, %v2585
        %v2587 = vpop.f32.mrf.mxu0
        %2588 = vmatprep.mubr.f32.mxu0 %v1691
        %2589 = vmatmul.mubr.f32.gmra.mxu0 %v1690
        %v2590 = vpop.f32.mrf.mxu0
        %v2591 = vadd.f32 0.0, %v2590
        %v2592 = vpop.f32.mrf.mxu0
        %2593 = vmatprep.mubr.f32.mxu0 %v1693
        %2594 = vmatmul.mubr.f32.gmra.mxu0 %v1692
        %v2595 = vpop.f32.mrf.mxu0
        %v2596 = vadd.f32 0.0, %v2595
        %v2597 = vpop.f32.mrf.mxu0
        %2598 = vmatprep.mubr.f32.mxu0 %v1695
        %2599 = vmatmul.mubr.f32.gmra.mxu0 %v1694
        %v2600 = vpop.f32.mrf.mxu0
        %v2601 = vadd.f32 0.0, %v2600
        %v2602 = vpop.f32.mrf.mxu0
        %2603 = vmatprep.mubr.f32.mxu0 %v1697
        %2604 = vmatmul.mubr.f32.gmra.mxu0 %v1696
        %v2605 = vpop.f32.mrf.mxu0
        %v2606 = vadd.f32 0.0, %v2605
        %v2607 = vpop.f32.mrf.mxu0
        %2608 = vmatprep.mubr.f32.mxu0 %v1699
        %2609 = vmatmul.mubr.f32.gmra.mxu0 %v1698
        %v2610 = vpop.f32.mrf.mxu0
        %v2611 = vadd.f32 0.0, %v2610
        %v2612 = vpop.f32.mrf.mxu0
        %2613 = vmatprep.mubr.f32.mxu0 %v1701
        %2614 = vmatmul.mubr.f32.gmra.mxu0 %v1700
        %v2615 = vpop.f32.mrf.mxu0
        %v2616 = vadd.f32 0.0, %v2615
        %v2617 = vpop.f32.mrf.mxu0
        %2618 = vmatprep.mubr.f32.mxu0 %v1703
        %2619 = vmatmul.mubr.f32.gmra.mxu0 %v1702
        %v2620 = vpop.f32.mrf.mxu0
        %v2621 = vadd.f32 0.0, %v2620
        %v2622 = vpop.f32.mrf.mxu0
        %2623 = vmatprep.mubr.f32.mxu0 %v1705
        %2624 = vmatmul.mubr.f32.gmra.mxu0 %v1704
        %v2625 = vpop.f32.mrf.mxu0
        %v2626 = vadd.f32 0.0, %v2625
        %v2627 = vpop.f32.mrf.mxu0
        %2628 = vmatprep.mubr.f32.mxu0 %v1707
        %2629 = vmatmul.mubr.f32.gmra.mxu0 %v1706
        %v2630 = vpop.f32.mrf.mxu0
        %v2631 = vadd.f32 0.0, %v2630
        %v2632 = vpop.f32.mrf.mxu0
        %2633 = vmatprep.mubr.f32.mxu0 %v1709
        %2634 = vmatmul.mubr.f32.gmra.mxu0 %v1708
        %v2635 = vpop.f32.mrf.mxu0
        %v2636 = vadd.f32 0.0, %v2635
        %v2637 = vpop.f32.mrf.mxu0
        %2638 = vmatprep.mubr.f32.mxu0 %v1711
        %2639 = vmatmul.mubr.f32.gmra.mxu0 %v1710
        %v2640 = vpop.f32.mrf.mxu0
        %v2641 = vadd.f32 0.0, %v2640
        %v2642 = vpop.f32.mrf.mxu0
        %2643 = vmatprep.mubr.f32.mxu0 %v1713
        %2644 = vmatmul.mubr.f32.gmra.mxu0 %v1712
        %v2645 = vpop.f32.mrf.mxu0
        %v2646 = vadd.f32 0.0, %v2645
        %v2647 = vpop.f32.mrf.mxu0
        %2648 = vmatprep.mubr.f32.mxu0 %v1715
        %2649 = vmatmul.mubr.f32.gmra.mxu0 %v1714
        %v2650 = vpop.f32.mrf.mxu0
        %v2651 = vadd.f32 0.0, %v2650
        %v2652 = vpop.f32.mrf.mxu0
        %2653 = vmatprep.mubr.f32.mxu0 %v1717
        %2654 = vmatmul.mubr.f32.gmra.mxu0 %v1716
        %v2655 = vpop.f32.mrf.mxu0
        %v2656 = vadd.f32 0.0, %v2655
        %v2657 = vpop.f32.mrf.mxu0
        %2658 = vmatprep.mubr.f32.mxu0 %v1719
        %2659 = vmatmul.mubr.f32.gmra.mxu0 %v1718
        %v2660 = vpop.f32.mrf.mxu0
        %v2661 = vadd.f32 0.0, %v2660
        %v2662 = vpop.f32.mrf.mxu0
        %2663 = vmatprep.mubr.f32.mxu0 %v1721
        %2664 = vmatmul.mubr.f32.gmra.mxu0 %v1720
        %v2665 = vpop.f32.mrf.mxu0
        %v2666 = vadd.f32 0.0, %v2665
        %v2667 = vpop.f32.mrf.mxu0
        %2668 = vmatprep.mubr.f32.mxu0 %v1723
        %2669 = vmatmul.mubr.f32.gmra.mxu0 %v1722
        %v2670 = vpop.f32.mrf.mxu0
        %v2671 = vadd.f32 0.0, %v2670
        %v2672 = vpop.f32.mrf.mxu0
        %2673 = vmatprep.mubr.f32.mxu0 %v1725
        %2674 = vmatmul.mubr.f32.gmra.mxu0 %v1724
        %v2675 = vpop.f32.mrf.mxu0
        %v2676 = vadd.f32 0.0, %v2675
        %v2677 = vpop.f32.mrf.mxu0
        %2678 = vmatprep.mubr.f32.mxu0 %v1727
        %2679 = vmatmul.mubr.f32.gmra.mxu0 %v1726
        %v2680 = vpop.f32.mrf.mxu0
        %v2681 = vadd.f32 0.0, %v2680
        %v2682 = vpop.f32.mrf.mxu0
        %2683 = vmatprep.mubr.f32.mxu0 %v1729
        %2684 = vmatmul.mubr.f32.gmra.mxu0 %v1728
        %v2685 = vpop.f32.mrf.mxu0
        %v2686 = vadd.f32 0.0, %v2685
        %v2687 = vpop.f32.mrf.mxu0
        %2688 = vmatprep.mubr.f32.mxu0 %v1731
        %2689 = vmatmul.mubr.f32.gmra.mxu0 %v1730
        %v2690 = vpop.f32.mrf.mxu0
        %v2691 = vadd.f32 0.0, %v2690
        %v2692 = vpop.f32.mrf.mxu0
        %2693 = vdwg.mxu0
        %v2694 = vmul.f32 %v2536, 0.00048828125
        %v2695 = vmul.f32 %v2541, 0.00048828125
        %v2696 = vmul.f32 %v2546, 0.00048828125
        %v2697 = vmul.f32 %v2551, 0.00048828125
        %v2698 = vmul.f32 %v2556, 0.00048828125
        %v2699 = vmul.f32 %v2561, 0.00048828125
        %v2700 = vmul.f32 %v2566, 0.00048828125
        %v2701 = vmul.f32 %v2571, 0.00048828125
        %v2702 = vmul.f32 %v2576, 0.00048828125
        %v2703 = vmul.f32 %v2581, 0.00048828125
        %v2704 = vmul.f32 %v2586, 0.00048828125
        %v2705 = vmul.f32 %v2591, 0.00048828125
        %v2706 = vmul.f32 %v2596, 0.00048828125
        %v2707 = vmul.f32 %v2601, 0.00048828125
        %v2708 = vmul.f32 %v2606, 0.00048828125
        %v2709 = vmul.f32 %v2611, 0.00048828125
        %v2710 = vmul.f32 %v2616, 0.00048828125
        %v2711 = vmul.f32 %v2621, 0.00048828125
        %v2712 = vmul.f32 %v2626, 0.00048828125
        %v2713 = vmul.f32 %v2631, 0.00048828125
        %v2714 = vmul.f32 %v2636, 0.00048828125
        %v2715 = vmul.f32 %v2641, 0.00048828125
        %v2716 = vmul.f32 %v2646, 0.00048828125
        %v2717 = vmul.f32 %v2651, 0.00048828125
        %v2718 = vmul.f32 %v2656, 0.00048828125
        %v2719 = vmul.f32 %v2661, 0.00048828125
        %v2720 = vmul.f32 %v2666, 0.00048828125
        %v2721 = vmul.f32 %v2671, 0.00048828125
        %v2722 = vmul.f32 %v2676, 0.00048828125
        %v2723 = vmul.f32 %v2681, 0.00048828125
        %v2724 = vmul.f32 %v2686, 0.00048828125
        %v2725 = vmul.f32 %v2691, 0.00048828125
        %v2726 = vadd.f32 %v2694, 1e-05
        %v2727 = vadd.f32 %v2695, 1e-05
        %v2728 = vadd.f32 %v2696, 1e-05
        %v2729 = vadd.f32 %v2697, 1e-05
        %v2730 = vadd.f32 %v2698, 1e-05
        %v2731 = vadd.f32 %v2699, 1e-05
        %v2732 = vadd.f32 %v2700, 1e-05
        %v2733 = vadd.f32 %v2701, 1e-05
        %v2734 = vadd.f32 %v2702, 1e-05
        %v2735 = vadd.f32 %v2703, 1e-05
        %v2736 = vadd.f32 %v2704, 1e-05
        %v2737 = vadd.f32 %v2705, 1e-05
        %v2738 = vadd.f32 %v2706, 1e-05
        %v2739 = vadd.f32 %v2707, 1e-05
        %v2740 = vadd.f32 %v2708, 1e-05
        %v2741 = vadd.f32 %v2709, 1e-05
        %v2742 = vadd.f32 %v2710, 1e-05
        %v2743 = vadd.f32 %v2711, 1e-05
        %v2744 = vadd.f32 %v2712, 1e-05
        %v2745 = vadd.f32 %v2713, 1e-05
        %v2746 = vadd.f32 %v2714, 1e-05
        %v2747 = vadd.f32 %v2715, 1e-05
        %v2748 = vadd.f32 %v2716, 1e-05
        %v2749 = vadd.f32 %v2717, 1e-05
        %v2750 = vadd.f32 %v2718, 1e-05
        %v2751 = vadd.f32 %v2719, 1e-05
        %v2752 = vadd.f32 %v2720, 1e-05
        %v2753 = vadd.f32 %v2721, 1e-05
        %v2754 = vadd.f32 %v2722, 1e-05
        %v2755 = vadd.f32 %v2723, 1e-05
        %v2756 = vadd.f32 %v2724, 1e-05
        %v2757 = vadd.f32 %v2725, 1e-05
        %v2758 = vrsqrt.pop %v2726
        %v2759 = vrsqrt.pop %v2727
        %v2760 = vrsqrt.pop %v2728
        %v2761 = vrsqrt.pop %v2729
        %v2762 = vrsqrt.pop %v2730
        %v2763 = vrsqrt.pop %v2731
        %v2764 = vrsqrt.pop %v2732
        %v2765 = vrsqrt.pop %v2733
        %v2766 = vrsqrt.pop %v2734
        %v2767 = vrsqrt.pop %v2735
        %v2768 = vrsqrt.pop %v2736
        %v2769 = vrsqrt.pop %v2737
        %v2770 = vrsqrt.pop %v2738
        %v2771 = vrsqrt.pop %v2739
        %v2772 = vrsqrt.pop %v2740
        %v2773 = vrsqrt.pop %v2741
        %v2774 = vrsqrt.pop %v2742
        %v2775 = vrsqrt.pop %v2743
        %v2776 = vrsqrt.pop %v2744
        %v2777 = vrsqrt.pop %v2745
        %v2778 = vrsqrt.pop %v2746
        %v2779 = vrsqrt.pop %v2747
        %v2780 = vrsqrt.pop %v2748
        %v2781 = vrsqrt.pop %v2749
        %v2782 = vrsqrt.pop %v2750
        %v2783 = vrsqrt.pop %v2751
        %v2784 = vrsqrt.pop %v2752
        %v2785 = vrsqrt.pop %v2753
        %v2786 = vrsqrt.pop %v2754
        %v2787 = vrsqrt.pop %v2755
        %v2788 = vrsqrt.pop %v2756
        %v2789 = vrsqrt.pop %v2757
        %2791 = vset.pattern.permute.xlu0 0
        %2792 = vperm.xlu0 %2791, %v2758
        %v2793 = vpop.permute.xlu0 %2792
        %2796 = vset.pattern.permute.xlu0 0
        %2797 = vperm.xlu0 %2796, %v2759
        %v2798 = vpop.permute.xlu0 %2797
        %2801 = vset.pattern.permute.xlu0 0
        %2802 = vperm.xlu0 %2801, %v2760
        %v2803 = vpop.permute.xlu0 %2802
        %2806 = vset.pattern.permute.xlu0 0
        %2807 = vperm.xlu0 %2806, %v2761
        %v2808 = vpop.permute.xlu0 %2807
        %2811 = vset.pattern.permute.xlu0 0
        %2812 = vperm.xlu0 %2811, %v2762
        %v2813 = vpop.permute.xlu0 %2812
        %2816 = vset.pattern.permute.xlu0 0
        %2817 = vperm.xlu0 %2816, %v2763
        %v2818 = vpop.permute.xlu0 %2817
        %2821 = vset.pattern.permute.xlu0 0
        %2822 = vperm.xlu0 %2821, %v2764
        %v2823 = vpop.permute.xlu0 %2822
        %2826 = vset.pattern.permute.xlu0 0
        %2827 = vperm.xlu0 %2826, %v2765
        %v2828 = vpop.permute.xlu0 %2827
        %2831 = vset.pattern.permute.xlu0 0
        %2832 = vperm.xlu0 %2831, %v2766
        %v2833 = vpop.permute.xlu0 %2832
        %2836 = vset.pattern.permute.xlu0 0
        %2837 = vperm.xlu0 %2836, %v2767
        %v2838 = vpop.permute.xlu0 %2837
        %2841 = vset.pattern.permute.xlu0 0
        %2842 = vperm.xlu0 %2841, %v2768
        %v2843 = vpop.permute.xlu0 %2842
        %2846 = vset.pattern.permute.xlu0 0
        %2847 = vperm.xlu0 %2846, %v2769
        %v2848 = vpop.permute.xlu0 %2847
        %2851 = vset.pattern.permute.xlu0 0
        %2852 = vperm.xlu0 %2851, %v2770
        %v2853 = vpop.permute.xlu0 %2852
        %2856 = vset.pattern.permute.xlu0 0
        %2857 = vperm.xlu0 %2856, %v2771
        %v2858 = vpop.permute.xlu0 %2857
        %2861 = vset.pattern.permute.xlu0 0
        %2862 = vperm.xlu0 %2861, %v2772
        %v2863 = vpop.permute.xlu0 %2862
        %2866 = vset.pattern.permute.xlu0 0
        %2867 = vperm.xlu0 %2866, %v2773
        %v2868 = vpop.permute.xlu0 %2867
        %2871 = vset.pattern.permute.xlu0 0
        %2872 = vperm.xlu0 %2871, %v2774
        %v2873 = vpop.permute.xlu0 %2872
        %2876 = vset.pattern.permute.xlu0 0
        %2877 = vperm.xlu0 %2876, %v2775
        %v2878 = vpop.permute.xlu0 %2877
        %2881 = vset.pattern.permute.xlu0 0
        %2882 = vperm.xlu0 %2881, %v2776
        %v2883 = vpop.permute.xlu0 %2882
        %2886 = vset.pattern.permute.xlu0 0
        %2887 = vperm.xlu0 %2886, %v2777
        %v2888 = vpop.permute.xlu0 %2887
        %2891 = vset.pattern.permute.xlu0 0
        %2892 = vperm.xlu0 %2891, %v2778
        %v2893 = vpop.permute.xlu0 %2892
        %2896 = vset.pattern.permute.xlu0 0
        %2897 = vperm.xlu0 %2896, %v2779
        %v2898 = vpop.permute.xlu0 %2897
        %2901 = vset.pattern.permute.xlu0 0
        %2902 = vperm.xlu0 %2901, %v2780
        %v2903 = vpop.permute.xlu0 %2902
        %2906 = vset.pattern.permute.xlu0 0
        %2907 = vperm.xlu0 %2906, %v2781
        %v2908 = vpop.permute.xlu0 %2907
        %2911 = vset.pattern.permute.xlu0 0
        %2912 = vperm.xlu0 %2911, %v2782
        %v2913 = vpop.permute.xlu0 %2912
        %2916 = vset.pattern.permute.xlu0 0
        %2917 = vperm.xlu0 %2916, %v2783
        %v2918 = vpop.permute.xlu0 %2917
        %2921 = vset.pattern.permute.xlu0 0
        %2922 = vperm.xlu0 %2921, %v2784
        %v2923 = vpop.permute.xlu0 %2922
        %2926 = vset.pattern.permute.xlu0 0
        %2927 = vperm.xlu0 %2926, %v2785
        %v2928 = vpop.permute.xlu0 %2927
        %2931 = vset.pattern.permute.xlu0 0
        %2932 = vperm.xlu0 %2931, %v2786
        %v2933 = vpop.permute.xlu0 %2932
        %2936 = vset.pattern.permute.xlu0 0
        %2937 = vperm.xlu0 %2936, %v2787
        %v2938 = vpop.permute.xlu0 %2937
        %2941 = vset.pattern.permute.xlu0 0
        %2942 = vperm.xlu0 %2941, %v2788
        %v2943 = vpop.permute.xlu0 %2942
        %2946 = vset.pattern.permute.xlu0 0
        %2947 = vperm.xlu0 %2946, %v2789
        %v2948 = vpop.permute.xlu0 %2947
        %v2950 = vmul.f32 %v2245, %v2793
        %v2951 = vmul.f32 %v2246, %v2793
        %v2952 = vmul.f32 %v2247, %v2798
        %v2953 = vmul.f32 %v2248, %v2798
        %v2954 = vmul.f32 %v2249, %v2803
        %v2955 = vmul.f32 %v2250, %v2803
        %v2956 = vmul.f32 %v2251, %v2808
        %v2957 = vmul.f32 %v2252, %v2808
        %v2958 = vmul.f32 %v2253, %v2813
        %v2959 = vmul.f32 %v2254, %v2813
        %v2960 = vmul.f32 %v2255, %v2818
        %v2961 = vmul.f32 %v2256, %v2818
        %v2962 = vmul.f32 %v2257, %v2823
        %v2963 = vmul.f32 %v2258, %v2823
        %v2964 = vmul.f32 %v2259, %v2828
        %v2965 = vmul.f32 %v2260, %v2828
        %v2966 = vmul.f32 %v2261, %v2833
        %v2967 = vmul.f32 %v2262, %v2833
        %v2968 = vmul.f32 %v2263, %v2838
        %v2969 = vmul.f32 %v2264, %v2838
        %v2970 = vmul.f32 %v2265, %v2843
        %v2971 = vmul.f32 %v2266, %v2843
        %v2972 = vmul.f32 %v2267, %v2848
        %v2973 = vmul.f32 %v2268, %v2848
        %v2974 = vmul.f32 %v2269, %v2853
        %v2975 = vmul.f32 %v2270, %v2853
        %v2976 = vmul.f32 %v2271, %v2858
        %v2977 = vmul.f32 %v2272, %v2858
        %v2978 = vmul.f32 %v2273, %v2863
        %v2979 = vmul.f32 %v2274, %v2863
        %v2980 = vmul.f32 %v2275, %v2868
        %v2981 = vmul.f32 %v2276, %v2868
        %v2982 = vmul.f32 %v2277, %v2873
        %v2983 = vmul.f32 %v2278, %v2873
        %v2984 = vmul.f32 %v2279, %v2878
        %v2985 = vmul.f32 %v2280, %v2878
        %v2986 = vmul.f32 %v2281, %v2883
        %v2987 = vmul.f32 %v2282, %v2883
        %v2988 = vmul.f32 %v2283, %v2888
        %v2989 = vmul.f32 %v2284, %v2888
        %v2990 = vmul.f32 %v2285, %v2893
        %v2991 = vmul.f32 %v2286, %v2893
        %v2992 = vmul.f32 %v2287, %v2898
        %v2993 = vmul.f32 %v2288, %v2898
        %v2994 = vmul.f32 %v2289, %v2903
        %v2995 = vmul.f32 %v2290, %v2903
        %v2996 = vmul.f32 %v2291, %v2908
        %v2997 = vmul.f32 %v2292, %v2908
        %v2998 = vmul.f32 %v2293, %v2913
        %v2999 = vmul.f32 %v2294, %v2913
        %v3000 = vmul.f32 %v2295, %v2918
        %v3001 = vmul.f32 %v2296, %v2918
        %v3002 = vmul.f32 %v2297, %v2923
        %v3003 = vmul.f32 %v2298, %v2923
        %v3004 = vmul.f32 %v2299, %v2928
        %v3005 = vmul.f32 %v2300, %v2928
        %v3006 = vmul.f32 %v2301, %v2933
        %v3007 = vmul.f32 %v2302, %v2933
        %v3008 = vmul.f32 %v2303, %v2938
        %v3009 = vmul.f32 %v2304, %v2938
        %v3010 = vmul.f32 %v2305, %v2943
        %v3011 = vmul.f32 %v2306, %v2943
        %v3012 = vmul.f32 %v2307, %v2948
        %v3013 = vmul.f32 %v2308, %v2948
        %v3014 = vld [vmem:[%s3] sm:$0xff]
        %v3015 = vld [vmem:[%s3 + $0x8] sm:$0xff]
        %v3016 = vld [vmem:[%s3 + $0x10] sm:$0xff]
        %v3017 = vld [vmem:[%s3 + $0x18] sm:$0xff]
        %v3018 = vld [vmem:[%s3 + $0x20] sm:$0xff]
        %v3019 = vld [vmem:[%s3 + $0x28] sm:$0xff]
        %v3020 = vld [vmem:[%s3 + $0x30] sm:$0xff]
        %v3021 = vld [vmem:[%s3 + $0x38] sm:$0xff]
        %v3022 = vld [vmem:[%s3 + $0x40] sm:$0xff]
        %v3023 = vld [vmem:[%s3 + $0x48] sm:$0xff]
        %v3024 = vld [vmem:[%s3 + $0x50] sm:$0xff]
        %v3025 = vld [vmem:[%s3 + $0x58] sm:$0xff]
        %v3026 = vld [vmem:[%s3 + $0x60] sm:$0xff]
        %v3027 = vld [vmem:[%s3 + $0x68] sm:$0xff]
        %v3028 = vld [vmem:[%s3 + $0x70] sm:$0xff]
        %v3029 = vld [vmem:[%s3 + $0x78] sm:$0xff]
        %v3030 = vld [vmem:[%s3 + $0x80] sm:$0xff]
        %v3031 = vld [vmem:[%s3 + $0x88] sm:$0xff]
        %v3032 = vld [vmem:[%s3 + $0x90] sm:$0xff]
        %v3033 = vld [vmem:[%s3 + $0x98] sm:$0xff]
        %v3034 = vld [vmem:[%s3 + $0xa0] sm:$0xff]
        %v3035 = vld [vmem:[%s3 + $0xa8] sm:$0xff]
        %v3036 = vld [vmem:[%s3 + $0xb0] sm:$0xff]
        %v3037 = vld [vmem:[%s3 + $0xb8] sm:$0xff]
        %v3038 = vld [vmem:[%s3 + $0xc0] sm:$0xff]
        %v3039 = vld [vmem:[%s3 + $0xc8] sm:$0xff]
        %v3040 = vld [vmem:[%s3 + $0xd0] sm:$0xff]
        %v3041 = vld [vmem:[%s3 + $0xd8] sm:$0xff]
        %v3042 = vld [vmem:[%s3 + $0xe0] sm:$0xff]
        %v3043 = vld [vmem:[%s3 + $0xe8] sm:$0xff]
        %v3044 = vld [vmem:[%s3 + $0xf0] sm:$0xff]
        %v3045 = vld [vmem:[%s3 + $0xf8] sm:$0xff]
        %3047 = vset.pattern.permute.xlu0 0
        %3048 = vperm.xlu0 %3047, %v3014
        %v3049 = vpop.permute.xlu0 %3048
        %3052 = vset.pattern.permute.xlu0 0
        %3053 = vperm.xlu0 %3052, %v3015
        %v3054 = vpop.permute.xlu0 %3053
        %3057 = vset.pattern.permute.xlu0 0
        %3058 = vperm.xlu0 %3057, %v3016
        %v3059 = vpop.permute.xlu0 %3058
        %3062 = vset.pattern.permute.xlu0 0
        %3063 = vperm.xlu0 %3062, %v3017
        %v3064 = vpop.permute.xlu0 %3063
        %3067 = vset.pattern.permute.xlu0 0
        %3068 = vperm.xlu0 %3067, %v3018
        %v3069 = vpop.permute.xlu0 %3068
        %3072 = vset.pattern.permute.xlu0 0
        %3073 = vperm.xlu0 %3072, %v3019
        %v3074 = vpop.permute.xlu0 %3073
        %3077 = vset.pattern.permute.xlu0 0
        %3078 = vperm.xlu0 %3077, %v3020
        %v3079 = vpop.permute.xlu0 %3078
        %3082 = vset.pattern.permute.xlu0 0
        %3083 = vperm.xlu0 %3082, %v3021
        %v3084 = vpop.permute.xlu0 %3083
        %3087 = vset.pattern.permute.xlu0 0
        %3088 = vperm.xlu0 %3087, %v3022
        %v3089 = vpop.permute.xlu0 %3088
        %3092 = vset.pattern.permute.xlu0 0
        %3093 = vperm.xlu0 %3092, %v3023
        %v3094 = vpop.permute.xlu0 %3093
        %3097 = vset.pattern.permute.xlu0 0
        %3098 = vperm.xlu0 %3097, %v3024
        %v3099 = vpop.permute.xlu0 %3098
        %3102 = vset.pattern.permute.xlu0 0
        %3103 = vperm.xlu0 %3102, %v3025
        %v3104 = vpop.permute.xlu0 %3103
        %3107 = vset.pattern.permute.xlu0 0
        %3108 = vperm.xlu0 %3107, %v3026
        %v3109 = vpop.permute.xlu0 %3108
        %3112 = vset.pattern.permute.xlu0 0
        %3113 = vperm.xlu0 %3112, %v3027
        %v3114 = vpop.permute.xlu0 %3113
        %3117 = vset.pattern.permute.xlu0 0
        %3118 = vperm.xlu0 %3117, %v3028
        %v3119 = vpop.permute.xlu0 %3118
        %3122 = vset.pattern.permute.xlu0 0
        %3123 = vperm.xlu0 %3122, %v3029
        %v3124 = vpop.permute.xlu0 %3123
        %3127 = vset.pattern.permute.xlu0 0
        %3128 = vperm.xlu0 %3127, %v3030
        %v3129 = vpop.permute.xlu0 %3128
        %3132 = vset.pattern.permute.xlu0 0
        %3133 = vperm.xlu0 %3132, %v3031
        %v3134 = vpop.permute.xlu0 %3133
        %3137 = vset.pattern.permute.xlu0 0
        %3138 = vperm.xlu0 %3137, %v3032
        %v3139 = vpop.permute.xlu0 %3138
        %3142 = vset.pattern.permute.xlu0 0
        %3143 = vperm.xlu0 %3142, %v3033
        %v3144 = vpop.permute.xlu0 %3143
        %3147 = vset.pattern.permute.xlu0 0
        %3148 = vperm.xlu0 %3147, %v3034
        %v3149 = vpop.permute.xlu0 %3148
        %3152 = vset.pattern.permute.xlu0 0
        %3153 = vperm.xlu0 %3152, %v3035
        %v3154 = vpop.permute.xlu0 %3153
        %3157 = vset.pattern.permute.xlu0 0
        %3158 = vperm.xlu0 %3157, %v3036
        %v3159 = vpop.permute.xlu0 %3158
        %3162 = vset.pattern.permute.xlu0 0
        %3163 = vperm.xlu0 %3162, %v3037
        %v3164 = vpop.permute.xlu0 %3163
        %3167 = vset.pattern.permute.xlu0 0
        %3168 = vperm.xlu0 %3167, %v3038
        %v3169 = vpop.permute.xlu0 %3168
        %3172 = vset.pattern.permute.xlu0 0
        %3173 = vperm.xlu0 %3172, %v3039
        %v3174 = vpop.permute.xlu0 %3173
        %3177 = vset.pattern.permute.xlu0 0
        %3178 = vperm.xlu0 %3177, %v3040
        %v3179 = vpop.permute.xlu0 %3178
        %3182 = vset.pattern.permute.xlu0 0
        %3183 = vperm.xlu0 %3182, %v3041
        %v3184 = vpop.permute.xlu0 %3183
        %3187 = vset.pattern.permute.xlu0 0
        %3188 = vperm.xlu0 %3187, %v3042
        %v3189 = vpop.permute.xlu0 %3188
        %3192 = vset.pattern.permute.xlu0 0
        %3193 = vperm.xlu0 %3192, %v3043
        %v3194 = vpop.permute.xlu0 %3193
        %3197 = vset.pattern.permute.xlu0 0
        %3198 = vperm.xlu0 %3197, %v3044
        %v3199 = vpop.permute.xlu0 %3198
        %3202 = vset.pattern.permute.xlu0 0
        %3203 = vperm.xlu0 %3202, %v3045
        %v3204 = vpop.permute.xlu0 %3203
        %v3206 = vmul.f32 %v2950, %v3049
        %v3207 = vmul.f32 %v2951, %v3049
        %v3208 = vmul.f32 %v2952, %v3054
        %v3209 = vmul.f32 %v2953, %v3054
        %v3210 = vmul.f32 %v2954, %v3059
        %v3211 = vmul.f32 %v2955, %v3059
        %v3212 = vmul.f32 %v2956, %v3064
        %v3213 = vmul.f32 %v2957, %v3064
        %v3214 = vmul.f32 %v2958, %v3069
        %v3215 = vmul.f32 %v2959, %v3069
        %v3216 = vmul.f32 %v2960, %v3074
        %v3217 = vmul.f32 %v2961, %v3074
        %v3218 = vmul.f32 %v2962, %v3079
        %v3219 = vmul.f32 %v2963, %v3079
        %v3220 = vmul.f32 %v2964, %v3084
        %v3221 = vmul.f32 %v2965, %v3084
        %v3222 = vmul.f32 %v2966, %v3089
        %v3223 = vmul.f32 %v2967, %v3089
        %v3224 = vmul.f32 %v2968, %v3094
        %v3225 = vmul.f32 %v2969, %v3094
        %v3226 = vmul.f32 %v2970, %v3099
        %v3227 = vmul.f32 %v2971, %v3099
        %v3228 = vmul.f32 %v2972, %v3104
        %v3229 = vmul.f32 %v2973, %v3104
        %v3230 = vmul.f32 %v2974, %v3109
        %v3231 = vmul.f32 %v2975, %v3109
        %v3232 = vmul.f32 %v2976, %v3114
        %v3233 = vmul.f32 %v2977, %v3114
        %v3234 = vmul.f32 %v2978, %v3119
        %v3235 = vmul.f32 %v2979, %v3119
        %v3236 = vmul.f32 %v2980, %v3124
        %v3237 = vmul.f32 %v2981, %v3124
        %v3238 = vmul.f32 %v2982, %v3129
        %v3239 = vmul.f32 %v2983, %v3129
        %v3240 = vmul.f32 %v2984, %v3134
        %v3241 = vmul.f32 %v2985, %v3134
        %v3242 = vmul.f32 %v2986, %v3139
        %v3243 = vmul.f32 %v2987, %v3139
        %v3244 = vmul.f32 %v2988, %v3144
        %v3245 = vmul.f32 %v2989, %v3144
        %v3246 = vmul.f32 %v2990, %v3149
        %v3247 = vmul.f32 %v2991, %v3149
        %v3248 = vmul.f32 %v2992, %v3154
        %v3249 = vmul.f32 %v2993, %v3154
        %v3250 = vmul.f32 %v2994, %v3159
        %v3251 = vmul.f32 %v2995, %v3159
        %v3252 = vmul.f32 %v2996, %v3164
        %v3253 = vmul.f32 %v2997, %v3164
        %v3254 = vmul.f32 %v2998, %v3169
        %v3255 = vmul.f32 %v2999, %v3169
        %v3256 = vmul.f32 %v3000, %v3174
        %v3257 = vmul.f32 %v3001, %v3174
        %v3258 = vmul.f32 %v3002, %v3179
        %v3259 = vmul.f32 %v3003, %v3179
        %v3260 = vmul.f32 %v3004, %v3184
        %v3261 = vmul.f32 %v3005, %v3184
        %v3262 = vmul.f32 %v3006, %v3189
        %v3263 = vmul.f32 %v3007, %v3189
        %v3264 = vmul.f32 %v3008, %v3194
        %v3265 = vmul.f32 %v3009, %v3194
        %v3266 = vmul.f32 %v3010, %v3199
        %v3267 = vmul.f32 %v3011, %v3199
        %v3268 = vmul.f32 %v3012, %v3204
        %v3269 = vmul.f32 %v3013, %v3204
        %v3270 = vld [vmem:[%s4] sm:$0xff]
        %v3271 = vld [vmem:[%s4 + $0x8] sm:$0xff]
        %v3272 = vld [vmem:[%s4 + $0x10] sm:$0xff]
        %v3273 = vld [vmem:[%s4 + $0x18] sm:$0xff]
        %v3274 = vld [vmem:[%s4 + $0x20] sm:$0xff]
        %v3275 = vld [vmem:[%s4 + $0x28] sm:$0xff]
        %v3276 = vld [vmem:[%s4 + $0x30] sm:$0xff]
        %v3277 = vld [vmem:[%s4 + $0x38] sm:$0xff]
        %v3278 = vld [vmem:[%s4 + $0x40] sm:$0xff]
        %v3279 = vld [vmem:[%s4 + $0x48] sm:$0xff]
        %v3280 = vld [vmem:[%s4 + $0x50] sm:$0xff]
        %v3281 = vld [vmem:[%s4 + $0x58] sm:$0xff]
        %v3282 = vld [vmem:[%s4 + $0x60] sm:$0xff]
        %v3283 = vld [vmem:[%s4 + $0x68] sm:$0xff]
        %v3284 = vld [vmem:[%s4 + $0x70] sm:$0xff]
        %v3285 = vld [vmem:[%s4 + $0x78] sm:$0xff]
        %v3286 = vld [vmem:[%s4 + $0x80] sm:$0xff]
        %v3287 = vld [vmem:[%s4 + $0x88] sm:$0xff]
        %v3288 = vld [vmem:[%s4 + $0x90] sm:$0xff]
        %v3289 = vld [vmem:[%s4 + $0x98] sm:$0xff]
        %v3290 = vld [vmem:[%s4 + $0xa0] sm:$0xff]
        %v3291 = vld [vmem:[%s4 + $0xa8] sm:$0xff]
        %v3292 = vld [vmem:[%s4 + $0xb0] sm:$0xff]
        %v3293 = vld [vmem:[%s4 + $0xb8] sm:$0xff]
        %v3294 = vld [vmem:[%s4 + $0xc0] sm:$0xff]
        %v3295 = vld [vmem:[%s4 + $0xc8] sm:$0xff]
        %v3296 = vld [vmem:[%s4 + $0xd0] sm:$0xff]
        %v3297 = vld [vmem:[%s4 + $0xd8] sm:$0xff]
        %v3298 = vld [vmem:[%s4 + $0xe0] sm:$0xff]
        %v3299 = vld [vmem:[%s4 + $0xe8] sm:$0xff]
        %v3300 = vld [vmem:[%s4 + $0xf0] sm:$0xff]
        %v3301 = vld [vmem:[%s4 + $0xf8] sm:$0xff]
        %3303 = vset.pattern.permute.xlu0 0
        %3304 = vperm.xlu0 %3303, %v3270
        %v3305 = vpop.permute.xlu0 %3304
        %3308 = vset.pattern.permute.xlu0 0
        %3309 = vperm.xlu0 %3308, %v3271
        %v3310 = vpop.permute.xlu0 %3309
        %3313 = vset.pattern.permute.xlu0 0
        %3314 = vperm.xlu0 %3313, %v3272
        %v3315 = vpop.permute.xlu0 %3314
        %3318 = vset.pattern.permute.xlu0 0
        %3319 = vperm.xlu0 %3318, %v3273
        %v3320 = vpop.permute.xlu0 %3319
        %3323 = vset.pattern.permute.xlu0 0
        %3324 = vperm.xlu0 %3323, %v3274
        %v3325 = vpop.permute.xlu0 %3324
        %3328 = vset.pattern.permute.xlu0 0
        %3329 = vperm.xlu0 %3328, %v3275
        %v3330 = vpop.permute.xlu0 %3329
        %3333 = vset.pattern.permute.xlu0 0
        %3334 = vperm.xlu0 %3333, %v3276
        %v3335 = vpop.permute.xlu0 %3334
        %3338 = vset.pattern.permute.xlu0 0
        %3339 = vperm.xlu0 %3338, %v3277
        %v3340 = vpop.permute.xlu0 %3339
        %3343 = vset.pattern.permute.xlu0 0
        %3344 = vperm.xlu0 %3343, %v3278
        %v3345 = vpop.permute.xlu0 %3344
        %3348 = vset.pattern.permute.xlu0 0
        %3349 = vperm.xlu0 %3348, %v3279
        %v3350 = vpop.permute.xlu0 %3349
        %3353 = vset.pattern.permute.xlu0 0
        %3354 = vperm.xlu0 %3353, %v3280
        %v3355 = vpop.permute.xlu0 %3354
        %3358 = vset.pattern.permute.xlu0 0
        %3359 = vperm.xlu0 %3358, %v3281
        %v3360 = vpop.permute.xlu0 %3359
        %3363 = vset.pattern.permute.xlu0 0
        %3364 = vperm.xlu0 %3363, %v3282
        %v3365 = vpop.permute.xlu0 %3364
        %3368 = vset.pattern.permute.xlu0 0
        %3369 = vperm.xlu0 %3368, %v3283
        %v3370 = vpop.permute.xlu0 %3369
        %3373 = vset.pattern.permute.xlu0 0
        %3374 = vperm.xlu0 %3373, %v3284
        %v3375 = vpop.permute.xlu0 %3374
        %3378 = vset.pattern.permute.xlu0 0
        %3379 = vperm.xlu0 %3378, %v3285
        %v3380 = vpop.permute.xlu0 %3379
        %3383 = vset.pattern.permute.xlu0 0
        %3384 = vperm.xlu0 %3383, %v3286
        %v3385 = vpop.permute.xlu0 %3384
        %3388 = vset.pattern.permute.xlu0 0
        %3389 = vperm.xlu0 %3388, %v3287
        %v3390 = vpop.permute.xlu0 %3389
        %3393 = vset.pattern.permute.xlu0 0
        %3394 = vperm.xlu0 %3393, %v3288
        %v3395 = vpop.permute.xlu0 %3394
        %3398 = vset.pattern.permute.xlu0 0
        %3399 = vperm.xlu0 %3398, %v3289
        %v3400 = vpop.permute.xlu0 %3399
        %3403 = vset.pattern.permute.xlu0 0
        %3404 = vperm.xlu0 %3403, %v3290
        %v3405 = vpop.permute.xlu0 %3404
        %3408 = vset.pattern.permute.xlu0 0
        %3409 = vperm.xlu0 %3408, %v3291
        %v3410 = vpop.permute.xlu0 %3409
        %3413 = vset.pattern.permute.xlu0 0
        %3414 = vperm.xlu0 %3413, %v3292
        %v3415 = vpop.permute.xlu0 %3414
        %3418 = vset.pattern.permute.xlu0 0
        %3419 = vperm.xlu0 %3418, %v3293
        %v3420 = vpop.permute.xlu0 %3419
        %3423 = vset.pattern.permute.xlu0 0
        %3424 = vperm.xlu0 %3423, %v3294
        %v3425 = vpop.permute.xlu0 %3424
        %3428 = vset.pattern.permute.xlu0 0
        %3429 = vperm.xlu0 %3428, %v3295
        %v3430 = vpop.permute.xlu0 %3429
        %3433 = vset.pattern.permute.xlu0 0
        %3434 = vperm.xlu0 %3433, %v3296
        %v3435 = vpop.permute.xlu0 %3434
        %3438 = vset.pattern.permute.xlu0 0
        %3439 = vperm.xlu0 %3438, %v3297
        %v3440 = vpop.permute.xlu0 %3439
        %3443 = vset.pattern.permute.xlu0 0
        %3444 = vperm.xlu0 %3443, %v3298
        %v3445 = vpop.permute.xlu0 %3444
        %3448 = vset.pattern.permute.xlu0 0
        %3449 = vperm.xlu0 %3448, %v3299
        %v3450 = vpop.permute.xlu0 %3449
        %3453 = vset.pattern.permute.xlu0 0
        %3454 = vperm.xlu0 %3453, %v3300
        %v3455 = vpop.permute.xlu0 %3454
        %3458 = vset.pattern.permute.xlu0 0
        %3459 = vperm.xlu0 %3458, %v3301
        %v3460 = vpop.permute.xlu0 %3459
        %v3462 = vadd.f32 %v3206, %v3305
        %v3463 = vadd.f32 %v3207, %v3305
        %v3464 = vadd.f32 %v3208, %v3310
        %v3465 = vadd.f32 %v3209, %v3310
        %v3466 = vadd.f32 %v3210, %v3315
        %v3467 = vadd.f32 %v3211, %v3315
        %v3468 = vadd.f32 %v3212, %v3320
        %v3469 = vadd.f32 %v3213, %v3320
        %v3470 = vadd.f32 %v3214, %v3325
        %v3471 = vadd.f32 %v3215, %v3325
        %v3472 = vadd.f32 %v3216, %v3330
        %v3473 = vadd.f32 %v3217, %v3330
        %v3474 = vadd.f32 %v3218, %v3335
        %v3475 = vadd.f32 %v3219, %v3335
        %v3476 = vadd.f32 %v3220, %v3340
        %v3477 = vadd.f32 %v3221, %v3340
        %v3478 = vadd.f32 %v3222, %v3345
        %v3479 = vadd.f32 %v3223, %v3345
        %v3480 = vadd.f32 %v3224, %v3350
        %v3481 = vadd.f32 %v3225, %v3350
        %v3482 = vadd.f32 %v3226, %v3355
        %v3483 = vadd.f32 %v3227, %v3355
        %v3484 = vadd.f32 %v3228, %v3360
        %v3485 = vadd.f32 %v3229, %v3360
        %v3486 = vadd.f32 %v3230, %v3365
        %v3487 = vadd.f32 %v3231, %v3365
        %v3488 = vadd.f32 %v3232, %v3370
        %v3489 = vadd.f32 %v3233, %v3370
        %v3490 = vadd.f32 %v3234, %v3375
        %v3491 = vadd.f32 %v3235, %v3375
        %v3492 = vadd.f32 %v3236, %v3380
        %v3493 = vadd.f32 %v3237, %v3380
        %v3494 = vadd.f32 %v3238, %v3385
        %v3495 = vadd.f32 %v3239, %v3385
        %v3496 = vadd.f32 %v3240, %v3390
        %v3497 = vadd.f32 %v3241, %v3390
        %v3498 = vadd.f32 %v3242, %v3395
        %v3499 = vadd.f32 %v3243, %v3395
        %v3500 = vadd.f32 %v3244, %v3400
        %v3501 = vadd.f32 %v3245, %v3400
        %v3502 = vadd.f32 %v3246, %v3405
        %v3503 = vadd.f32 %v3247, %v3405
        %v3504 = vadd.f32 %v3248, %v3410
        %v3505 = vadd.f32 %v3249, %v3410
        %v3506 = vadd.f32 %v3250, %v3415
        %v3507 = vadd.f32 %v3251, %v3415
        %v3508 = vadd.f32 %v3252, %v3420
        %v3509 = vadd.f32 %v3253, %v3420
        %v3510 = vadd.f32 %v3254, %v3425
        %v3511 = vadd.f32 %v3255, %v3425
        %v3512 = vadd.f32 %v3256, %v3430
        %v3513 = vadd.f32 %v3257, %v3430
        %v3514 = vadd.f32 %v3258, %v3435
        %v3515 = vadd.f32 %v3259, %v3435
        %v3516 = vadd.f32 %v3260, %v3440
        %v3517 = vadd.f32 %v3261, %v3440
        %v3518 = vadd.f32 %v3262, %v3445
        %v3519 = vadd.f32 %v3263, %v3445
        %v3520 = vadd.f32 %v3264, %v3450
        %v3521 = vadd.f32 %v3265, %v3450
        %v3522 = vadd.f32 %v3266, %v3455
        %v3523 = vadd.f32 %v3267, %v3455
        %v3524 = vadd.f32 %v3268, %v3460
        %v3525 = vadd.f32 %v3269, %v3460
        %3526 = vst [vmem:[%s244] sm:$0xff] %v3462
        %3527 = vst [vmem:[%s244 + $0x8] sm:$0xff] %v3463
        %3528 = vst [vmem:[%s244 + $0x10] sm:$0xff] %v3464
        %3529 = vst [vmem:[%s244 + $0x18] sm:$0xff] %v3465
        %3530 = vst [vmem:[%s244 + $0x20] sm:$0xff] %v3466
        %3531 = vst [vmem:[%s244 + $0x28] sm:$0xff] %v3467
        %3532 = vst [vmem:[%s244 + $0x30] sm:$0xff] %v3468
        %3533 = vst [vmem:[%s244 + $0x38] sm:$0xff] %v3469
        %3534 = vst [vmem:[%s244 + $0x40] sm:$0xff] %v3470
        %3535 = vst [vmem:[%s244 + $0x48] sm:$0xff] %v3471
        %3536 = vst [vmem:[%s244 + $0x50] sm:$0xff] %v3472
        %3537 = vst [vmem:[%s244 + $0x58] sm:$0xff] %v3473
        %3538 = vst [vmem:[%s244 + $0x60] sm:$0xff] %v3474
        %3539 = vst [vmem:[%s244 + $0x68] sm:$0xff] %v3475
        %3540 = vst [vmem:[%s244 + $0x70] sm:$0xff] %v3476
        %3541 = vst [vmem:[%s244 + $0x78] sm:$0xff] %v3477
        %3542 = vst [vmem:[%s244 + $0x80] sm:$0xff] %v3478
        %3543 = vst [vmem:[%s244 + $0x88] sm:$0xff] %v3479
        %3544 = vst [vmem:[%s244 + $0x90] sm:$0xff] %v3480
        %3545 = vst [vmem:[%s244 + $0x98] sm:$0xff] %v3481
        %3546 = vst [vmem:[%s244 + $0xa0] sm:$0xff] %v3482
        %3547 = vst [vmem:[%s244 + $0xa8] sm:$0xff] %v3483
        %3548 = vst [vmem:[%s244 + $0xb0] sm:$0xff] %v3484
        %3549 = vst [vmem:[%s244 + $0xb8] sm:$0xff] %v3485
        %3550 = vst [vmem:[%s244 + $0xc0] sm:$0xff] %v3486
        %3551 = vst [vmem:[%s244 + $0xc8] sm:$0xff] %v3487
        %3552 = vst [vmem:[%s244 + $0xd0] sm:$0xff] %v3488
        %3553 = vst [vmem:[%s244 + $0xd8] sm:$0xff] %v3489
        %3554 = vst [vmem:[%s244 + $0xe0] sm:$0xff] %v3490
        %3555 = vst [vmem:[%s244 + $0xe8] sm:$0xff] %v3491
        %3556 = vst [vmem:[%s244 + $0xf0] sm:$0xff] %v3492
        %3557 = vst [vmem:[%s244 + $0xf8] sm:$0xff] %v3493
        %3558 = vst [vmem:[%s244 + $0x100] sm:$0xff] %v3494
        %3559 = vst [vmem:[%s244 + $0x108] sm:$0xff] %v3495
        %3560 = vst [vmem:[%s244 + $0x110] sm:$0xff] %v3496
        %3561 = vst [vmem:[%s244 + $0x118] sm:$0xff] %v3497
        %3562 = vst [vmem:[%s244 + $0x120] sm:$0xff] %v3498
        %3563 = vst [vmem:[%s244 + $0x128] sm:$0xff] %v3499
        %3564 = vst [vmem:[%s244 + $0x130] sm:$0xff] %v3500
        %3565 = vst [vmem:[%s244 + $0x138] sm:$0xff] %v3501
        %3566 = vst [vmem:[%s244 + $0x140] sm:$0xff] %v3502
        %3567 = vst [vmem:[%s244 + $0x148] sm:$0xff] %v3503
        %3568 = vst [vmem:[%s244 + $0x150] sm:$0xff] %v3504
        %3569 = vst [vmem:[%s244 + $0x158] sm:$0xff] %v3505
        %3570 = vst [vmem:[%s244 + $0x160] sm:$0xff] %v3506
        %3571 = vst [vmem:[%s244 + $0x168] sm:$0xff] %v3507
        %3572 = vst [vmem:[%s244 + $0x170] sm:$0xff] %v3508
        %3573 = vst [vmem:[%s244 + $0x178] sm:$0xff] %v3509
        %3574 = vst [vmem:[%s244 + $0x180] sm:$0xff] %v3510
        %3575 = vst [vmem:[%s244 + $0x188] sm:$0xff] %v3511
        %3576 = vst [vmem:[%s244 + $0x190] sm:$0xff] %v3512
        %3577 = vst [vmem:[%s244 + $0x198] sm:$0xff] %v3513
        %3578 = vst [vmem:[%s244 + $0x1a0] sm:$0xff] %v3514
        %3579 = vst [vmem:[%s244 + $0x1a8] sm:$0xff] %v3515
        %3580 = vst [vmem:[%s244 + $0x1b0] sm:$0xff] %v3516
        %3581 = vst [vmem:[%s244 + $0x1b8] sm:$0xff] %v3517
        %3582 = vst [vmem:[%s244 + $0x1c0] sm:$0xff] %v3518
        %3583 = vst [vmem:[%s244 + $0x1c8] sm:$0xff] %v3519
        %3584 = vst [vmem:[%s244 + $0x1d0] sm:$0xff] %v3520
        %3585 = vst [vmem:[%s244 + $0x1d8] sm:$0xff] %v3521
        %3586 = vst [vmem:[%s244 + $0x1e0] sm:$0xff] %v3522
        %3587 = vst [vmem:[%s244 + $0x1e8] sm:$0xff] %v3523
        %3588 = vst [vmem:[%s244 + $0x1f0] sm:$0xff] %v3524
        %3589 = vst [vmem:[%s244 + $0x1f8] sm:$0xff] %v3525
        %s3590 = sand.u32 %s159, 1
        %s3591 = scalar_lea.sflag [#allocation3], %s3590
        %s3592 = sand.u32 %s159, 1
        %s3593 = smul.addr %s3592, 512
        %s3594 = scalar_lea.vmem [#allocation2], %s3593
        // Predicated region
        $region45: #{input_proj_pallas.1} parent=43 // pred_check
          %p3595 = pneg %p169
        $region46: #{input_proj_pallas.1} parent=43 // pred_check_branch
          %3597 = sbr.rel (%p3595) target = $region48
        $region47: #{input_proj_pallas.1} parent=43 // pred_region
          %s3599 = ssub.s32 8192, 8192
          %3600 = vsyncadd %s3591, %s3599
          %s3601 = smul.addr %s20, 64
          %s3602 = smul.addr %s3601, 128
          %s3603 = scalar_lea.hbm %s6, %s3602
          %s3604 = sshll.u32 %s3594, 4
          %s3605 = int_to_ptr.vmem [resolvable:$true] %s3604
          %3610 = dma.vmem_to_hbm [thread:$0]  %s3605, 8192, %s3603, %s3591, 256, 256, 16
        $region48: #{input_proj_pallas.1} parent=43 // pred_fallthru
          _
      $region44: #{input_proj_pallas.1} parent=5 // pred_fallthru
        _
      %p3611 = scmp.le.s32.totalorder 2, %s15
      // Predicated region
      $region49: #{input_proj_pallas.1} parent=5 // pred_check
        %p3612 = pneg %p3611
      $region50: #{input_proj_pallas.1} parent=5 // pred_check_branch
        %3614 = sbr.rel (%p3612) target = $region52
      $region51: #{input_proj_pallas.1} parent=5 // pred_region
        %s3615 = ssub.s32 %s15, 2
        // Predicated region
        $region53: #{input_proj_pallas.1} parent=51 // pred_check
          %p3616 = pneg %p175
        $region54: #{input_proj_pallas.1} parent=51 // pred_check_branch
          %3618 = sbr.rel (%p3616) target = $region56
        $region55: #{input_proj_pallas.1} parent=51 // pred_region
          %s3619 = sand.u32 %s160, 1
          %s3620 = scalar_lea.sflag [#allocation3], %s3619
          %s3621 = sand.u32 %s160, 1
          %s3622 = smul.addr %s3621, 512
          %s3623 = scalar_lea.vmem [#allocation2], %s3622
          %3624 = dma.done %s3620, 8192
        $region56: #{input_proj_pallas.1} parent=51 // pred_fallthru
          _
      $region52: #{input_proj_pallas.1} parent=5 // pred_fallthru
        _
    $region6: #{input_proj_pallas.1} parent=1 // loop_footer
      %s19 = sadd.s32 1, %s15
    $region7: #{input_proj_pallas.1} parent=1 // loop_footer_branch
      %14 = sbr.rel target = $region3
    $region8: #{input_proj_pallas.1} parent=1 // loop_exit
      _
    %3625 = vsyncpa [#allocation3], 1
    %s3626 = scalar_lea.sflag [#allocation3], 1
    %3627 = vsyncpa %s3626, 1

</llo_original>
